<compile_context>
chip_gen: v7x
topology: tpu7x:2x2x1
jax: 0.10.0
libtpu: 0.0.40
codegen_flags: <defaults>
</compile_context>

<pallas_src>
import functools

import jax
import jax.numpy as jnp
from jax.experimental import pallas as pl
from jax.experimental.pallas import tpu as pltpu


_W_ORDER = (
    "wr3", "br3", "wr6", "br6", "wr9", "br9",
    "wdw1", "bdw1", "wpw1", "bpw1",
    "wdw2", "bdw2", "wpw2", "bpw2",
    "wdw3", "bdw3", "wpw3", "bpw3",
    "wc11", "bc11",
)

# Dilation values used by the column masks; index 0 (d=1) is the depthwise
# conv, indices 1..3 are the rate3 / rate6 / rate9 dilated convs.
_DILS = (1, 3, 6, 9)


def _make_col_masks(W, HW):
    """(len(_DILS)*3, HW) f32 0/1 masks, row = dil_idx*3 + kx.

    mask[dil_idx*3 + kx, q] == 1 iff column (q % W) + (kx-1)*d stays inside
    [0, W), i.e. the horizontal tap does not wrap across image rows in the
    flattened (H*W,) spatial axis.
    """
    col = jnp.arange(HW, dtype=jnp.int32) % W
    rows = []
    for d in _DILS:
        for kx in range(3):
            dx = (kx - 1) * d
            ok = jnp.logical_and(col + dx >= 0, col + dx < W)
            rows.append(ok.astype(jnp.float32))
    return jnp.stack(rows, axis=0)


# ----------------------------------------------------------------------------
# Fused dila kernel: one grid step == one batch element, everything in VMEM.
# ----------------------------------------------------------------------------
def _dila_kernel(x_ref, masks_ref,
                 wr3_ref, br3_ref, wr6_ref, br6_ref, wr9_ref, br9_ref,
                 wdw1_ref, bdw1_ref, wpw1_ref, bpw1_ref,
                 wdw2_ref, bdw2_ref, wpw2_ref, bpw2_ref,
                 wdw3_ref, bdw3_ref, wpw3_ref, bpw3_ref,
                 wc11_ref, bc11_ref,
                 o_ref,
                 buf_ref, patch_ref,
                 *, C, H, W, pad):
    HW = H * W

    def shifted(cz, dy, dx, dil_idx, kx):
        """(cz, HW) spatially shifted, zero-padded, wrap-masked slice."""
        s = dy * W + dx
        sl = buf_ref[0:cz, pad + s:pad + s + HW]
        if kx == 1:                      # dx == 0 -> no horizontal wrap
            return sl
        r = dil_idx * 3 + kx
        return sl * masks_ref[r:r + 1, :]

    def dilated_conv(z, w_ref_, b_ref_, d, dil_idx):
        """Dense 3x3 conv (dilation=d, padding=d) as one K=9*C MXU matmul."""
        buf_ref[0:C, pad:pad + HW] = z
        for ky in range(3):
            for kx in range(3):
                tap = ky * 3 + kx
                patch_ref[tap * C:(tap + 1) * C, :] = shifted(
                    C, (ky - 1) * d, (kx - 1) * d, dil_idx, kx)
        return jnp.dot(w_ref_[...], patch_ref[...],
                       preferred_element_type=jnp.float32) + b_ref_[...]

    def ds_block(cz, wdw_ref_, bdw_ref_, wpw_ref_, bpw_ref_):
        """Depthwise 3x3 (pad 1) + pointwise 1x1 with folded BN, then ReLU.

        Expects rows [0:cz) of the scratch-buffer centre to already hold the
        "concatenated" input channels.
        """
        acc = jnp.zeros((cz, HW), jnp.float32)
        for ky in range(3):
            for kx in range(3):
                tap = ky * 3 + kx
                acc = acc + wdw_ref_[:, tap:tap + 1] * shifted(
                    cz, ky - 1, kx - 1, 0, kx)
        dw = acc + bdw_ref_[...]
        out = jnp.dot(wpw_ref_[...], dw,
                      preferred_element_type=jnp.float32) + bpw_ref_[...]
        return jnp.maximum(out, 0.0)

    # Zero the scratch once: its left/right lane padding is the convs'
    # zero-padding and is never written afterwards.
    buf_ref[...] = jnp.zeros_like(buf_ref)

    x = x_ref[0]                                             # (C, HW)

    # rate3 (3x3, dilation 3)  ->  ds block 1 on cat(r1, x)
    r1 = dilated_conv(x, wr3_ref, br3_ref, 3, 1)
    buf_ref[0:C, pad:pad + HW] = r1
    buf_ref[C:2 * C, pad:pad + HW] = x
    d1 = ds_block(2 * C, wdw1_ref, bdw1_ref, wpw1_ref, bpw1_ref)

    # rate6  ->  ds block 2 on cat(r2, r1, x)
    r2 = dilated_conv(d1, wr6_ref, br6_ref, 6, 2)
    buf_ref[0:C, pad:pad + HW] = r2
    buf_ref[C:2 * C, pad:pad + HW] = r1
    buf_ref[2 * C:3 * C, pad:pad + HW] = x
    d2 = ds_block(3 * C, wdw2_ref, bdw2_ref, wpw2_ref, bpw2_ref)

    # rate9  ->  ds block 3 on cat(r3, r2, r1, x)
    r3 = dilated_conv(d2, wr9_ref, br9_ref, 9, 3)
    buf_ref[0:C, pad:pad + HW] = r3
    buf_ref[C:2 * C, pad:pad + HW] = r2
    buf_ref[2 * C:3 * C, pad:pad + HW] = r1
    buf_ref[3 * C:4 * C, pad:pad + HW] = x
    d3 = ds_block(4 * C, wdw3_ref, bdw3_ref, wpw3_ref, bpw3_ref)

    # con1_1 (1x1) with folded BN + ReLU.
    out = jnp.dot(wc11_ref[...], d3,
                  preferred_element_type=jnp.float32) + bc11_ref[...]
    o_ref[0] = jnp.maximum(out, 0.0)


def dila_forward(x_nchw, prep, *, C, H, W):
    """Fused dila forward.  x_nchw: (B, C, H, W) float32."""
    B = x_nchw.shape[0]
    HW = H * W
    pad = HW                        # lane-padding of the flat scratch; >= 9*W+9
    x_flat = x_nchw.reshape(B, C, HW)

    kernel = functools.partial(_dila_kernel, C=C, H=H, W=W, pad=pad)
    weights = [prep[k] for k in _W_ORDER]

    def bcast_spec(a):
        return pl.BlockSpec(a.shape, lambda b: (0,) * a.ndim)

    out = pl.pallas_call(
        kernel,
        out_shape=jax.ShapeDtypeStruct((B, C, HW), jnp.float32),
        grid=(B,),
        in_specs=([pl.BlockSpec((1, C, HW), lambda b: (b, 0, 0)),
                   bcast_spec(prep["masks"])]
                  + [bcast_spec(a) for a in weights]),
        out_specs=pl.BlockSpec((1, C, HW), lambda b: (b, 0, 0)),
        scratch_shapes=[
            pltpu.VMEM((4 * C, HW + 2 * pad), jnp.float32),  # padded flat image
            pltpu.VMEM((9 * C, HW), jnp.float32),            # im2col patches
        ],
        compiler_params=pltpu.CompilerParams(
            dimension_semantics=("parallel",)),
    )(x_flat, prep["masks"], *weights)
    return out.reshape(B, C, H, W)


# ----------------------------------------------------------------------------
# Parameters (PyTorch-style OIHW weights, (C,) biases) + one-time preparation.
# ----------------------------------------------------------------------------
def init_params(C, key):
    keys = iter(jax.random.split(key, 40))
    p = {}

    def conv_wb(cout, cin_per_group, kh, kw):
        fan_in = cin_per_group * kh * kw
        bound = 1.0 / (fan_in ** 0.5)
        w = jax.random.uniform(next(keys), (cout, cin_per_group, kh, kw),
                               jnp.float32, -bound, bound)
        b = jax.random.uniform(next(keys), (cout,), jnp.float32, -bound, bound)
        return w, b

    p['r3_w'], p['r3_b'] = conv_wb(C, C, 3, 3)
    p['r6_w'], p['r6_b'] = conv_wb(C, C, 3, 3)
    p['r9_w'], p['r9_b'] = conv_wb(C, C, 3, 3)
    p['dw1_w'], p['dw1_b'] = conv_wb(2 * C, 1, 3, 3)
    p['pw1_w'], p['pw1_b'] = conv_wb(C, 2 * C, 1, 1)
    p['dw2_w'], p['dw2_b'] = conv_wb(3 * C, 1, 3, 3)
    p['pw2_w'], p['pw2_b'] = conv_wb(C, 3 * C, 1, 1)
    p['dw3_w'], p['dw3_b'] = conv_wb(4 * C, 1, 3, 3)
    p['pw3_w'], p['pw3_b'] = conv_wb(C, 4 * C, 1, 1)
    p['c11_w'], p['c11_b'] = conv_wb(C, C, 1, 1)

    def bn(c):
        gamma = jax.random.uniform(next(keys), (c,), jnp.float32, 0.5, 1.5)
        beta = jax.random.uniform(next(keys), (c,), jnp.float32, -0.5, 0.5)
        mean = jax.random.uniform(next(keys), (c,), jnp.float32, -0.2, 0.2)
        var = jax.random.uniform(next(keys), (c,), jnp.float32, 0.5, 1.5)
        scale = gamma * jax.lax.rsqrt(var + 1e-5)
        shift = beta - mean * scale
        return scale, shift

    p['bn1_s'], p['bn1_t'] = bn(C)
    p['bn2_s'], p['bn2_t'] = bn(C)
    p['bn3_s'], p['bn3_t'] = bn(C)
    p['bn4_s'], p['bn4_t'] = bn(C)
    return p


def prepare_params(p, C, H, W):
    """One-time weight layout conversion + BN folding (outside jit)."""
    HW = H * W

    def dil_w(w):                 # OIHW (C, C, 3, 3) -> (C, 9C), col = tap*C+i
        return jnp.transpose(w, (2, 3, 1, 0)).reshape(9 * C, C).T

    def col(v):                   # (n,) -> (n, 1)
        return v[:, None]

    def dw_w(w):                  # (Cz, 1, 3, 3) -> (Cz, 9), tap = ky*3+kx
        return w[:, 0].reshape(w.shape[0], 9)

    def pw_fold(w, b, s, t):      # fold BN affine into 1x1 conv
        wm = w[:, :, 0, 0]                       # (Cout, Cz)
        return s[:, None] * wm, col(s * b + t)

    prep = {
        "wr3": dil_w(p['r3_w']), "br3": col(p['r3_b']),
        "wr6": dil_w(p['r6_w']), "br6": col(p['r6_b']),
        "wr9": dil_w(p['r9_w']), "br9": col(p['r9_b']),
        "wdw1": dw_w(p['dw1_w']), "bdw1": col(p['dw1_b']),
        "wdw2": dw_w(p['dw2_w']), "bdw2": col(p['dw2_b']),
        "wdw3": dw_w(p['dw3_w']), "bdw3": col(p['dw3_b']),
    }
    prep["wpw1"], prep["bpw1"] = pw_fold(p['pw1_w'], p['pw1_b'],
                                         p['bn1_s'], p['bn1_t'])
    prep["wpw2"], prep["bpw2"] = pw_fold(p['pw2_w'], p['pw2_b'],
                                         p['bn2_s'], p['bn2_t'])
    prep["wpw3"], prep["bpw3"] = pw_fold(p['pw3_w'], p['pw3_b'],
                                         p['bn3_s'], p['bn3_t'])
    prep["wc11"], prep["bc11"] = pw_fold(p['c11_w'], p['c11_b'],
                                         p['bn4_s'], p['bn4_t'])
    prep["masks"] = _make_col_masks(W, HW)
    return prep


# ----------------------------------------------------------------------------
# Pure-JAX reference (lax.conv_general_dilated, NCHW) for correctness checking.
# ----------------------------------------------------------------------------
def _conv_ref(x, w, b, *, padding=0, dilation=1, groups=1):
    y = jax.lax.conv_general_dilated(
        x, w, window_strides=(1, 1),
        padding=[(padding, padding), (padding, padding)],
        rhs_dilation=(dilation, dilation),
        dimension_numbers=('NCHW', 'OIHW', 'NCHW'),
        feature_group_count=groups)
    return y + b[None, :, None, None]


def dila_forward_ref(x, p):
    def bn_relu(z, s, t):
        return jnp.maximum(z * s[None, :, None, None] + t[None, :, None, None],
                           0.0)

    def ds_block(z, dw_w, dw_b, pw_w, pw_b, s, t):
        z = _conv_ref(z, dw_w, dw_b, padding=1, groups=z.shape[1])
        z = _conv_ref(z, pw_w, pw_b)
        return bn_relu(z, s, t)

    r1 = _conv_ref(x, p['r3_w'], p['r3_b'], padding=3, dilation=3)
    d1 = ds_block(jnp.concatenate([r1, x], 1), p['dw1_w'], p['dw1_b'],
                  p['pw1_w'], p['pw1_b'], p['bn1_s'], p['bn1_t'])
    r2 = _conv_ref(d1, p['r6_w'], p['r6_b'], padding=6, dilation=6)
    d2 = ds_block(jnp.concatenate([r2, r1, x], 1), p['dw2_w'], p['dw2_b'],
                  p['pw2_w'], p['pw2_b'], p['bn2_s'], p['bn2_t'])
    r3 = _conv_ref(d2, p['r9_w'], p['r9_b'], padding=9, dilation=9)
    d3 = ds_block(jnp.concatenate([r3, r2, r1, x], 1), p['dw3_w'], p['dw3_b'],
                  p['pw3_w'], p['pw3_b'], p['bn3_s'], p['bn3_t'])
    out = _conv_ref(d3, p['c11_w'], p['c11_b'])
    return bn_relu(out, p['bn4_s'], p['bn4_t'])


if __name__ == "__main__":
    B, C, H, W = 2, 8, 16, 16          # c2_inchannels = 8
    key = jax.random.PRNGKey(0)
    k_x, k_p = jax.random.split(key)

    # Input mirrors the PyTorch NCHW tensor.
    x = jax.random.normal(k_x, (B, C, H, W), jnp.float32)
    params = init_params(C, k_p)
    prep = prepare_params(params, C, H, W)   # one-time layout / BN folding

    fwd = jax.jit(functools.partial(dila_forward, C=C, H=H, W=W))
    out = jax.block_until_ready(fwd(x, prep))
    assert out.shape == (B, C, H, W)

    ref = jax.block_until_ready(dila_forward_ref(x, params))
    err = float(jnp.max(jnp.abs(out - ref)))
    tol = 1e-3 + 1e-3 * float(jnp.max(jnp.abs(ref)))
    assert err < tol, f"mismatch vs reference: max abs err {err}"

    print("KERNEL_OK")
</pallas_src>

<mosaic_0001>
module attributes {stable_mosaic.version = 11 : i64} {
  func.func @_dila_kernel(%arg0: i32, %arg1: memref<1x8x256xf32, #tpu.memory_space<vmem>>, %arg2: memref<12x256xf32, #tpu.memory_space<vmem>>, %arg3: memref<8x72xf32, #tpu.memory_space<vmem>>, %arg4: memref<8x1xf32, #tpu.memory_space<vmem>>, %arg5: memref<8x72xf32, #tpu.memory_space<vmem>>, %arg6: memref<8x1xf32, #tpu.memory_space<vmem>>, %arg7: memref<8x72xf32, #tpu.memory_space<vmem>>, %arg8: memref<8x1xf32, #tpu.memory_space<vmem>>, %arg9: memref<16x9xf32, #tpu.memory_space<vmem>>, %arg10: memref<16x1xf32, #tpu.memory_space<vmem>>, %arg11: memref<8x16xf32, #tpu.memory_space<vmem>>, %arg12: memref<8x1xf32, #tpu.memory_space<vmem>>, %arg13: memref<24x9xf32, #tpu.memory_space<vmem>>, %arg14: memref<24x1xf32, #tpu.memory_space<vmem>>, %arg15: memref<8x24xf32, #tpu.memory_space<vmem>>, %arg16: memref<8x1xf32, #tpu.memory_space<vmem>>, %arg17: memref<32x9xf32, #tpu.memory_space<vmem>>, %arg18: memref<32x1xf32, #tpu.memory_space<vmem>>, %arg19: memref<8x32xf32, #tpu.memory_space<vmem>>, %arg20: memref<8x1xf32, #tpu.memory_space<vmem>>, %arg21: memref<8x8xf32, #tpu.memory_space<vmem>>, %arg22: memref<8x1xf32, #tpu.memory_space<vmem>>, %arg23: memref<1x8x256xf32, #tpu.memory_space<vmem>>, %arg24: memref<32x768xf32, #tpu.memory_space<vmem>>, %arg25: memref<72x256xf32, #tpu.memory_space<vmem>>) attributes {dimension_semantics = [#tpu.dimension_semantics<parallel>], iteration_bounds = array<i64: 2>, scalar_prefetch = 0 : i64, scratch_operands = 2 : i64, tpu.core_type = #tpu.core_type<tc>, window_params = [{transform_indices = @transform_0, window_bounds = array<i64: 1, 8, 256>}, {pipeline_mode = #tpu.pipeline_mode<synchronous>, transform_indices = @transform_1, window_bounds = array<i64: 12, 256>}, {pipeline_mode = #tpu.pipeline_mode<synchronous>, transform_indices = @transform_2, window_bounds = array<i64: 8, 72>}, {pipeline_mode = #tpu.pipeline_mode<synchronous>, transform_indices = @transform_3, window_bounds = array<i64: 8, 1>}, {pipeline_mode = #tpu.pipeline_mode<synchronous>, transform_indices = @transform_4, window_bounds = array<i64: 8, 72>}, {pipeline_mode = #tpu.pipeline_mode<synchronous>, transform_indices = @transform_5, window_bounds = array<i64: 8, 1>}, {pipeline_mode = #tpu.pipeline_mode<synchronous>, transform_indices = @transform_6, window_bounds = array<i64: 8, 72>}, {pipeline_mode = #tpu.pipeline_mode<synchronous>, transform_indices = @transform_7, window_bounds = array<i64: 8, 1>}, {pipeline_mode = #tpu.pipeline_mode<synchronous>, transform_indices = @transform_8, window_bounds = array<i64: 16, 9>}, {pipeline_mode = #tpu.pipeline_mode<synchronous>, transform_indices = @transform_9, window_bounds = array<i64: 16, 1>}, {pipeline_mode = #tpu.pipeline_mode<synchronous>, transform_indices = @transform_10, window_bounds = array<i64: 8, 16>}, {pipeline_mode = #tpu.pipeline_mode<synchronous>, transform_indices = @transform_11, window_bounds = array<i64: 8, 1>}, {pipeline_mode = #tpu.pipeline_mode<synchronous>, transform_indices = @transform_12, window_bounds = array<i64: 24, 9>}, {pipeline_mode = #tpu.pipeline_mode<synchronous>, transform_indices = @transform_13, window_bounds = array<i64: 24, 1>}, {pipeline_mode = #tpu.pipeline_mode<synchronous>, transform_indices = @transform_14, window_bounds = array<i64: 8, 24>}, {pipeline_mode = #tpu.pipeline_mode<synchronous>, transform_indices = @transform_15, window_bounds = array<i64: 8, 1>}, {pipeline_mode = #tpu.pipeline_mode<synchronous>, transform_indices = @transform_16, window_bounds = array<i64: 32, 9>}, {pipeline_mode = #tpu.pipeline_mode<synchronous>, transform_indices = @transform_17, window_bounds = array<i64: 32, 1>}, {pipeline_mode = #tpu.pipeline_mode<synchronous>, transform_indices = @transform_18, window_bounds = array<i64: 8, 32>}, {pipeline_mode = #tpu.pipeline_mode<synchronous>, transform_indices = @transform_19, window_bounds = array<i64: 8, 1>}, {pipeline_mode = #tpu.pipeline_mode<synchronous>, transform_indices = @transform_20, window_bounds = array<i64: 8, 8>}, {pipeline_mode = #tpu.pipeline_mode<synchronous>, transform_indices = @transform_21, window_bounds = array<i64: 8, 1>}, {transform_indices = @transform_22, window_bounds = array<i64: 1, 8, 256>}]} {
    %cst = arith.constant 0.000000e+00 : f32
    %0 = vector.broadcast %cst : f32 to vector<32x768xf32>
    %c0 = arith.constant 0 : index
    %c0_0 = arith.constant 0 : index
    %1 = vector.load %arg24[%c0, %c0_0] : memref<32x768xf32, #tpu.memory_space<vmem>>, vector<32x768xf32>
    tpu.vector_store %arg24[%c0, %c0_0], %0 {strides = array<i32>} : memref<32x768xf32, #tpu.memory_space<vmem>>, vector<32x768xf32>,
    %c0_1 = arith.constant 0 : index
    %c0_2 = arith.constant 0 : index
    %c0_3 = arith.constant 0 : index
    %2 = vector.load %arg1[%c0_1, %c0_2, %c0_3] : memref<1x8x256xf32, #tpu.memory_space<vmem>>, vector<1x8x256xf32>
    %3 = vector.shape_cast %2 : vector<1x8x256xf32> to vector<8x256xf32>
    %c0_4 = arith.constant 0 : index
    %c256 = arith.constant 256 : index
    %4 = vector.load %arg24[%c0_4, %c256] : memref<32x768xf32, #tpu.memory_space<vmem>>, vector<8x256xf32>
    tpu.vector_store %arg24[%c0_4, %c256], %3 {strides = array<i32>} : memref<32x768xf32, #tpu.memory_space<vmem>>, vector<8x256xf32>,
    %c0_5 = arith.constant 0 : index
    %c205 = arith.constant 205 : index
    %5 = vector.load %arg24[%c0_5, %c205] : memref<32x768xf32, #tpu.memory_space<vmem>>, vector<8x256xf32>
    %c3 = arith.constant 3 : index
    %c0_6 = arith.constant 0 : index
    %6 = vector.load %arg2[%c3, %c0_6] : memref<12x256xf32, #tpu.memory_space<vmem>>, vector<1x256xf32>
    %7 = vector.broadcast %6 : vector<1x256xf32> to vector<8x256xf32>
    %8 = arith.mulf %5, %7 : vector<8x256xf32>
    %c0_7 = arith.constant 0 : index
    %c0_8 = arith.constant 0 : index
    %9 = vector.load %arg25[%c0_7, %c0_8] : memref<72x256xf32, #tpu.memory_space<vmem>>, vector<8x256xf32>
    tpu.vector_store %arg25[%c0_7, %c0_8], %8 {strides = array<i32>} : memref<72x256xf32, #tpu.memory_space<vmem>>, vector<8x256xf32>,
    %c0_9 = arith.constant 0 : index
    %c208 = arith.constant 208 : index
    %10 = vector.load %arg24[%c0_9, %c208] : memref<32x768xf32, #tpu.memory_space<vmem>>, vector<8x256xf32>
    %c8 = arith.constant 8 : index
    %c0_10 = arith.constant 0 : index
    %11 = vector.load %arg25[%c8, %c0_10] : memref<72x256xf32, #tpu.memory_space<vmem>>, vector<8x256xf32>
    tpu.vector_store %arg25[%c8, %c0_10], %10 {strides = array<i32>} : memref<72x256xf32, #tpu.memory_space<vmem>>, vector<8x256xf32>,
    %c0_11 = arith.constant 0 : index
    %c211 = arith.constant 211 : index
    %12 = vector.load %arg24[%c0_11, %c211] : memref<32x768xf32, #tpu.memory_space<vmem>>, vector<8x256xf32>
    %c5 = arith.constant 5 : index
    %c0_12 = arith.constant 0 : index
    %13 = vector.load %arg2[%c5, %c0_12] : memref<12x256xf32, #tpu.memory_space<vmem>>, vector<1x256xf32>
    %14 = vector.broadcast %13 : vector<1x256xf32> to vector<8x256xf32>
    %15 = arith.mulf %12, %14 : vector<8x256xf32>
    %c16 = arith.constant 16 : index
    %c0_13 = arith.constant 0 : index
    %16 = vector.load %arg25[%c16, %c0_13] : memref<72x256xf32, #tpu.memory_space<vmem>>, vector<8x256xf32>
    tpu.vector_store %arg25[%c16, %c0_13], %15 {strides = array<i32>} : memref<72x256xf32, #tpu.memory_space<vmem>>, vector<8x256xf32>,
    %c0_14 = arith.constant 0 : index
    %c253 = arith.constant 253 : index
    %17 = vector.load %arg24[%c0_14, %c253] : memref<32x768xf32, #tpu.memory_space<vmem>>, vector<8x256xf32>
    %c3_15 = arith.constant 3 : index
    %c0_16 = arith.constant 0 : index
    %18 = vector.load %arg2[%c3_15, %c0_16] : memref<12x256xf32, #tpu.memory_space<vmem>>, vector<1x256xf32>
    %19 = vector.broadcast %18 : vector<1x256xf32> to vector<8x256xf32>
    %20 = arith.mulf %17, %19 : vector<8x256xf32>
    %c24 = arith.constant 24 : index
    %c0_17 = arith.constant 0 : index
    %21 = vector.load %arg25[%c24, %c0_17] : memref<72x256xf32, #tpu.memory_space<vmem>>, vector<8x256xf32>
    tpu.vector_store %arg25[%c24, %c0_17], %20 {strides = array<i32>} : memref<72x256xf32, #tpu.memory_space<vmem>>, vector<8x256xf32>,
    %c0_18 = arith.constant 0 : index
    %c256_19 = arith.constant 256 : index
    %22 = vector.load %arg24[%c0_18, %c256_19] : memref<32x768xf32, #tpu.memory_space<vmem>>, vector<8x256xf32>
    %c32 = arith.constant 32 : index
    %c0_20 = arith.constant 0 : index
    %23 = vector.load %arg25[%c32, %c0_20] : memref<72x256xf32, #tpu.memory_space<vmem>>, vector<8x256xf32>
    tpu.vector_store %arg25[%c32, %c0_20], %22 {strides = array<i32>} : memref<72x256xf32, #tpu.memory_space<vmem>>, vector<8x256xf32>,
    %c0_21 = arith.constant 0 : index
    %c259 = arith.constant 259 : index
    %24 = vector.load %arg24[%c0_21, %c259] : memref<32x768xf32, #tpu.memory_space<vmem>>, vector<8x256xf32>
    %c5_22 = arith.constant 5 : index
    %c0_23 = arith.constant 0 : index
    %25 = vector.load %arg2[%c5_22, %c0_23] : memref<12x256xf32, #tpu.memory_space<vmem>>, vector<1x256xf32>
    %26 = vector.broadcast %25 : vector<1x256xf32> to vector<8x256xf32>
    %27 = arith.mulf %24, %26 : vector<8x256xf32>
    %c40 = arith.constant 40 : index
    %c0_24 = arith.constant 0 : index
    %28 = vector.load %arg25[%c40, %c0_24] : memref<72x256xf32, #tpu.memory_space<vmem>>, vector<8x256xf32>
    tpu.vector_store %arg25[%c40, %c0_24], %27 {strides = array<i32>} : memref<72x256xf32, #tpu.memory_space<vmem>>, vector<8x256xf32>,
    %c0_25 = arith.constant 0 : index
    %c301 = arith.constant 301 : index
    %29 = vector.load %arg24[%c0_25, %c301] : memref<32x768xf32, #tpu.memory_space<vmem>>, vector<8x256xf32>
    %c3_26 = arith.constant 3 : index
    %c0_27 = arith.constant 0 : index
    %30 = vector.load %arg2[%c3_26, %c0_27] : memref<12x256xf32, #tpu.memory_space<vmem>>, vector<1x256xf32>
    %31 = vector.broadcast %30 : vector<1x256xf32> to vector<8x256xf32>
    %32 = arith.mulf %29, %31 : vector<8x256xf32>
    %c48 = arith.constant 48 : index
    %c0_28 = arith.constant 0 : index
    %33 = vector.load %arg25[%c48, %c0_28] : memref<72x256xf32, #tpu.memory_space<vmem>>, vector<8x256xf32>
    tpu.vector_store %arg25[%c48, %c0_28], %32 {strides = array<i32>} : memref<72x256xf32, #tpu.memory_space<vmem>>, vector<8x256xf32>,
    %c0_29 = arith.constant 0 : index
    %c304 = arith.constant 304 : index
    %34 = vector.load %arg24[%c0_29, %c304] : memref<32x768xf32, #tpu.memory_space<vmem>>, vector<8x256xf32>
    %c56 = arith.constant 56 : index
    %c0_30 = arith.constant 0 : index
    %35 = vector.load %arg25[%c56, %c0_30] : memref<72x256xf32, #tpu.memory_space<vmem>>, vector<8x256xf32>
    tpu.vector_store %arg25[%c56, %c0_30], %34 {strides = array<i32>} : memref<72x256xf32, #tpu.memory_space<vmem>>, vector<8x256xf32>,
    %c0_31 = arith.constant 0 : index
    %c307 = arith.constant 307 : index
    %36 = vector.load %arg24[%c0_31, %c307] : memref<32x768xf32, #tpu.memory_space<vmem>>, vector<8x256xf32>
    %c5_32 = arith.constant 5 : index
    %c0_33 = arith.constant 0 : index
    %37 = vector.load %arg2[%c5_32, %c0_33] : memref<12x256xf32, #tpu.memory_space<vmem>>, vector<1x256xf32>
    %38 = vector.broadcast %37 : vector<1x256xf32> to vector<8x256xf32>
    %39 = arith.mulf %36, %38 : vector<8x256xf32>
    %c64 = arith.constant 64 : index
    %c0_34 = arith.constant 0 : index
    %40 = vector.load %arg25[%c64, %c0_34] : memref<72x256xf32, #tpu.memory_space<vmem>>, vector<8x256xf32>
    tpu.vector_store %arg25[%c64, %c0_34], %39 {strides = array<i32>} : memref<72x256xf32, #tpu.memory_space<vmem>>, vector<8x256xf32>,
    %c0_35 = arith.constant 0 : index
    %c0_36 = arith.constant 0 : index
    %41 = vector.load %arg3[%c0_35, %c0_36] : memref<8x72xf32, #tpu.memory_space<vmem>>, vector<8x72xf32>
    %c0_37 = arith.constant 0 : index
    %c0_38 = arith.constant 0 : index
    %42 = vector.load %arg25[%c0_37, %c0_38] : memref<72x256xf32, #tpu.memory_space<vmem>>, vector<72x256xf32>
    %cst_39 = arith.constant dense<0.000000e+00> : vector<8x256xf32>
    %43 = tpu.matmul %41, %42, %cst_39 {dimension_numbers = #tpu.dot_dimension_numbers<[1], [0], [0], [1], [0, 0, 1, 1], [], []>} : vector<8x72xf32>, vector<72x256xf32>, vector<8x256xf32> -> vector<8x256xf32>
    %c0_40 = arith.constant 0 : index
    %c0_41 = arith.constant 0 : index
    %44 = vector.load %arg4[%c0_40, %c0_41] : memref<8x1xf32, #tpu.memory_space<vmem>>, vector<8x1xf32>
    %45 = vector.broadcast %44 : vector<8x1xf32> to vector<8x256xf32>
    %46 = arith.addf %43, %45 : vector<8x256xf32>
    %c0_42 = arith.constant 0 : index
    %c256_43 = arith.constant 256 : index
    %47 = vector.load %arg24[%c0_42, %c256_43] : memref<32x768xf32, #tpu.memory_space<vmem>>, vector<8x256xf32>
    tpu.vector_store %arg24[%c0_42, %c256_43], %46 {strides = array<i32>} : memref<32x768xf32, #tpu.memory_space<vmem>>, vector<8x256xf32>,
    %c8_44 = arith.constant 8 : index
    %c256_45 = arith.constant 256 : index
    %48 = vector.load %arg24[%c8_44, %c256_45] : memref<32x768xf32, #tpu.memory_space<vmem>>, vector<8x256xf32>
    tpu.vector_store %arg24[%c8_44, %c256_45], %3 {strides = array<i32>} : memref<32x768xf32, #tpu.memory_space<vmem>>, vector<8x256xf32>,
    %cst_46 = arith.constant 0.000000e+00 : f32
    %49 = vector.broadcast %cst_46 : f32 to vector<16x256xf32>
    %c0_47 = arith.constant 0 : index
    %c0_48 = arith.constant 0 : index
    %50 = vector.load %arg9[%c0_47, %c0_48] : memref<16x9xf32, #tpu.memory_space<vmem>>, vector<16x1xf32>
    %c0_49 = arith.constant 0 : index
    %c239 = arith.constant 239 : index
    %51 = vector.load %arg24[%c0_49, %c239] : memref<32x768xf32, #tpu.memory_space<vmem>>, vector<16x256xf32>
    %c0_50 = arith.constant 0 : index
    %c0_51 = arith.constant 0 : index
    %52 = vector.load %arg2[%c0_50, %c0_51] : memref<12x256xf32, #tpu.memory_space<vmem>>, vector<1x256xf32>
    %53 = vector.broadcast %52 : vector<1x256xf32> to vector<16x256xf32>
    %54 = arith.mulf %51, %53 : vector<16x256xf32>
    %55 = vector.broadcast %50 : vector<16x1xf32> to vector<16x256xf32>
    %56 = arith.mulf %55, %54 : vector<16x256xf32>
    %57 = arith.addf %49, %56 : vector<16x256xf32>
    %c0_52 = arith.constant 0 : index
    %c1 = arith.constant 1 : index
    %58 = vector.load %arg9[%c0_52, %c1] : memref<16x9xf32, #tpu.memory_space<vmem>>, vector<16x1xf32>
    %c0_53 = arith.constant 0 : index
    %c240 = arith.constant 240 : index
    %59 = vector.load %arg24[%c0_53, %c240] : memref<32x768xf32, #tpu.memory_space<vmem>>, vector<16x256xf32>
    %60 = vector.broadcast %58 : vector<16x1xf32> to vector<16x256xf32>
    %61 = arith.mulf %60, %59 : vector<16x256xf32>
    %62 = arith.addf %57, %61 : vector<16x256xf32>
    %c0_54 = arith.constant 0 : index
    %c2 = arith.constant 2 : index
    %63 = vector.load %arg9[%c0_54, %c2] : memref<16x9xf32, #tpu.memory_space<vmem>>, vector<16x1xf32>
    %c0_55 = arith.constant 0 : index
    %c241 = arith.constant 241 : index
    %64 = vector.load %arg24[%c0_55, %c241] : memref<32x768xf32, #tpu.memory_space<vmem>>, vector<16x256xf32>
    %c2_56 = arith.constant 2 : index
    %c0_57 = arith.constant 0 : index
    %65 = vector.load %arg2[%c2_56, %c0_57] : memref<12x256xf32, #tpu.memory_space<vmem>>, vector<1x256xf32>
    %66 = vector.broadcast %65 : vector<1x256xf32> to vector<16x256xf32>
    %67 = arith.mulf %64, %66 : vector<16x256xf32>
    %68 = vector.broadcast %63 : vector<16x1xf32> to vector<16x256xf32>
    %69 = arith.mulf %68, %67 : vector<16x256xf32>
    %70 = arith.addf %62, %69 : vector<16x256xf32>
    %c0_58 = arith.constant 0 : index
    %c3_59 = arith.constant 3 : index
    %71 = vector.load %arg9[%c0_58, %c3_59] : memref<16x9xf32, #tpu.memory_space<vmem>>, vector<16x1xf32>
    %c0_60 = arith.constant 0 : index
    %c255 = arith.constant 255 : index
    %72 = vector.load %arg24[%c0_60, %c255] : memref<32x768xf32, #tpu.memory_space<vmem>>, vector<16x256xf32>
    %c0_61 = arith.constant 0 : index
    %c0_62 = arith.constant 0 : index
    %73 = vector.load %arg2[%c0_61, %c0_62] : memref<12x256xf32, #tpu.memory_space<vmem>>, vector<1x256xf32>
    %74 = vector.broadcast %73 : vector<1x256xf32> to vector<16x256xf32>
    %75 = arith.mulf %72, %74 : vector<16x256xf32>
    %76 = vector.broadcast %71 : vector<16x1xf32> to vector<16x256xf32>
    %77 = arith.mulf %76, %75 : vector<16x256xf32>
    %78 = arith.addf %70, %77 : vector<16x256xf32>
    %c0_63 = arith.constant 0 : index
    %c4 = arith.constant 4 : index
    %79 = vector.load %arg9[%c0_63, %c4] : memref<16x9xf32, #tpu.memory_space<vmem>>, vector<16x1xf32>
    %c0_64 = arith.constant 0 : index
    %c256_65 = arith.constant 256 : index
    %80 = vector.load %arg24[%c0_64, %c256_65] : memref<32x768xf32, #tpu.memory_space<vmem>>, vector<16x256xf32>
    %81 = vector.broadcast %79 : vector<16x1xf32> to vector<16x256xf32>
    %82 = arith.mulf %81, %80 : vector<16x256xf32>
    %83 = arith.addf %78, %82 : vector<16x256xf32>
    %c0_66 = arith.constant 0 : index
    %c5_67 = arith.constant 5 : index
    %84 = vector.load %arg9[%c0_66, %c5_67] : memref<16x9xf32, #tpu.memory_space<vmem>>, vector<16x1xf32>
    %c0_68 = arith.constant 0 : index
    %c257 = arith.constant 257 : index
    %85 = vector.load %arg24[%c0_68, %c257] : memref<32x768xf32, #tpu.memory_space<vmem>>, vector<16x256xf32>
    %c2_69 = arith.constant 2 : index
    %c0_70 = arith.constant 0 : index
    %86 = vector.load %arg2[%c2_69, %c0_70] : memref<12x256xf32, #tpu.memory_space<vmem>>, vector<1x256xf32>
    %87 = vector.broadcast %86 : vector<1x256xf32> to vector<16x256xf32>
    %88 = arith.mulf %85, %87 : vector<16x256xf32>
    %89 = vector.broadcast %84 : vector<16x1xf32> to vector<16x256xf32>
    %90 = arith.mulf %89, %88 : vector<16x256xf32>
    %91 = arith.addf %83, %90 : vector<16x256xf32>
    %c0_71 = arith.constant 0 : index
    %c6 = arith.constant 6 : index
    %92 = vector.load %arg9[%c0_71, %c6] : memref<16x9xf32, #tpu.memory_space<vmem>>, vector<16x1xf32>
    %c0_72 = arith.constant 0 : index
    %c271 = arith.constant 271 : index
    %93 = vector.load %arg24[%c0_72, %c271] : memref<32x768xf32, #tpu.memory_space<vmem>>, vector<16x256xf32>
    %c0_73 = arith.constant 0 : index
    %c0_74 = arith.constant 0 : index
    %94 = vector.load %arg2[%c0_73, %c0_74] : memref<12x256xf32, #tpu.memory_space<vmem>>, vector<1x256xf32>
    %95 = vector.broadcast %94 : vector<1x256xf32> to vector<16x256xf32>
    %96 = arith.mulf %93, %95 : vector<16x256xf32>
    %97 = vector.broadcast %92 : vector<16x1xf32> to vector<16x256xf32>
    %98 = arith.mulf %97, %96 : vector<16x256xf32>
    %99 = arith.addf %91, %98 : vector<16x256xf32>
    %c0_75 = arith.constant 0 : index
    %c7 = arith.constant 7 : index
    %100 = vector.load %arg9[%c0_75, %c7] : memref<16x9xf32, #tpu.memory_space<vmem>>, vector<16x1xf32>
    %c0_76 = arith.constant 0 : index
    %c272 = arith.constant 272 : index
    %101 = vector.load %arg24[%c0_76, %c272] : memref<32x768xf32, #tpu.memory_space<vmem>>, vector<16x256xf32>
    %102 = vector.broadcast %100 : vector<16x1xf32> to vector<16x256xf32>
    %103 = arith.mulf %102, %101 : vector<16x256xf32>
    %104 = arith.addf %99, %103 : vector<16x256xf32>
    %c0_77 = arith.constant 0 : index
    %c8_78 = arith.constant 8 : index
    %105 = vector.load %arg9[%c0_77, %c8_78] : memref<16x9xf32, #tpu.memory_space<vmem>>, vector<16x1xf32>
    %c0_79 = arith.constant 0 : index
    %c273 = arith.constant 273 : index
    %106 = vector.load %arg24[%c0_79, %c273] : memref<32x768xf32, #tpu.memory_space<vmem>>, vector<16x256xf32>
    %c2_80 = arith.constant 2 : index
    %c0_81 = arith.constant 0 : index
    %107 = vector.load %arg2[%c2_80, %c0_81] : memref<12x256xf32, #tpu.memory_space<vmem>>, vector<1x256xf32>
    %108 = vector.broadcast %107 : vector<1x256xf32> to vector<16x256xf32>
    %109 = arith.mulf %106, %108 : vector<16x256xf32>
    %110 = vector.broadcast %105 : vector<16x1xf32> to vector<16x256xf32>
    %111 = arith.mulf %110, %109 : vector<16x256xf32>
    %112 = arith.addf %104, %111 : vector<16x256xf32>
    %c0_82 = arith.constant 0 : index
    %c0_83 = arith.constant 0 : index
    %113 = vector.load %arg10[%c0_82, %c0_83] : memref<16x1xf32, #tpu.memory_space<vmem>>, vector<16x1xf32>
    %114 = vector.broadcast %113 : vector<16x1xf32> to vector<16x256xf32>
    %115 = arith.addf %112, %114 : vector<16x256xf32>
    %c0_84 = arith.constant 0 : index
    %c0_85 = arith.constant 0 : index
    %116 = vector.load %arg11[%c0_84, %c0_85] : memref<8x16xf32, #tpu.memory_space<vmem>>, vector<8x16xf32>
    %cst_86 = arith.constant dense<0.000000e+00> : vector<8x256xf32>
    %117 = tpu.matmul %116, %115, %cst_86 {dimension_numbers = #tpu.dot_dimension_numbers<[1], [0], [0], [1], [0, 0, 1, 1], [], []>} : vector<8x16xf32>, vector<16x256xf32>, vector<8x256xf32> -> vector<8x256xf32>
    %c0_87 = arith.constant 0 : index
    %c0_88 = arith.constant 0 : index
    %118 = vector.load %arg12[%c0_87, %c0_88] : memref<8x1xf32, #tpu.memory_space<vmem>>, vector<8x1xf32>
    %119 = vector.broadcast %118 : vector<8x1xf32> to vector<8x256xf32>
    %120 = arith.addf %117, %119 : vector<8x256xf32>
    %cst_89 = arith.constant 0.000000e+00 : f32
    %121 = vector.broadcast %cst_89 : f32 to vector<8x256xf32>
    %122 = arith.maximumf %120, %121 : vector<8x256xf32>
    %c0_90 = arith.constant 0 : index
    %c256_91 = arith.constant 256 : index
    %123 = vector.load %arg24[%c0_90, %c256_91] : memref<32x768xf32, #tpu.memory_space<vmem>>, vector<8x256xf32>
    tpu.vector_store %arg24[%c0_90, %c256_91], %122 {strides = array<i32>} : memref<32x768xf32, #tpu.memory_space<vmem>>, vector<8x256xf32>,
    %c0_92 = arith.constant 0 : index
    %c154 = arith.constant 154 : index
    %124 = vector.load %arg24[%c0_92, %c154] : memref<32x768xf32, #tpu.memory_space<vmem>>, vector<8x256xf32>
    %c6_93 = arith.constant 6 : index
    %c0_94 = arith.constant 0 : index
    %125 = vector.load %arg2[%c6_93, %c0_94] : memref<12x256xf32, #tpu.memory_space<vmem>>, vector<1x256xf32>
    %126 = vector.broadcast %125 : vector<1x256xf32> to vector<8x256xf32>
    %127 = arith.mulf %124, %126 : vector<8x256xf32>
    %c0_95 = arith.constant 0 : index
    %c0_96 = arith.constant 0 : index
    %128 = vector.load %arg25[%c0_95, %c0_96] : memref<72x256xf32, #tpu.memory_space<vmem>>, vector<8x256xf32>
    tpu.vector_store %arg25[%c0_95, %c0_96], %127 {strides = array<i32>} : memref<72x256xf32, #tpu.memory_space<vmem>>, vector<8x256xf32>,
    %c0_97 = arith.constant 0 : index
    %c160 = arith.constant 160 : index
    %129 = vector.load %arg24[%c0_97, %c160] : memref<32x768xf32, #tpu.memory_space<vmem>>, vector<8x256xf32>
    %c8_98 = arith.constant 8 : index
    %c0_99 = arith.constant 0 : index
    %130 = vector.load %arg25[%c8_98, %c0_99] : memref<72x256xf32, #tpu.memory_space<vmem>>, vector<8x256xf32>
    tpu.vector_store %arg25[%c8_98, %c0_99], %129 {strides = array<i32>} : memref<72x256xf32, #tpu.memory_space<vmem>>, vector<8x256xf32>,
    %c0_100 = arith.constant 0 : index
    %c166 = arith.constant 166 : index
    %131 = vector.load %arg24[%c0_100, %c166] : memref<32x768xf32, #tpu.memory_space<vmem>>, vector<8x256xf32>
    %c8_101 = arith.constant 8 : index
    %c0_102 = arith.constant 0 : index
    %132 = vector.load %arg2[%c8_101, %c0_102] : memref<12x256xf32, #tpu.memory_space<vmem>>, vector<1x256xf32>
    %133 = vector.broadcast %132 : vector<1x256xf32> to vector<8x256xf32>
    %134 = arith.mulf %131, %133 : vector<8x256xf32>
    %c16_103 = arith.constant 16 : index
    %c0_104 = arith.constant 0 : index
    %135 = vector.load %arg25[%c16_103, %c0_104] : memref<72x256xf32, #tpu.memory_space<vmem>>, vector<8x256xf32>
    tpu.vector_store %arg25[%c16_103, %c0_104], %134 {strides = array<i32>} : memref<72x256xf32, #tpu.memory_space<vmem>>, vector<8x256xf32>,
    %c0_105 = arith.constant 0 : index
    %c250 = arith.constant 250 : index
    %136 = vector.load %arg24[%c0_105, %c250] : memref<32x768xf32, #tpu.memory_space<vmem>>, vector<8x256xf32>
    %c6_106 = arith.constant 6 : index
    %c0_107 = arith.constant 0 : index
    %137 = vector.load %arg2[%c6_106, %c0_107] : memref<12x256xf32, #tpu.memory_space<vmem>>, vector<1x256xf32>
    %138 = vector.broadcast %137 : vector<1x256xf32> to vector<8x256xf32>
    %139 = arith.mulf %136, %138 : vector<8x256xf32>
    %c24_108 = arith.constant 24 : index
    %c0_109 = arith.constant 0 : index
    %140 = vector.load %arg25[%c24_108, %c0_109] : memref<72x256xf32, #tpu.memory_space<vmem>>, vector<8x256xf32>
    tpu.vector_store %arg25[%c24_108, %c0_109], %139 {strides = array<i32>} : memref<72x256xf32, #tpu.memory_space<vmem>>, vector<8x256xf32>,
    %c0_110 = arith.constant 0 : index
    %c256_111 = arith.constant 256 : index
    %141 = vector.load %arg24[%c0_110, %c256_111] : memref<32x768xf32, #tpu.memory_space<vmem>>, vector<8x256xf32>
    %c32_112 = arith.constant 32 : index
    %c0_113 = arith.constant 0 : index
    %142 = vector.load %arg25[%c32_112, %c0_113] : memref<72x256xf32, #tpu.memory_space<vmem>>, vector<8x256xf32>
    tpu.vector_store %arg25[%c32_112, %c0_113], %141 {strides = array<i32>} : memref<72x256xf32, #tpu.memory_space<vmem>>, vector<8x256xf32>,
    %c0_114 = arith.constant 0 : index
    %c262 = arith.constant 262 : index
    %143 = vector.load %arg24[%c0_114, %c262] : memref<32x768xf32, #tpu.memory_space<vmem>>, vector<8x256xf32>
    %c8_115 = arith.constant 8 : index
    %c0_116 = arith.constant 0 : index
    %144 = vector.load %arg2[%c8_115, %c0_116] : memref<12x256xf32, #tpu.memory_space<vmem>>, vector<1x256xf32>
    %145 = vector.broadcast %144 : vector<1x256xf32> to vector<8x256xf32>
    %146 = arith.mulf %143, %145 : vector<8x256xf32>
    %c40_117 = arith.constant 40 : index
    %c0_118 = arith.constant 0 : index
    %147 = vector.load %arg25[%c40_117, %c0_118] : memref<72x256xf32, #tpu.memory_space<vmem>>, vector<8x256xf32>
    tpu.vector_store %arg25[%c40_117, %c0_118], %146 {strides = array<i32>} : memref<72x256xf32, #tpu.memory_space<vmem>>, vector<8x256xf32>,
    %c0_119 = arith.constant 0 : index
    %c346 = arith.constant 346 : index
    %148 = vector.load %arg24[%c0_119, %c346] : memref<32x768xf32, #tpu.memory_space<vmem>>, vector<8x256xf32>
    %c6_120 = arith.constant 6 : index
    %c0_121 = arith.constant 0 : index
    %149 = vector.load %arg2[%c6_120, %c0_121] : memref<12x256xf32, #tpu.memory_space<vmem>>, vector<1x256xf32>
    %150 = vector.broadcast %149 : vector<1x256xf32> to vector<8x256xf32>
    %151 = arith.mulf %148, %150 : vector<8x256xf32>
    %c48_122 = arith.constant 48 : index
    %c0_123 = arith.constant 0 : index
    %152 = vector.load %arg25[%c48_122, %c0_123] : memref<72x256xf32, #tpu.memory_space<vmem>>, vector<8x256xf32>
    tpu.vector_store %arg25[%c48_122, %c0_123], %151 {strides = array<i32>} : memref<72x256xf32, #tpu.memory_space<vmem>>, vector<8x256xf32>,
    %c0_124 = arith.constant 0 : index
    %c352 = arith.constant 352 : index
    %153 = vector.load %arg24[%c0_124, %c352] : memref<32x768xf32, #tpu.memory_space<vmem>>, vector<8x256xf32>
    %c56_125 = arith.constant 56 : index
    %c0_126 = arith.constant 0 : index
    %154 = vector.load %arg25[%c56_125, %c0_126] : memref<72x256xf32, #tpu.memory_space<vmem>>, vector<8x256xf32>
    tpu.vector_store %arg25[%c56_125, %c0_126], %153 {strides = array<i32>} : memref<72x256xf32, #tpu.memory_space<vmem>>, vector<8x256xf32>,
    %c0_127 = arith.constant 0 : index
    %c358 = arith.constant 358 : index
    %155 = vector.load %arg24[%c0_127, %c358] : memref<32x768xf32, #tpu.memory_space<vmem>>, vector<8x256xf32>
    %c8_128 = arith.constant 8 : index
    %c0_129 = arith.constant 0 : index
    %156 = vector.load %arg2[%c8_128, %c0_129] : memref<12x256xf32, #tpu.memory_space<vmem>>, vector<1x256xf32>
    %157 = vector.broadcast %156 : vector<1x256xf32> to vector<8x256xf32>
    %158 = arith.mulf %155, %157 : vector<8x256xf32>
    %c64_130 = arith.constant 64 : index
    %c0_131 = arith.constant 0 : index
    %159 = vector.load %arg25[%c64_130, %c0_131] : memref<72x256xf32, #tpu.memory_space<vmem>>, vector<8x256xf32>
    tpu.vector_store %arg25[%c64_130, %c0_131], %158 {strides = array<i32>} : memref<72x256xf32, #tpu.memory_space<vmem>>, vector<8x256xf32>,
    %c0_132 = arith.constant 0 : index
    %c0_133 = arith.constant 0 : index
    %160 = vector.load %arg5[%c0_132, %c0_133] : memref<8x72xf32, #tpu.memory_space<vmem>>, vector<8x72xf32>
    %c0_134 = arith.constant 0 : index
    %c0_135 = arith.constant 0 : index
    %161 = vector.load %arg25[%c0_134, %c0_135] : memref<72x256xf32, #tpu.memory_space<vmem>>, vector<72x256xf32>
    %cst_136 = arith.constant dense<0.000000e+00> : vector<8x256xf32>
    %162 = tpu.matmul %160, %161, %cst_136 {dimension_numbers = #tpu.dot_dimension_numbers<[1], [0], [0], [1], [0, 0, 1, 1], [], []>} : vector<8x72xf32>, vector<72x256xf32>, vector<8x256xf32> -> vector<8x256xf32>
    %c0_137 = arith.constant 0 : index
    %c0_138 = arith.constant 0 : index
    %163 = vector.load %arg6[%c0_137, %c0_138] : memref<8x1xf32, #tpu.memory_space<vmem>>, vector<8x1xf32>
    %164 = vector.broadcast %163 : vector<8x1xf32> to vector<8x256xf32>
    %165 = arith.addf %162, %164 : vector<8x256xf32>
    %c0_139 = arith.constant 0 : index
    %c256_140 = arith.constant 256 : index
    %166 = vector.load %arg24[%c0_139, %c256_140] : memref<32x768xf32, #tpu.memory_space<vmem>>, vector<8x256xf32>
    tpu.vector_store %arg24[%c0_139, %c256_140], %165 {strides = array<i32>} : memref<32x768xf32, #tpu.memory_space<vmem>>, vector<8x256xf32>,
    %c8_141 = arith.constant 8 : index
    %c256_142 = arith.constant 256 : index
    %167 = vector.load %arg24[%c8_141, %c256_142] : memref<32x768xf32, #tpu.memory_space<vmem>>, vector<8x256xf32>
    tpu.vector_store %arg24[%c8_141, %c256_142], %46 {strides = array<i32>} : memref<32x768xf32, #tpu.memory_space<vmem>>, vector<8x256xf32>,
    %c16_143 = arith.constant 16 : index
    %c256_144 = arith.constant 256 : index
    %168 = vector.load %arg24[%c16_143, %c256_144] : memref<32x768xf32, #tpu.memory_space<vmem>>, vector<8x256xf32>
    tpu.vector_store %arg24[%c16_143, %c256_144], %3 {strides = array<i32>} : memref<32x768xf32, #tpu.memory_space<vmem>>, vector<8x256xf32>,
    %cst_145 = arith.constant 0.000000e+00 : f32
    %169 = vector.broadcast %cst_145 : f32 to vector<24x256xf32>
    %c0_146 = arith.constant 0 : index
    %c0_147 = arith.constant 0 : index
    %170 = vector.load %arg13[%c0_146, %c0_147] : memref<24x9xf32, #tpu.memory_space<vmem>>, vector<24x1xf32>
    %c0_148 = arith.constant 0 : index
    %c239_149 = arith.constant 239 : index
    %171 = vector.load %arg24[%c0_148, %c239_149] : memref<32x768xf32, #tpu.memory_space<vmem>>, vector<24x256xf32>
    %c0_150 = arith.constant 0 : index
    %c0_151 = arith.constant 0 : index
    %172 = vector.load %arg2[%c0_150, %c0_151] : memref<12x256xf32, #tpu.memory_space<vmem>>, vector<1x256xf32>
    %173 = vector.broadcast %172 : vector<1x256xf32> to vector<24x256xf32>
    %174 = arith.mulf %171, %173 : vector<24x256xf32>
    %175 = vector.broadcast %170 : vector<24x1xf32> to vector<24x256xf32>
    %176 = arith.mulf %175, %174 : vector<24x256xf32>
    %177 = arith.addf %169, %176 : vector<24x256xf32>
    %c0_152 = arith.constant 0 : index
    %c1_153 = arith.constant 1 : index
    %178 = vector.load %arg13[%c0_152, %c1_153] : memref<24x9xf32, #tpu.memory_space<vmem>>, vector<24x1xf32>
    %c0_154 = arith.constant 0 : index
    %c240_155 = arith.constant 240 : index
    %179 = vector.load %arg24[%c0_154, %c240_155] : memref<32x768xf32, #tpu.memory_space<vmem>>, vector<24x256xf32>
    %180 = vector.broadcast %178 : vector<24x1xf32> to vector<24x256xf32>
    %181 = arith.mulf %180, %179 : vector<24x256xf32>
    %182 = arith.addf %177, %181 : vector<24x256xf32>
    %c0_156 = arith.constant 0 : index
    %c2_157 = arith.constant 2 : index
    %183 = vector.load %arg13[%c0_156, %c2_157] : memref<24x9xf32, #tpu.memory_space<vmem>>, vector<24x1xf32>
    %c0_158 = arith.constant 0 : index
    %c241_159 = arith.constant 241 : index
    %184 = vector.load %arg24[%c0_158, %c241_159] : memref<32x768xf32, #tpu.memory_space<vmem>>, vector<24x256xf32>
    %c2_160 = arith.constant 2 : index
    %c0_161 = arith.constant 0 : index
    %185 = vector.load %arg2[%c2_160, %c0_161] : memref<12x256xf32, #tpu.memory_space<vmem>>, vector<1x256xf32>
    %186 = vector.broadcast %185 : vector<1x256xf32> to vector<24x256xf32>
    %187 = arith.mulf %184, %186 : vector<24x256xf32>
    %188 = vector.broadcast %183 : vector<24x1xf32> to vector<24x256xf32>
    %189 = arith.mulf %188, %187 : vector<24x256xf32>
    %190 = arith.addf %182, %189 : vector<24x256xf32>
    %c0_162 = arith.constant 0 : index
    %c3_163 = arith.constant 3 : index
    %191 = vector.load %arg13[%c0_162, %c3_163] : memref<24x9xf32, #tpu.memory_space<vmem>>, vector<24x1xf32>
    %c0_164 = arith.constant 0 : index
    %c255_165 = arith.constant 255 : index
    %192 = vector.load %arg24[%c0_164, %c255_165] : memref<32x768xf32, #tpu.memory_space<vmem>>, vector<24x256xf32>
    %c0_166 = arith.constant 0 : index
    %c0_167 = arith.constant 0 : index
    %193 = vector.load %arg2[%c0_166, %c0_167] : memref<12x256xf32, #tpu.memory_space<vmem>>, vector<1x256xf32>
    %194 = vector.broadcast %193 : vector<1x256xf32> to vector<24x256xf32>
    %195 = arith.mulf %192, %194 : vector<24x256xf32>
    %196 = vector.broadcast %191 : vector<24x1xf32> to vector<24x256xf32>
    %197 = arith.mulf %196, %195 : vector<24x256xf32>
    %198 = arith.addf %190, %197 : vector<24x256xf32>
    %c0_168 = arith.constant 0 : index
    %c4_169 = arith.constant 4 : index
    %199 = vector.load %arg13[%c0_168, %c4_169] : memref<24x9xf32, #tpu.memory_space<vmem>>, vector<24x1xf32>
    %c0_170 = arith.constant 0 : index
    %c256_171 = arith.constant 256 : index
    %200 = vector.load %arg24[%c0_170, %c256_171] : memref<32x768xf32, #tpu.memory_space<vmem>>, vector<24x256xf32>
    %201 = vector.broadcast %199 : vector<24x1xf32> to vector<24x256xf32>
    %202 = arith.mulf %201, %200 : vector<24x256xf32>
    %203 = arith.addf %198, %202 : vector<24x256xf32>
    %c0_172 = arith.constant 0 : index
    %c5_173 = arith.constant 5 : index
    %204 = vector.load %arg13[%c0_172, %c5_173] : memref<24x9xf32, #tpu.memory_space<vmem>>, vector<24x1xf32>
    %c0_174 = arith.constant 0 : index
    %c257_175 = arith.constant 257 : index
    %205 = vector.load %arg24[%c0_174, %c257_175] : memref<32x768xf32, #tpu.memory_space<vmem>>, vector<24x256xf32>
    %c2_176 = arith.constant 2 : index
    %c0_177 = arith.constant 0 : index
    %206 = vector.load %arg2[%c2_176, %c0_177] : memref<12x256xf32, #tpu.memory_space<vmem>>, vector<1x256xf32>
    %207 = vector.broadcast %206 : vector<1x256xf32> to vector<24x256xf32>
    %208 = arith.mulf %205, %207 : vector<24x256xf32>
    %209 = vector.broadcast %204 : vector<24x1xf32> to vector<24x256xf32>
    %210 = arith.mulf %209, %208 : vector<24x256xf32>
    %211 = arith.addf %203, %210 : vector<24x256xf32>
    %c0_178 = arith.constant 0 : index
    %c6_179 = arith.constant 6 : index
    %212 = vector.load %arg13[%c0_178, %c6_179] : memref<24x9xf32, #tpu.memory_space<vmem>>, vector<24x1xf32>
    %c0_180 = arith.constant 0 : index
    %c271_181 = arith.constant 271 : index
    %213 = vector.load %arg24[%c0_180, %c271_181] : memref<32x768xf32, #tpu.memory_space<vmem>>, vector<24x256xf32>
    %c0_182 = arith.constant 0 : index
    %c0_183 = arith.constant 0 : index
    %214 = vector.load %arg2[%c0_182, %c0_183] : memref<12x256xf32, #tpu.memory_space<vmem>>, vector<1x256xf32>
    %215 = vector.broadcast %214 : vector<1x256xf32> to vector<24x256xf32>
    %216 = arith.mulf %213, %215 : vector<24x256xf32>
    %217 = vector.broadcast %212 : vector<24x1xf32> to vector<24x256xf32>
    %218 = arith.mulf %217, %216 : vector<24x256xf32>
    %219 = arith.addf %211, %218 : vector<24x256xf32>
    %c0_184 = arith.constant 0 : index
    %c7_185 = arith.constant 7 : index
    %220 = vector.load %arg13[%c0_184, %c7_185] : memref<24x9xf32, #tpu.memory_space<vmem>>, vector<24x1xf32>
    %c0_186 = arith.constant 0 : index
    %c272_187 = arith.constant 272 : index
    %221 = vector.load %arg24[%c0_186, %c272_187] : memref<32x768xf32, #tpu.memory_space<vmem>>, vector<24x256xf32>
    %222 = vector.broadcast %220 : vector<24x1xf32> to vector<24x256xf32>
    %223 = arith.mulf %222, %221 : vector<24x256xf32>
    %224 = arith.addf %219, %223 : vector<24x256xf32>
    %c0_188 = arith.constant 0 : index
    %c8_189 = arith.constant 8 : index
    %225 = vector.load %arg13[%c0_188, %c8_189] : memref<24x9xf32, #tpu.memory_space<vmem>>, vector<24x1xf32>
    %c0_190 = arith.constant 0 : index
    %c273_191 = arith.constant 273 : index
    %226 = vector.load %arg24[%c0_190, %c273_191] : memref<32x768xf32, #tpu.memory_space<vmem>>, vector<24x256xf32>
    %c2_192 = arith.constant 2 : index
    %c0_193 = arith.constant 0 : index
    %227 = vector.load %arg2[%c2_192, %c0_193] : memref<12x256xf32, #tpu.memory_space<vmem>>, vector<1x256xf32>
    %228 = vector.broadcast %227 : vector<1x256xf32> to vector<24x256xf32>
    %229 = arith.mulf %226, %228 : vector<24x256xf32>
    %230 = vector.broadcast %225 : vector<24x1xf32> to vector<24x256xf32>
    %231 = arith.mulf %230, %229 : vector<24x256xf32>
    %232 = arith.addf %224, %231 : vector<24x256xf32>
    %c0_194 = arith.constant 0 : index
    %c0_195 = arith.constant 0 : index
    %233 = vector.load %arg14[%c0_194, %c0_195] : memref<24x1xf32, #tpu.memory_space<vmem>>, vector<24x1xf32>
    %234 = vector.broadcast %233 : vector<24x1xf32> to vector<24x256xf32>
    %235 = arith.addf %232, %234 : vector<24x256xf32>
    %c0_196 = arith.constant 0 : index
    %c0_197 = arith.constant 0 : index
    %236 = vector.load %arg15[%c0_196, %c0_197] : memref<8x24xf32, #tpu.memory_space<vmem>>, vector<8x24xf32>
    %cst_198 = arith.constant dense<0.000000e+00> : vector<8x256xf32>
    %237 = tpu.matmul %236, %235, %cst_198 {dimension_numbers = #tpu.dot_dimension_numbers<[1], [0], [0], [1], [0, 0, 1, 1], [], []>} : vector<8x24xf32>, vector<24x256xf32>, vector<8x256xf32> -> vector<8x256xf32>
    %c0_199 = arith.constant 0 : index
    %c0_200 = arith.constant 0 : index
    %238 = vector.load %arg16[%c0_199, %c0_200] : memref<8x1xf32, #tpu.memory_space<vmem>>, vector<8x1xf32>
    %239 = vector.broadcast %238 : vector<8x1xf32> to vector<8x256xf32>
    %240 = arith.addf %237, %239 : vector<8x256xf32>
    %cst_201 = arith.constant 0.000000e+00 : f32
    %241 = vector.broadcast %cst_201 : f32 to vector<8x256xf32>
    %242 = arith.maximumf %240, %241 : vector<8x256xf32>
    %c0_202 = arith.constant 0 : index
    %c256_203 = arith.constant 256 : index
    %243 = vector.load %arg24[%c0_202, %c256_203] : memref<32x768xf32, #tpu.memory_space<vmem>>, vector<8x256xf32>
    tpu.vector_store %arg24[%c0_202, %c256_203], %242 {strides = array<i32>} : memref<32x768xf32, #tpu.memory_space<vmem>>, vector<8x256xf32>,
    %c0_204 = arith.constant 0 : index
    %c103 = arith.constant 103 : index
    %244 = vector.load %arg24[%c0_204, %c103] : memref<32x768xf32, #tpu.memory_space<vmem>>, vector<8x256xf32>
    %c9 = arith.constant 9 : index
    %c0_205 = arith.constant 0 : index
    %245 = vector.load %arg2[%c9, %c0_205] : memref<12x256xf32, #tpu.memory_space<vmem>>, vector<1x256xf32>
    %246 = vector.broadcast %245 : vector<1x256xf32> to vector<8x256xf32>
    %247 = arith.mulf %244, %246 : vector<8x256xf32>
    %c0_206 = arith.constant 0 : index
    %c0_207 = arith.constant 0 : index
    %248 = vector.load %arg25[%c0_206, %c0_207] : memref<72x256xf32, #tpu.memory_space<vmem>>, vector<8x256xf32>
    tpu.vector_store %arg25[%c0_206, %c0_207], %247 {strides = array<i32>} : memref<72x256xf32, #tpu.memory_space<vmem>>, vector<8x256xf32>,
    %c0_208 = arith.constant 0 : index
    %c112 = arith.constant 112 : index
    %249 = vector.load %arg24[%c0_208, %c112] : memref<32x768xf32, #tpu.memory_space<vmem>>, vector<8x256xf32>
    %c8_209 = arith.constant 8 : index
    %c0_210 = arith.constant 0 : index
    %250 = vector.load %arg25[%c8_209, %c0_210] : memref<72x256xf32, #tpu.memory_space<vmem>>, vector<8x256xf32>
    tpu.vector_store %arg25[%c8_209, %c0_210], %249 {strides = array<i32>} : memref<72x256xf32, #tpu.memory_space<vmem>>, vector<8x256xf32>,
    %c0_211 = arith.constant 0 : index
    %c121 = arith.constant 121 : index
    %251 = vector.load %arg24[%c0_211, %c121] : memref<32x768xf32, #tpu.memory_space<vmem>>, vector<8x256xf32>
    %c11 = arith.constant 11 : index
    %c0_212 = arith.constant 0 : index
    %252 = vector.load %arg2[%c11, %c0_212] : memref<12x256xf32, #tpu.memory_space<vmem>>, vector<1x256xf32>
    %253 = vector.broadcast %252 : vector<1x256xf32> to vector<8x256xf32>
    %254 = arith.mulf %251, %253 : vector<8x256xf32>
    %c16_213 = arith.constant 16 : index
    %c0_214 = arith.constant 0 : index
    %255 = vector.load %arg25[%c16_213, %c0_214] : memref<72x256xf32, #tpu.memory_space<vmem>>, vector<8x256xf32>
    tpu.vector_store %arg25[%c16_213, %c0_214], %254 {strides = array<i32>} : memref<72x256xf32, #tpu.memory_space<vmem>>, vector<8x256xf32>,
    %c0_215 = arith.constant 0 : index
    %c247 = arith.constant 247 : index
    %256 = vector.load %arg24[%c0_215, %c247] : memref<32x768xf32, #tpu.memory_space<vmem>>, vector<8x256xf32>
    %c9_216 = arith.constant 9 : index
    %c0_217 = arith.constant 0 : index
    %257 = vector.load %arg2[%c9_216, %c0_217] : memref<12x256xf32, #tpu.memory_space<vmem>>, vector<1x256xf32>
    %258 = vector.broadcast %257 : vector<1x256xf32> to vector<8x256xf32>
    %259 = arith.mulf %256, %258 : vector<8x256xf32>
    %c24_218 = arith.constant 24 : index
    %c0_219 = arith.constant 0 : index
    %260 = vector.load %arg25[%c24_218, %c0_219] : memref<72x256xf32, #tpu.memory_space<vmem>>, vector<8x256xf32>
    tpu.vector_store %arg25[%c24_218, %c0_219], %259 {strides = array<i32>} : memref<72x256xf32, #tpu.memory_space<vmem>>, vector<8x256xf32>,
    %c0_220 = arith.constant 0 : index
    %c256_221 = arith.constant 256 : index
    %261 = vector.load %arg24[%c0_220, %c256_221] : memref<32x768xf32, #tpu.memory_space<vmem>>, vector<8x256xf32>
    %c32_222 = arith.constant 32 : index
    %c0_223 = arith.constant 0 : index
    %262 = vector.load %arg25[%c32_222, %c0_223] : memref<72x256xf32, #tpu.memory_space<vmem>>, vector<8x256xf32>
    tpu.vector_store %arg25[%c32_222, %c0_223], %261 {strides = array<i32>} : memref<72x256xf32, #tpu.memory_space<vmem>>, vector<8x256xf32>,
    %c0_224 = arith.constant 0 : index
    %c265 = arith.constant 265 : index
    %263 = vector.load %arg24[%c0_224, %c265] : memref<32x768xf32, #tpu.memory_space<vmem>>, vector<8x256xf32>
    %c11_225 = arith.constant 11 : index
    %c0_226 = arith.constant 0 : index
    %264 = vector.load %arg2[%c11_225, %c0_226] : memref<12x256xf32, #tpu.memory_space<vmem>>, vector<1x256xf32>
    %265 = vector.broadcast %264 : vector<1x256xf32> to vector<8x256xf32>
    %266 = arith.mulf %263, %265 : vector<8x256xf32>
    %c40_227 = arith.constant 40 : index
    %c0_228 = arith.constant 0 : index
    %267 = vector.load %arg25[%c40_227, %c0_228] : memref<72x256xf32, #tpu.memory_space<vmem>>, vector<8x256xf32>
    tpu.vector_store %arg25[%c40_227, %c0_228], %266 {strides = array<i32>} : memref<72x256xf32, #tpu.memory_space<vmem>>, vector<8x256xf32>,
    %c0_229 = arith.constant 0 : index
    %c391 = arith.constant 391 : index
    %268 = vector.load %arg24[%c0_229, %c391] : memref<32x768xf32, #tpu.memory_space<vmem>>, vector<8x256xf32>
    %c9_230 = arith.constant 9 : index
    %c0_231 = arith.constant 0 : index
    %269 = vector.load %arg2[%c9_230, %c0_231] : memref<12x256xf32, #tpu.memory_space<vmem>>, vector<1x256xf32>
    %270 = vector.broadcast %269 : vector<1x256xf32> to vector<8x256xf32>
    %271 = arith.mulf %268, %270 : vector<8x256xf32>
    %c48_232 = arith.constant 48 : index
    %c0_233 = arith.constant 0 : index
    %272 = vector.load %arg25[%c48_232, %c0_233] : memref<72x256xf32, #tpu.memory_space<vmem>>, vector<8x256xf32>
    tpu.vector_store %arg25[%c48_232, %c0_233], %271 {strides = array<i32>} : memref<72x256xf32, #tpu.memory_space<vmem>>, vector<8x256xf32>,
    %c0_234 = arith.constant 0 : index
    %c400 = arith.constant 400 : index
    %273 = vector.load %arg24[%c0_234, %c400] : memref<32x768xf32, #tpu.memory_space<vmem>>, vector<8x256xf32>
    %c56_235 = arith.constant 56 : index
    %c0_236 = arith.constant 0 : index
    %274 = vector.load %arg25[%c56_235, %c0_236] : memref<72x256xf32, #tpu.memory_space<vmem>>, vector<8x256xf32>
    tpu.vector_store %arg25[%c56_235, %c0_236], %273 {strides = array<i32>} : memref<72x256xf32, #tpu.memory_space<vmem>>, vector<8x256xf32>,
    %c0_237 = arith.constant 0 : index
    %c409 = arith.constant 409 : index
    %275 = vector.load %arg24[%c0_237, %c409] : memref<32x768xf32, #tpu.memory_space<vmem>>, vector<8x256xf32>
    %c11_238 = arith.constant 11 : index
    %c0_239 = arith.constant 0 : index
    %276 = vector.load %arg2[%c11_238, %c0_239] : memref<12x256xf32, #tpu.memory_space<vmem>>, vector<1x256xf32>
    %277 = vector.broadcast %276 : vector<1x256xf32> to vector<8x256xf32>
    %278 = arith.mulf %275, %277 : vector<8x256xf32>
    %c64_240 = arith.constant 64 : index
    %c0_241 = arith.constant 0 : index
    %279 = vector.load %arg25[%c64_240, %c0_241] : memref<72x256xf32, #tpu.memory_space<vmem>>, vector<8x256xf32>
    tpu.vector_store %arg25[%c64_240, %c0_241], %278 {strides = array<i32>} : memref<72x256xf32, #tpu.memory_space<vmem>>, vector<8x256xf32>,
    %c0_242 = arith.constant 0 : index
    %c0_243 = arith.constant 0 : index
    %280 = vector.load %arg7[%c0_242, %c0_243] : memref<8x72xf32, #tpu.memory_space<vmem>>, vector<8x72xf32>
    %c0_244 = arith.constant 0 : index
    %c0_245 = arith.constant 0 : index
    %281 = vector.load %arg25[%c0_244, %c0_245] : memref<72x256xf32, #tpu.memory_space<vmem>>, vector<72x256xf32>
    %cst_246 = arith.constant dense<0.000000e+00> : vector<8x256xf32>
    %282 = tpu.matmul %280, %281, %cst_246 {dimension_numbers = #tpu.dot_dimension_numbers<[1], [0], [0], [1], [0, 0, 1, 1], [], []>} : vector<8x72xf32>, vector<72x256xf32>, vector<8x256xf32> -> vector<8x256xf32>
    %c0_247 = arith.constant 0 : index
    %c0_248 = arith.constant 0 : index
    %283 = vector.load %arg8[%c0_247, %c0_248] : memref<8x1xf32, #tpu.memory_space<vmem>>, vector<8x1xf32>
    %284 = vector.broadcast %283 : vector<8x1xf32> to vector<8x256xf32>
    %285 = arith.addf %282, %284 : vector<8x256xf32>
    %c0_249 = arith.constant 0 : index
    %c256_250 = arith.constant 256 : index
    %286 = vector.load %arg24[%c0_249, %c256_250] : memref<32x768xf32, #tpu.memory_space<vmem>>, vector<8x256xf32>
    tpu.vector_store %arg24[%c0_249, %c256_250], %285 {strides = array<i32>} : memref<32x768xf32, #tpu.memory_space<vmem>>, vector<8x256xf32>,
    %c8_251 = arith.constant 8 : index
    %c256_252 = arith.constant 256 : index
    %287 = vector.load %arg24[%c8_251, %c256_252] : memref<32x768xf32, #tpu.memory_space<vmem>>, vector<8x256xf32>
    tpu.vector_store %arg24[%c8_251, %c256_252], %165 {strides = array<i32>} : memref<32x768xf32, #tpu.memory_space<vmem>>, vector<8x256xf32>,
    %c16_253 = arith.constant 16 : index
    %c256_254 = arith.constant 256 : index
    %288 = vector.load %arg24[%c16_253, %c256_254] : memref<32x768xf32, #tpu.memory_space<vmem>>, vector<8x256xf32>
    tpu.vector_store %arg24[%c16_253, %c256_254], %46 {strides = array<i32>} : memref<32x768xf32, #tpu.memory_space<vmem>>, vector<8x256xf32>,
    %c24_255 = arith.constant 24 : index
    %c256_256 = arith.constant 256 : index
    %289 = vector.load %arg24[%c24_255, %c256_256] : memref<32x768xf32, #tpu.memory_space<vmem>>, vector<8x256xf32>
    tpu.vector_store %arg24[%c24_255, %c256_256], %3 {strides = array<i32>} : memref<32x768xf32, #tpu.memory_space<vmem>>, vector<8x256xf32>,
    %cst_257 = arith.constant 0.000000e+00 : f32
    %290 = vector.broadcast %cst_257 : f32 to vector<32x256xf32>
    %c0_258 = arith.constant 0 : index
    %c0_259 = arith.constant 0 : index
    %291 = vector.load %arg17[%c0_258, %c0_259] : memref<32x9xf32, #tpu.memory_space<vmem>>, vector<32x1xf32>
    %c0_260 = arith.constant 0 : index
    %c239_261 = arith.constant 239 : index
    %292 = vector.load %arg24[%c0_260, %c239_261] : memref<32x768xf32, #tpu.memory_space<vmem>>, vector<32x256xf32>
    %c0_262 = arith.constant 0 : index
    %c0_263 = arith.constant 0 : index
    %293 = vector.load %arg2[%c0_262, %c0_263] : memref<12x256xf32, #tpu.memory_space<vmem>>, vector<1x256xf32>
    %294 = vector.broadcast %293 : vector<1x256xf32> to vector<32x256xf32>
    %295 = arith.mulf %292, %294 : vector<32x256xf32>
    %296 = vector.broadcast %291 : vector<32x1xf32> to vector<32x256xf32>
    %297 = arith.mulf %296, %295 : vector<32x256xf32>
    %298 = arith.addf %290, %297 : vector<32x256xf32>
    %c0_264 = arith.constant 0 : index
    %c1_265 = arith.constant 1 : index
    %299 = vector.load %arg17[%c0_264, %c1_265] : memref<32x9xf32, #tpu.memory_space<vmem>>, vector<32x1xf32>
    %c0_266 = arith.constant 0 : index
    %c240_267 = arith.constant 240 : index
    %300 = vector.load %arg24[%c0_266, %c240_267] : memref<32x768xf32, #tpu.memory_space<vmem>>, vector<32x256xf32>
    %301 = vector.broadcast %299 : vector<32x1xf32> to vector<32x256xf32>
    %302 = arith.mulf %301, %300 : vector<32x256xf32>
    %303 = arith.addf %298, %302 : vector<32x256xf32>
    %c0_268 = arith.constant 0 : index
    %c2_269 = arith.constant 2 : index
    %304 = vector.load %arg17[%c0_268, %c2_269] : memref<32x9xf32, #tpu.memory_space<vmem>>, vector<32x1xf32>
    %c0_270 = arith.constant 0 : index
    %c241_271 = arith.constant 241 : index
    %305 = vector.load %arg24[%c0_270, %c241_271] : memref<32x768xf32, #tpu.memory_space<vmem>>, vector<32x256xf32>
    %c2_272 = arith.constant 2 : index
    %c0_273 = arith.constant 0 : index
    %306 = vector.load %arg2[%c2_272, %c0_273] : memref<12x256xf32, #tpu.memory_space<vmem>>, vector<1x256xf32>
    %307 = vector.broadcast %306 : vector<1x256xf32> to vector<32x256xf32>
    %308 = arith.mulf %305, %307 : vector<32x256xf32>
    %309 = vector.broadcast %304 : vector<32x1xf32> to vector<32x256xf32>
    %310 = arith.mulf %309, %308 : vector<32x256xf32>
    %311 = arith.addf %303, %310 : vector<32x256xf32>
    %c0_274 = arith.constant 0 : index
    %c3_275 = arith.constant 3 : index
    %312 = vector.load %arg17[%c0_274, %c3_275] : memref<32x9xf32, #tpu.memory_space<vmem>>, vector<32x1xf32>
    %c0_276 = arith.constant 0 : index
    %c255_277 = arith.constant 255 : index
    %313 = vector.load %arg24[%c0_276, %c255_277] : memref<32x768xf32, #tpu.memory_space<vmem>>, vector<32x256xf32>
    %c0_278 = arith.constant 0 : index
    %c0_279 = arith.constant 0 : index
    %314 = vector.load %arg2[%c0_278, %c0_279] : memref<12x256xf32, #tpu.memory_space<vmem>>, vector<1x256xf32>
    %315 = vector.broadcast %314 : vector<1x256xf32> to vector<32x256xf32>
    %316 = arith.mulf %313, %315 : vector<32x256xf32>
    %317 = vector.broadcast %312 : vector<32x1xf32> to vector<32x256xf32>
    %318 = arith.mulf %317, %316 : vector<32x256xf32>
    %319 = arith.addf %311, %318 : vector<32x256xf32>
    %c0_280 = arith.constant 0 : index
    %c4_281 = arith.constant 4 : index
    %320 = vector.load %arg17[%c0_280, %c4_281] : memref<32x9xf32, #tpu.memory_space<vmem>>, vector<32x1xf32>
    %c0_282 = arith.constant 0 : index
    %c256_283 = arith.constant 256 : index
    %321 = vector.load %arg24[%c0_282, %c256_283] : memref<32x768xf32, #tpu.memory_space<vmem>>, vector<32x256xf32>
    %322 = vector.broadcast %320 : vector<32x1xf32> to vector<32x256xf32>
    %323 = arith.mulf %322, %321 : vector<32x256xf32>
    %324 = arith.addf %319, %323 : vector<32x256xf32>
    %c0_284 = arith.constant 0 : index
    %c5_285 = arith.constant 5 : index
    %325 = vector.load %arg17[%c0_284, %c5_285] : memref<32x9xf32, #tpu.memory_space<vmem>>, vector<32x1xf32>
    %c0_286 = arith.constant 0 : index
    %c257_287 = arith.constant 257 : index
    %326 = vector.load %arg24[%c0_286, %c257_287] : memref<32x768xf32, #tpu.memory_space<vmem>>, vector<32x256xf32>
    %c2_288 = arith.constant 2 : index
    %c0_289 = arith.constant 0 : index
    %327 = vector.load %arg2[%c2_288, %c0_289] : memref<12x256xf32, #tpu.memory_space<vmem>>, vector<1x256xf32>
    %328 = vector.broadcast %327 : vector<1x256xf32> to vector<32x256xf32>
    %329 = arith.mulf %326, %328 : vector<32x256xf32>
    %330 = vector.broadcast %325 : vector<32x1xf32> to vector<32x256xf32>
    %331 = arith.mulf %330, %329 : vector<32x256xf32>
    %332 = arith.addf %324, %331 : vector<32x256xf32>
    %c0_290 = arith.constant 0 : index
    %c6_291 = arith.constant 6 : index
    %333 = vector.load %arg17[%c0_290, %c6_291] : memref<32x9xf32, #tpu.memory_space<vmem>>, vector<32x1xf32>
    %c0_292 = arith.constant 0 : index
    %c271_293 = arith.constant 271 : index
    %334 = vector.load %arg24[%c0_292, %c271_293] : memref<32x768xf32, #tpu.memory_space<vmem>>, vector<32x256xf32>
    %c0_294 = arith.constant 0 : index
    %c0_295 = arith.constant 0 : index
    %335 = vector.load %arg2[%c0_294, %c0_295] : memref<12x256xf32, #tpu.memory_space<vmem>>, vector<1x256xf32>
    %336 = vector.broadcast %335 : vector<1x256xf32> to vector<32x256xf32>
    %337 = arith.mulf %334, %336 : vector<32x256xf32>
    %338 = vector.broadcast %333 : vector<32x1xf32> to vector<32x256xf32>
    %339 = arith.mulf %338, %337 : vector<32x256xf32>
    %340 = arith.addf %332, %339 : vector<32x256xf32>
    %c0_296 = arith.constant 0 : index
    %c7_297 = arith.constant 7 : index
    %341 = vector.load %arg17[%c0_296, %c7_297] : memref<32x9xf32, #tpu.memory_space<vmem>>, vector<32x1xf32>
    %c0_298 = arith.constant 0 : index
    %c272_299 = arith.constant 272 : index
    %342 = vector.load %arg24[%c0_298, %c272_299] : memref<32x768xf32, #tpu.memory_space<vmem>>, vector<32x256xf32>
    %343 = vector.broadcast %341 : vector<32x1xf32> to vector<32x256xf32>
    %344 = arith.mulf %343, %342 : vector<32x256xf32>
    %345 = arith.addf %340, %344 : vector<32x256xf32>
    %c0_300 = arith.constant 0 : index
    %c8_301 = arith.constant 8 : index
    %346 = vector.load %arg17[%c0_300, %c8_301] : memref<32x9xf32, #tpu.memory_space<vmem>>, vector<32x1xf32>
    %c0_302 = arith.constant 0 : index
    %c273_303 = arith.constant 273 : index
    %347 = vector.load %arg24[%c0_302, %c273_303] : memref<32x768xf32, #tpu.memory_space<vmem>>, vector<32x256xf32>
    %c2_304 = arith.constant 2 : index
    %c0_305 = arith.constant 0 : index
    %348 = vector.load %arg2[%c2_304, %c0_305] : memref<12x256xf32, #tpu.memory_space<vmem>>, vector<1x256xf32>
    %349 = vector.broadcast %348 : vector<1x256xf32> to vector<32x256xf32>
    %350 = arith.mulf %347, %349 : vector<32x256xf32>
    %351 = vector.broadcast %346 : vector<32x1xf32> to vector<32x256xf32>
    %352 = arith.mulf %351, %350 : vector<32x256xf32>
    %353 = arith.addf %345, %352 : vector<32x256xf32>
    %c0_306 = arith.constant 0 : index
    %c0_307 = arith.constant 0 : index
    %354 = vector.load %arg18[%c0_306, %c0_307] : memref<32x1xf32, #tpu.memory_space<vmem>>, vector<32x1xf32>
    %355 = vector.broadcast %354 : vector<32x1xf32> to vector<32x256xf32>
    %356 = arith.addf %353, %355 : vector<32x256xf32>
    %c0_308 = arith.constant 0 : index
    %c0_309 = arith.constant 0 : index
    %357 = vector.load %arg19[%c0_308, %c0_309] : memref<8x32xf32, #tpu.memory_space<vmem>>, vector<8x32xf32>
    %cst_310 = arith.constant dense<0.000000e+00> : vector<8x256xf32>
    %358 = tpu.matmul %357, %356, %cst_310 {dimension_numbers = #tpu.dot_dimension_numbers<[1], [0], [0], [1], [0, 0, 1, 1], [], []>} : vector<8x32xf32>, vector<32x256xf32>, vector<8x256xf32> -> vector<8x256xf32>
    %c0_311 = arith.constant 0 : index
    %c0_312 = arith.constant 0 : index
    %359 = vector.load %arg20[%c0_311, %c0_312] : memref<8x1xf32, #tpu.memory_space<vmem>>, vector<8x1xf32>
    %360 = vector.broadcast %359 : vector<8x1xf32> to vector<8x256xf32>
    %361 = arith.addf %358, %360 : vector<8x256xf32>
    %cst_313 = arith.constant 0.000000e+00 : f32
    %362 = vector.broadcast %cst_313 : f32 to vector<8x256xf32>
    %363 = arith.maximumf %361, %362 : vector<8x256xf32>
    %c0_314 = arith.constant 0 : index
    %c0_315 = arith.constant 0 : index
    %364 = vector.load %arg21[%c0_314, %c0_315] : memref<8x8xf32, #tpu.memory_space<vmem>>, vector<8x8xf32>
    %cst_316 = arith.constant dense<0.000000e+00> : vector<8x256xf32>
    %365 = tpu.matmul %364, %363, %cst_316 {dimension_numbers = #tpu.dot_dimension_numbers<[1], [0], [0], [1], [0, 0, 1, 1], [], []>} : vector<8x8xf32>, vector<8x256xf32>, vector<8x256xf32> -> vector<8x256xf32>
    %c0_317 = arith.constant 0 : index
    %c0_318 = arith.constant 0 : index
    %366 = vector.load %arg22[%c0_317, %c0_318] : memref<8x1xf32, #tpu.memory_space<vmem>>, vector<8x1xf32>
    %367 = vector.broadcast %366 : vector<8x1xf32> to vector<8x256xf32>
    %368 = arith.addf %365, %367 : vector<8x256xf32>
    %cst_319 = arith.constant 0.000000e+00 : f32
    %369 = vector.broadcast %cst_319 : f32 to vector<8x256xf32>
    %370 = arith.maximumf %368, %369 : vector<8x256xf32>
    %c0_320 = arith.constant 0 : index
    %c0_321 = arith.constant 0 : index
    %c0_322 = arith.constant 0 : index
    %371 = vector.load %arg23[%c0_320, %c0_321, %c0_322] : memref<1x8x256xf32, #tpu.memory_space<vmem>>, vector<1x8x256xf32>
    %372 = vector.shape_cast %371 : vector<1x8x256xf32> to vector<8x256xf32>
    %373 = vector.shape_cast %370 : vector<8x256xf32> to vector<1x8x256xf32>
    tpu.vector_store %arg23[%c0_320, %c0_321, %c0_322], %373 {strides = array<i32>} : memref<1x8x256xf32, #tpu.memory_space<vmem>>, vector<1x8x256xf32>,
    return
  }
  func.func @transform_0(%arg0: i32) -> (i32, i32, i32) {
    %c0_i32 = arith.constant 0 : i32
    %c0_i32_0 = arith.constant 0 : i32
    %c0_i32_1 = arith.constant 0 : i32
    return %arg0, %c0_i32, %c0_i32_0 : i32, i32, i32
  }
  func.func @transform_1(%arg0: i32) -> (i32, i32) {
    %c0_i32 = arith.constant 0 : i32
    %c0_i32_0 = arith.constant 0 : i32
    %c0_i32_1 = arith.constant 0 : i32
    return %c0_i32, %c0_i32_0 : i32, i32
  }
  func.func @transform_2(%arg0: i32) -> (i32, i32) {
    %c0_i32 = arith.constant 0 : i32
    %c0_i32_0 = arith.constant 0 : i32
    %c0_i32_1 = arith.constant 0 : i32
    return %c0_i32, %c0_i32_0 : i32, i32
  }
  func.func @transform_3(%arg0: i32) -> (i32, i32) {
    %c0_i32 = arith.constant 0 : i32
    %c0_i32_0 = arith.constant 0 : i32
    %c0_i32_1 = arith.constant 0 : i32
    return %c0_i32, %c0_i32_0 : i32, i32
  }
  func.func @transform_4(%arg0: i32) -> (i32, i32) {
    %c0_i32 = arith.constant 0 : i32
    %c0_i32_0 = arith.constant 0 : i32
    %c0_i32_1 = arith.constant 0 : i32
    return %c0_i32, %c0_i32_0 : i32, i32
  }
  func.func @transform_5(%arg0: i32) -> (i32, i32) {
    %c0_i32 = arith.constant 0 : i32
    %c0_i32_0 = arith.constant 0 : i32
    %c0_i32_1 = arith.constant 0 : i32
    return %c0_i32, %c0_i32_0 : i32, i32
  }
  func.func @transform_6(%arg0: i32) -> (i32, i32) {
    %c0_i32 = arith.constant 0 : i32
    %c0_i32_0 = arith.constant 0 : i32
    %c0_i32_1 = arith.constant 0 : i32
    return %c0_i32, %c0_i32_0 : i32, i32
  }
  func.func @transform_7(%arg0: i32) -> (i32, i32) {
    %c0_i32 = arith.constant 0 : i32
    %c0_i32_0 = arith.constant 0 : i32
    %c0_i32_1 = arith.constant 0 : i32
    return %c0_i32, %c0_i32_0 : i32, i32
  }
  func.func @transform_8(%arg0: i32) -> (i32, i32) {
    %c0_i32 = arith.constant 0 : i32
    %c0_i32_0 = arith.constant 0 : i32
    %c0_i32_1 = arith.constant 0 : i32
    return %c0_i32, %c0_i32_0 : i32, i32
  }
  func.func @transform_9(%arg0: i32) -> (i32, i32) {
    %c0_i32 = arith.constant 0 : i32
    %c0_i32_0 = arith.constant 0 : i32
    %c0_i32_1 = arith.constant 0 : i32
    return %c0_i32, %c0_i32_0 : i32, i32
  }
  func.func @transform_10(%arg0: i32) -> (i32, i32) {
    %c0_i32 = arith.constant 0 : i32
    %c0_i32_0 = arith.constant 0 : i32
    %c0_i32_1 = arith.constant 0 : i32
    return %c0_i32, %c0_i32_0 : i32, i32
  }
  func.func @transform_11(%arg0: i32) -> (i32, i32) {
    %c0_i32 = arith.constant 0 : i32
    %c0_i32_0 = arith.constant 0 : i32
    %c0_i32_1 = arith.constant 0 : i32
    return %c0_i32, %c0_i32_0 : i32, i32
  }
  func.func @transform_12(%arg0: i32) -> (i32, i32) {
    %c0_i32 = arith.constant 0 : i32
    %c0_i32_0 = arith.constant 0 : i32
    %c0_i32_1 = arith.constant 0 : i32
    return %c0_i32, %c0_i32_0 : i32, i32
  }
  func.func @transform_13(%arg0: i32) -> (i32, i32) {
    %c0_i32 = arith.constant 0 : i32
    %c0_i32_0 = arith.constant 0 : i32
    %c0_i32_1 = arith.constant 0 : i32
    return %c0_i32, %c0_i32_0 : i32, i32
  }
  func.func @transform_14(%arg0: i32) -> (i32, i32) {
    %c0_i32 = arith.constant 0 : i32
    %c0_i32_0 = arith.constant 0 : i32
    %c0_i32_1 = arith.constant 0 : i32
    return %c0_i32, %c0_i32_0 : i32, i32
  }
  func.func @transform_15(%arg0: i32) -> (i32, i32) {
    %c0_i32 = arith.constant 0 : i32
    %c0_i32_0 = arith.constant 0 : i32
    %c0_i32_1 = arith.constant 0 : i32
    return %c0_i32, %c0_i32_0 : i32, i32
  }
  func.func @transform_16(%arg0: i32) -> (i32, i32) {
    %c0_i32 = arith.constant 0 : i32
    %c0_i32_0 = arith.constant 0 : i32
    %c0_i32_1 = arith.constant 0 : i32
    return %c0_i32, %c0_i32_0 : i32, i32
  }
  func.func @transform_17(%arg0: i32) -> (i32, i32) {
    %c0_i32 = arith.constant 0 : i32
    %c0_i32_0 = arith.constant 0 : i32
    %c0_i32_1 = arith.constant 0 : i32
    return %c0_i32, %c0_i32_0 : i32, i32
  }
  func.func @transform_18(%arg0: i32) -> (i32, i32) {
    %c0_i32 = arith.constant 0 : i32
    %c0_i32_0 = arith.constant 0 : i32
    %c0_i32_1 = arith.constant 0 : i32
    return %c0_i32, %c0_i32_0 : i32, i32
  }
  func.func @transform_19(%arg0: i32) -> (i32, i32) {
    %c0_i32 = arith.constant 0 : i32
    %c0_i32_0 = arith.constant 0 : i32
    %c0_i32_1 = arith.constant 0 : i32
    return %c0_i32, %c0_i32_0 : i32, i32
  }
  func.func @transform_20(%arg0: i32) -> (i32, i32) {
    %c0_i32 = arith.constant 0 : i32
    %c0_i32_0 = arith.constant 0 : i32
    %c0_i32_1 = arith.constant 0 : i32
    return %c0_i32, %c0_i32_0 : i32, i32
  }
  func.func @transform_21(%arg0: i32) -> (i32, i32) {
    %c0_i32 = arith.constant 0 : i32
    %c0_i32_0 = arith.constant 0 : i32
    %c0_i32_1 = arith.constant 0 : i32
    return %c0_i32, %c0_i32_0 : i32, i32
  }
  func.func @transform_22(%arg0: i32) -> (i32, i32, i32) {
    %c0_i32 = arith.constant 0 : i32
    %c0_i32_0 = arith.constant 0 : i32
    %c0_i32_1 = arith.constant 0 : i32
    return %arg0, %c0_i32, %c0_i32_0 : i32, i32, i32
  }
}

</mosaic_0001>

<llo_original>
// kernel: dila_forward.1
$region0: #{dila_forward.1}
  #allocation0 [shape = 'u32[]', space=smem, size = 0x4, offset = 0x4, fixed_abs, tag = 'smem constant byte address 0x4 - core index']
  #allocation1 [shape = 'u32[144,128]{1,0:T(1,128)}', space=vmem, size = 0x12000, scoped, tag = 'internal scratch']
  #allocation2 [shape = 'f32[32,768]{1,0:T(8,128)}', space=vmem, size = 0x18000, scoped, tag = 'scratch operand']
  #allocation3 [shape = 'f32[72,256]{1,0:T(8,128)}', space=vmem, size = 0x12000, scoped, tag = 'scratch operand']
  %s0 = inlined_call_operand.vmem [shape: f32[2,8,256], index: 0, kind: input, shape index: {}]
  %s1 = inlined_call_operand.vmem [shape: f32[12,256], index: 1, kind: input, shape index: {}]
  %s2 = inlined_call_operand.vmem [shape: f32[8,72], index: 2, kind: input, shape index: {}]
  %s3 = inlined_call_operand.vmem [shape: f32[8,1], index: 3, kind: input, shape index: {}]
  %s4 = inlined_call_operand.vmem [shape: f32[8,72], index: 4, kind: input, shape index: {}]
  %s5 = inlined_call_operand.vmem [shape: f32[8,1], index: 5, kind: input, shape index: {}]
  %s6 = inlined_call_operand.vmem [shape: f32[8,72], index: 6, kind: input, shape index: {}]
  %s7 = inlined_call_operand.vmem [shape: f32[8,1], index: 7, kind: input, shape index: {}]
  %s8 = inlined_call_operand.vmem [shape: f32[16,9], index: 8, kind: input, shape index: {}]
  %s9 = inlined_call_operand.vmem [shape: f32[16,1], index: 9, kind: input, shape index: {}]
  %s10 = inlined_call_operand.vmem [shape: f32[8,16], index: 10, kind: input, shape index: {}]
  %s11 = inlined_call_operand.vmem [shape: f32[8,1], index: 11, kind: input, shape index: {}]
  %s12 = inlined_call_operand.vmem [shape: f32[24,9], index: 12, kind: input, shape index: {}]
  %s13 = inlined_call_operand.vmem [shape: f32[24,1], index: 13, kind: input, shape index: {}]
  %s14 = inlined_call_operand.vmem [shape: f32[8,24], index: 14, kind: input, shape index: {}]
  %s15 = inlined_call_operand.vmem [shape: f32[8,1], index: 15, kind: input, shape index: {}]
  %s16 = inlined_call_operand.vmem [shape: f32[32,9], index: 16, kind: input, shape index: {}]
  %s17 = inlined_call_operand.vmem [shape: f32[32,1], index: 17, kind: input, shape index: {}]
  %s18 = inlined_call_operand.vmem [shape: f32[8,32], index: 18, kind: input, shape index: {}]
  %s19 = inlined_call_operand.vmem [shape: f32[8,1], index: 19, kind: input, shape index: {}]
  %s20 = inlined_call_operand.vmem [shape: f32[8,8], index: 20, kind: input, shape index: {}]
  %s21 = inlined_call_operand.vmem [shape: f32[8,1], index: 21, kind: input, shape index: {}]
  %s22 = inlined_call_operand.vmem [shape: f32[2,8,256], index: 22, kind: output, shape index: {}]
  %s23 = sld [smem:[#allocation0]]
  $region121: #{dila_forward.1} parent=0
    _
  %s25 = ssub.s32 1, %s23
  %s26 = scalar_select 0, %s25, %s23
  loop: start=0, step=1, limit=4
  $region2: #{dila_forward.1} parent=0 // loop_pre_header
    _
  $region3: #{dila_forward.1} parent=0 // loop_header
    %s28 = sphi 0, %s32
    %p29 = scmp.ge.s32.totalorder %s28, 4
    %s38 = sphi 0, %s40
    %s41 = sphi 0, %s38
    %s42 = sphi 0, %s41
    %s58 = sphi 0, %s42
    %s62 = sphi 0, %s62
    %s64 = sphi 0, %s62
    %s65 = sphi 0, %s64
    %s79 = sphi 0, %s65
    %s83 = sphi 0, %s83
    %s85 = sphi 0, %s83
    %s86 = sphi 0, %s85
    %s100 = sphi 0, %s86
    %s104 = sphi 0, %s104
    %s106 = sphi 0, %s104
    %s107 = sphi 0, %s106
    %s121 = sphi 0, %s107
    %s125 = sphi 0, %s125
    %s127 = sphi 0, %s125
    %s128 = sphi 0, %s127
    %s142 = sphi 0, %s128
    %s146 = sphi 0, %s146
    %s148 = sphi 0, %s146
    %s149 = sphi 0, %s148
    %s163 = sphi 0, %s149
    %s167 = sphi 0, %s167
    %s169 = sphi 0, %s167
    %s170 = sphi 0, %s169
    %s184 = sphi 0, %s170
    %s188 = sphi 0, %s188
    %s190 = sphi 0, %s188
    %s191 = sphi 0, %s190
    %s205 = sphi 0, %s191
    %s209 = sphi 0, %s209
    %s211 = sphi 0, %s209
    %s212 = sphi 0, %s211
    %s226 = sphi 0, %s212
    %s230 = sphi 0, %s230
    %s232 = sphi 0, %s230
    %s233 = sphi 0, %s232
    %s247 = sphi 0, %s233
    %s251 = sphi 0, %s251
    %s253 = sphi 0, %s251
    %s254 = sphi 0, %s253
    %s268 = sphi 0, %s254
    %s272 = sphi 0, %s272
    %s274 = sphi 0, %s272
    %s275 = sphi 0, %s274
    %s289 = sphi 0, %s275
    %s293 = sphi 0, %s293
    %s295 = sphi 0, %s293
    %s296 = sphi 0, %s295
    %s310 = sphi 0, %s296
    %s314 = sphi 0, %s314
    %s316 = sphi 0, %s314
    %s317 = sphi 0, %s316
    %s331 = sphi 0, %s317
    %s335 = sphi 0, %s335
    %s337 = sphi 0, %s335
    %s338 = sphi 0, %s337
    %s352 = sphi 0, %s338
    %s356 = sphi 0, %s356
    %s358 = sphi 0, %s356
    %s359 = sphi 0, %s358
    %s373 = sphi 0, %s359
    %s377 = sphi 0, %s377
    %s379 = sphi 0, %s377
    %s380 = sphi 0, %s379
    %s394 = sphi 0, %s380
    %s398 = sphi 0, %s398
    %s400 = sphi 0, %s398
    %s401 = sphi 0, %s400
    %s415 = sphi 0, %s401
    %s419 = sphi 0, %s419
    %s421 = sphi 0, %s419
    %s422 = sphi 0, %s421
    %s436 = sphi 0, %s422
    %s440 = sphi 0, %s440
    %s442 = sphi 0, %s440
    %s443 = sphi 0, %s442
    %s457 = sphi 0, %s443
    %s461 = sphi 0, %s461
    %s463 = sphi 0, %s461
    %s464 = sphi 0, %s463
    %s478 = sphi 0, %s464
    %s482 = sphi 0, %s482
    %s484 = sphi 0, %s482
    %s485 = sphi 0, %s484
    %s499 = sphi 0, %s485
    %s505 = sphi 0, %s507
    %s508 = sphi 0, %s505
    %s509 = sphi 0, %s508
    %s525 = sphi 0, %s509
  $region4: #{dila_forward.1} parent=0 // loop_header_branch
    %31 = sbr.rel (%p29) target = $region8
  $region5: #{dila_forward.1} parent=0 // loop_body
    %s33 = ssub.s32 %s28, 1
    %s34 = ssub.s32 %s28, 2
    %s35 = sadd.s32 %s28, 1
    %s36 = ssub.s32 %s28, %s35
    %p37 = scmp.eq.s32.totalorder %s36, 0
    %s39 = sadd.s32 %s38, 1
    %s40 = scalar_select %p37, %s38, %s39
    %p43 = pneg %p37
    %p44 = scmp.eq.s32.totalorder %s28, 1
    %p45 = por %p43, %p44
    %p46 = scmp.ne.s32.totalorder %s38, %s41
    %p47 = scmp.eq.s32.totalorder %s28, 0
    %p48 = por %p46, %p47
    %p49 = scmp.ne.s32.totalorder %s38, %s41
    %p50 = scmp.eq.s32.totalorder %s33, 1
    %p51 = por %p49, %p50
    %p52 = scmp.ne.s32.totalorder %s41, %s42
    %p53 = scmp.eq.s32.totalorder %s33, 0
    %p54 = por %p52, %p53
    %p55 = scmp.ne.s32.totalorder %s41, %s42
    %p56 = scmp.eq.s32.totalorder %s34, 1
    %p57 = por %p55, %p56
    %p59 = scmp.ne.s32.totalorder %s42, %s58
    %p60 = scmp.eq.s32.totalorder %s34, 0
    %p61 = por %p59, %p60
    %s63 = sadd.s32 %s62, 1
    %p66 = scmp.eq.s32.totalorder %s28, 1
    %p67 = scmp.ne.s32.totalorder %s62, %s64
    %p68 = scmp.eq.s32.totalorder %s28, 0
    %p69 = por %p67, %p68
    %p70 = scmp.ne.s32.totalorder %s62, %s64
    %p71 = scmp.eq.s32.totalorder %s33, 1
    %p72 = por %p70, %p71
    %p73 = scmp.ne.s32.totalorder %s64, %s65
    %p74 = scmp.eq.s32.totalorder %s33, 0
    %p75 = por %p73, %p74
    %p76 = scmp.ne.s32.totalorder %s64, %s65
    %p77 = scmp.eq.s32.totalorder %s34, 1
    %p78 = por %p76, %p77
    %p80 = scmp.ne.s32.totalorder %s65, %s79
    %p81 = scmp.eq.s32.totalorder %s34, 0
    %p82 = por %p80, %p81
    %s84 = sadd.s32 %s83, 1
    %p87 = scmp.eq.s32.totalorder %s28, 1
    %p88 = scmp.ne.s32.totalorder %s83, %s85
    %p89 = scmp.eq.s32.totalorder %s28, 0
    %p90 = por %p88, %p89
    %p91 = scmp.ne.s32.totalorder %s83, %s85
    %p92 = scmp.eq.s32.totalorder %s33, 1
    %p93 = por %p91, %p92
    %p94 = scmp.ne.s32.totalorder %s85, %s86
    %p95 = scmp.eq.s32.totalorder %s33, 0
    %p96 = por %p94, %p95
    %p97 = scmp.ne.s32.totalorder %s85, %s86
    %p98 = scmp.eq.s32.totalorder %s34, 1
    %p99 = por %p97, %p98
    %p101 = scmp.ne.s32.totalorder %s86, %s100
    %p102 = scmp.eq.s32.totalorder %s34, 0
    %p103 = por %p101, %p102
    %s105 = sadd.s32 %s104, 1
    %p108 = scmp.eq.s32.totalorder %s28, 1
    %p109 = scmp.ne.s32.totalorder %s104, %s106
    %p110 = scmp.eq.s32.totalorder %s28, 0
    %p111 = por %p109, %p110
    %p112 = scmp.ne.s32.totalorder %s104, %s106
    %p113 = scmp.eq.s32.totalorder %s33, 1
    %p114 = por %p112, %p113
    %p115 = scmp.ne.s32.totalorder %s106, %s107
    %p116 = scmp.eq.s32.totalorder %s33, 0
    %p117 = por %p115, %p116
    %p118 = scmp.ne.s32.totalorder %s106, %s107
    %p119 = scmp.eq.s32.totalorder %s34, 1
    %p120 = por %p118, %p119
    %p122 = scmp.ne.s32.totalorder %s107, %s121
    %p123 = scmp.eq.s32.totalorder %s34, 0
    %p124 = por %p122, %p123
    %s126 = sadd.s32 %s125, 1
    %p129 = scmp.eq.s32.totalorder %s28, 1
    %p130 = scmp.ne.s32.totalorder %s125, %s127
    %p131 = scmp.eq.s32.totalorder %s28, 0
    %p132 = por %p130, %p131
    %p133 = scmp.ne.s32.totalorder %s125, %s127
    %p134 = scmp.eq.s32.totalorder %s33, 1
    %p135 = por %p133, %p134
    %p136 = scmp.ne.s32.totalorder %s127, %s128
    %p137 = scmp.eq.s32.totalorder %s33, 0
    %p138 = por %p136, %p137
    %p139 = scmp.ne.s32.totalorder %s127, %s128
    %p140 = scmp.eq.s32.totalorder %s34, 1
    %p141 = por %p139, %p140
    %p143 = scmp.ne.s32.totalorder %s128, %s142
    %p144 = scmp.eq.s32.totalorder %s34, 0
    %p145 = por %p143, %p144
    %s147 = sadd.s32 %s146, 1
    %p150 = scmp.eq.s32.totalorder %s28, 1
    %p151 = scmp.ne.s32.totalorder %s146, %s148
    %p152 = scmp.eq.s32.totalorder %s28, 0
    %p153 = por %p151, %p152
    %p154 = scmp.ne.s32.totalorder %s146, %s148
    %p155 = scmp.eq.s32.totalorder %s33, 1
    %p156 = por %p154, %p155
    %p157 = scmp.ne.s32.totalorder %s148, %s149
    %p158 = scmp.eq.s32.totalorder %s33, 0
    %p159 = por %p157, %p158
    %p160 = scmp.ne.s32.totalorder %s148, %s149
    %p161 = scmp.eq.s32.totalorder %s34, 1
    %p162 = por %p160, %p161
    %p164 = scmp.ne.s32.totalorder %s149, %s163
    %p165 = scmp.eq.s32.totalorder %s34, 0
    %p166 = por %p164, %p165
    %s168 = sadd.s32 %s167, 1
    %p171 = scmp.eq.s32.totalorder %s28, 1
    %p172 = scmp.ne.s32.totalorder %s167, %s169
    %p173 = scmp.eq.s32.totalorder %s28, 0
    %p174 = por %p172, %p173
    %p175 = scmp.ne.s32.totalorder %s167, %s169
    %p176 = scmp.eq.s32.totalorder %s33, 1
    %p177 = por %p175, %p176
    %p178 = scmp.ne.s32.totalorder %s169, %s170
    %p179 = scmp.eq.s32.totalorder %s33, 0
    %p180 = por %p178, %p179
    %p181 = scmp.ne.s32.totalorder %s169, %s170
    %p182 = scmp.eq.s32.totalorder %s34, 1
    %p183 = por %p181, %p182
    %p185 = scmp.ne.s32.totalorder %s170, %s184
    %p186 = scmp.eq.s32.totalorder %s34, 0
    %p187 = por %p185, %p186
    %s189 = sadd.s32 %s188, 1
    %p192 = scmp.eq.s32.totalorder %s28, 1
    %p193 = scmp.ne.s32.totalorder %s188, %s190
    %p194 = scmp.eq.s32.totalorder %s28, 0
    %p195 = por %p193, %p194
    %p196 = scmp.ne.s32.totalorder %s188, %s190
    %p197 = scmp.eq.s32.totalorder %s33, 1
    %p198 = por %p196, %p197
    %p199 = scmp.ne.s32.totalorder %s190, %s191
    %p200 = scmp.eq.s32.totalorder %s33, 0
    %p201 = por %p199, %p200
    %p202 = scmp.ne.s32.totalorder %s190, %s191
    %p203 = scmp.eq.s32.totalorder %s34, 1
    %p204 = por %p202, %p203
    %p206 = scmp.ne.s32.totalorder %s191, %s205
    %p207 = scmp.eq.s32.totalorder %s34, 0
    %p208 = por %p206, %p207
    %s210 = sadd.s32 %s209, 1
    %p213 = scmp.eq.s32.totalorder %s28, 1
    %p214 = scmp.ne.s32.totalorder %s209, %s211
    %p215 = scmp.eq.s32.totalorder %s28, 0
    %p216 = por %p214, %p215
    %p217 = scmp.ne.s32.totalorder %s209, %s211
    %p218 = scmp.eq.s32.totalorder %s33, 1
    %p219 = por %p217, %p218
    %p220 = scmp.ne.s32.totalorder %s211, %s212
    %p221 = scmp.eq.s32.totalorder %s33, 0
    %p222 = por %p220, %p221
    %p223 = scmp.ne.s32.totalorder %s211, %s212
    %p224 = scmp.eq.s32.totalorder %s34, 1
    %p225 = por %p223, %p224
    %p227 = scmp.ne.s32.totalorder %s212, %s226
    %p228 = scmp.eq.s32.totalorder %s34, 0
    %p229 = por %p227, %p228
    %s231 = sadd.s32 %s230, 1
    %p234 = scmp.eq.s32.totalorder %s28, 1
    %p235 = scmp.ne.s32.totalorder %s230, %s232
    %p236 = scmp.eq.s32.totalorder %s28, 0
    %p237 = por %p235, %p236
    %p238 = scmp.ne.s32.totalorder %s230, %s232
    %p239 = scmp.eq.s32.totalorder %s33, 1
    %p240 = por %p238, %p239
    %p241 = scmp.ne.s32.totalorder %s232, %s233
    %p242 = scmp.eq.s32.totalorder %s33, 0
    %p243 = por %p241, %p242
    %p244 = scmp.ne.s32.totalorder %s232, %s233
    %p245 = scmp.eq.s32.totalorder %s34, 1
    %p246 = por %p244, %p245
    %p248 = scmp.ne.s32.totalorder %s233, %s247
    %p249 = scmp.eq.s32.totalorder %s34, 0
    %p250 = por %p248, %p249
    %s252 = sadd.s32 %s251, 1
    %p255 = scmp.eq.s32.totalorder %s28, 1
    %p256 = scmp.ne.s32.totalorder %s251, %s253
    %p257 = scmp.eq.s32.totalorder %s28, 0
    %p258 = por %p256, %p257
    %p259 = scmp.ne.s32.totalorder %s251, %s253
    %p260 = scmp.eq.s32.totalorder %s33, 1
    %p261 = por %p259, %p260
    %p262 = scmp.ne.s32.totalorder %s253, %s254
    %p263 = scmp.eq.s32.totalorder %s33, 0
    %p264 = por %p262, %p263
    %p265 = scmp.ne.s32.totalorder %s253, %s254
    %p266 = scmp.eq.s32.totalorder %s34, 1
    %p267 = por %p265, %p266
    %p269 = scmp.ne.s32.totalorder %s254, %s268
    %p270 = scmp.eq.s32.totalorder %s34, 0
    %p271 = por %p269, %p270
    %s273 = sadd.s32 %s272, 1
    %p276 = scmp.eq.s32.totalorder %s28, 1
    %p277 = scmp.ne.s32.totalorder %s272, %s274
    %p278 = scmp.eq.s32.totalorder %s28, 0
    %p279 = por %p277, %p278
    %p280 = scmp.ne.s32.totalorder %s272, %s274
    %p281 = scmp.eq.s32.totalorder %s33, 1
    %p282 = por %p280, %p281
    %p283 = scmp.ne.s32.totalorder %s274, %s275
    %p284 = scmp.eq.s32.totalorder %s33, 0
    %p285 = por %p283, %p284
    %p286 = scmp.ne.s32.totalorder %s274, %s275
    %p287 = scmp.eq.s32.totalorder %s34, 1
    %p288 = por %p286, %p287
    %p290 = scmp.ne.s32.totalorder %s275, %s289
    %p291 = scmp.eq.s32.totalorder %s34, 0
    %p292 = por %p290, %p291
    %s294 = sadd.s32 %s293, 1
    %p297 = scmp.eq.s32.totalorder %s28, 1
    %p298 = scmp.ne.s32.totalorder %s293, %s295
    %p299 = scmp.eq.s32.totalorder %s28, 0
    %p300 = por %p298, %p299
    %p301 = scmp.ne.s32.totalorder %s293, %s295
    %p302 = scmp.eq.s32.totalorder %s33, 1
    %p303 = por %p301, %p302
    %p304 = scmp.ne.s32.totalorder %s295, %s296
    %p305 = scmp.eq.s32.totalorder %s33, 0
    %p306 = por %p304, %p305
    %p307 = scmp.ne.s32.totalorder %s295, %s296
    %p308 = scmp.eq.s32.totalorder %s34, 1
    %p309 = por %p307, %p308
    %p311 = scmp.ne.s32.totalorder %s296, %s310
    %p312 = scmp.eq.s32.totalorder %s34, 0
    %p313 = por %p311, %p312
    %s315 = sadd.s32 %s314, 1
    %p318 = scmp.eq.s32.totalorder %s28, 1
    %p319 = scmp.ne.s32.totalorder %s314, %s316
    %p320 = scmp.eq.s32.totalorder %s28, 0
    %p321 = por %p319, %p320
    %p322 = scmp.ne.s32.totalorder %s314, %s316
    %p323 = scmp.eq.s32.totalorder %s33, 1
    %p324 = por %p322, %p323
    %p325 = scmp.ne.s32.totalorder %s316, %s317
    %p326 = scmp.eq.s32.totalorder %s33, 0
    %p327 = por %p325, %p326
    %p328 = scmp.ne.s32.totalorder %s316, %s317
    %p329 = scmp.eq.s32.totalorder %s34, 1
    %p330 = por %p328, %p329
    %p332 = scmp.ne.s32.totalorder %s317, %s331
    %p333 = scmp.eq.s32.totalorder %s34, 0
    %p334 = por %p332, %p333
    %s336 = sadd.s32 %s335, 1
    %p339 = scmp.eq.s32.totalorder %s28, 1
    %p340 = scmp.ne.s32.totalorder %s335, %s337
    %p341 = scmp.eq.s32.totalorder %s28, 0
    %p342 = por %p340, %p341
    %p343 = scmp.ne.s32.totalorder %s335, %s337
    %p344 = scmp.eq.s32.totalorder %s33, 1
    %p345 = por %p343, %p344
    %p346 = scmp.ne.s32.totalorder %s337, %s338
    %p347 = scmp.eq.s32.totalorder %s33, 0
    %p348 = por %p346, %p347
    %p349 = scmp.ne.s32.totalorder %s337, %s338
    %p350 = scmp.eq.s32.totalorder %s34, 1
    %p351 = por %p349, %p350
    %p353 = scmp.ne.s32.totalorder %s338, %s352
    %p354 = scmp.eq.s32.totalorder %s34, 0
    %p355 = por %p353, %p354
    %s357 = sadd.s32 %s356, 1
    %p360 = scmp.eq.s32.totalorder %s28, 1
    %p361 = scmp.ne.s32.totalorder %s356, %s358
    %p362 = scmp.eq.s32.totalorder %s28, 0
    %p363 = por %p361, %p362
    %p364 = scmp.ne.s32.totalorder %s356, %s358
    %p365 = scmp.eq.s32.totalorder %s33, 1
    %p366 = por %p364, %p365
    %p367 = scmp.ne.s32.totalorder %s358, %s359
    %p368 = scmp.eq.s32.totalorder %s33, 0
    %p369 = por %p367, %p368
    %p370 = scmp.ne.s32.totalorder %s358, %s359
    %p371 = scmp.eq.s32.totalorder %s34, 1
    %p372 = por %p370, %p371
    %p374 = scmp.ne.s32.totalorder %s359, %s373
    %p375 = scmp.eq.s32.totalorder %s34, 0
    %p376 = por %p374, %p375
    %s378 = sadd.s32 %s377, 1
    %p381 = scmp.eq.s32.totalorder %s28, 1
    %p382 = scmp.ne.s32.totalorder %s377, %s379
    %p383 = scmp.eq.s32.totalorder %s28, 0
    %p384 = por %p382, %p383
    %p385 = scmp.ne.s32.totalorder %s377, %s379
    %p386 = scmp.eq.s32.totalorder %s33, 1
    %p387 = por %p385, %p386
    %p388 = scmp.ne.s32.totalorder %s379, %s380
    %p389 = scmp.eq.s32.totalorder %s33, 0
    %p390 = por %p388, %p389
    %p391 = scmp.ne.s32.totalorder %s379, %s380
    %p392 = scmp.eq.s32.totalorder %s34, 1
    %p393 = por %p391, %p392
    %p395 = scmp.ne.s32.totalorder %s380, %s394
    %p396 = scmp.eq.s32.totalorder %s34, 0
    %p397 = por %p395, %p396
    %s399 = sadd.s32 %s398, 1
    %p402 = scmp.eq.s32.totalorder %s28, 1
    %p403 = scmp.ne.s32.totalorder %s398, %s400
    %p404 = scmp.eq.s32.totalorder %s28, 0
    %p405 = por %p403, %p404
    %p406 = scmp.ne.s32.totalorder %s398, %s400
    %p407 = scmp.eq.s32.totalorder %s33, 1
    %p408 = por %p406, %p407
    %p409 = scmp.ne.s32.totalorder %s400, %s401
    %p410 = scmp.eq.s32.totalorder %s33, 0
    %p411 = por %p409, %p410
    %p412 = scmp.ne.s32.totalorder %s400, %s401
    %p413 = scmp.eq.s32.totalorder %s34, 1
    %p414 = por %p412, %p413
    %p416 = scmp.ne.s32.totalorder %s401, %s415
    %p417 = scmp.eq.s32.totalorder %s34, 0
    %p418 = por %p416, %p417
    %s420 = sadd.s32 %s419, 1
    %p423 = scmp.eq.s32.totalorder %s28, 1
    %p424 = scmp.ne.s32.totalorder %s419, %s421
    %p425 = scmp.eq.s32.totalorder %s28, 0
    %p426 = por %p424, %p425
    %p427 = scmp.ne.s32.totalorder %s419, %s421
    %p428 = scmp.eq.s32.totalorder %s33, 1
    %p429 = por %p427, %p428
    %p430 = scmp.ne.s32.totalorder %s421, %s422
    %p431 = scmp.eq.s32.totalorder %s33, 0
    %p432 = por %p430, %p431
    %p433 = scmp.ne.s32.totalorder %s421, %s422
    %p434 = scmp.eq.s32.totalorder %s34, 1
    %p435 = por %p433, %p434
    %p437 = scmp.ne.s32.totalorder %s422, %s436
    %p438 = scmp.eq.s32.totalorder %s34, 0
    %p439 = por %p437, %p438
    %s441 = sadd.s32 %s440, 1
    %p444 = scmp.eq.s32.totalorder %s28, 1
    %p445 = scmp.ne.s32.totalorder %s440, %s442
    %p446 = scmp.eq.s32.totalorder %s28, 0
    %p447 = por %p445, %p446
    %p448 = scmp.ne.s32.totalorder %s440, %s442
    %p449 = scmp.eq.s32.totalorder %s33, 1
    %p450 = por %p448, %p449
    %p451 = scmp.ne.s32.totalorder %s442, %s443
    %p452 = scmp.eq.s32.totalorder %s33, 0
    %p453 = por %p451, %p452
    %p454 = scmp.ne.s32.totalorder %s442, %s443
    %p455 = scmp.eq.s32.totalorder %s34, 1
    %p456 = por %p454, %p455
    %p458 = scmp.ne.s32.totalorder %s443, %s457
    %p459 = scmp.eq.s32.totalorder %s34, 0
    %p460 = por %p458, %p459
    %s462 = sadd.s32 %s461, 1
    %p465 = scmp.eq.s32.totalorder %s28, 1
    %p466 = scmp.ne.s32.totalorder %s461, %s463
    %p467 = scmp.eq.s32.totalorder %s28, 0
    %p468 = por %p466, %p467
    %p469 = scmp.ne.s32.totalorder %s461, %s463
    %p470 = scmp.eq.s32.totalorder %s33, 1
    %p471 = por %p469, %p470
    %p472 = scmp.ne.s32.totalorder %s463, %s464
    %p473 = scmp.eq.s32.totalorder %s33, 0
    %p474 = por %p472, %p473
    %p475 = scmp.ne.s32.totalorder %s463, %s464
    %p476 = scmp.eq.s32.totalorder %s34, 1
    %p477 = por %p475, %p476
    %p479 = scmp.ne.s32.totalorder %s464, %s478
    %p480 = scmp.eq.s32.totalorder %s34, 0
    %p481 = por %p479, %p480
    %s483 = sadd.s32 %s482, 1
    %p486 = scmp.eq.s32.totalorder %s28, 1
    %p487 = scmp.ne.s32.totalorder %s482, %s484
    %p488 = scmp.eq.s32.totalorder %s28, 0
    %p489 = por %p487, %p488
    %p490 = scmp.ne.s32.totalorder %s482, %s484
    %p491 = scmp.eq.s32.totalorder %s33, 1
    %p492 = por %p490, %p491
    %p493 = scmp.ne.s32.totalorder %s484, %s485
    %p494 = scmp.eq.s32.totalorder %s33, 0
    %p495 = por %p493, %p494
    %p496 = scmp.ne.s32.totalorder %s484, %s485
    %p497 = scmp.eq.s32.totalorder %s34, 1
    %p498 = por %p496, %p497
    %p500 = scmp.ne.s32.totalorder %s485, %s499
    %p501 = scmp.eq.s32.totalorder %s34, 0
    %p502 = por %p500, %p501
    %s503 = ssub.s32 %s28, %s35
    %p504 = scmp.eq.s32.totalorder %s503, 0
    %s506 = sadd.s32 %s505, 1
    %s507 = scalar_select %p504, %s505, %s506
    %p510 = pneg %p504
    %p511 = scmp.eq.s32.totalorder %s28, 1
    %p512 = por %p510, %p511
    %p513 = scmp.ne.s32.totalorder %s505, %s508
    %p514 = scmp.eq.s32.totalorder %s28, 0
    %p515 = por %p513, %p514
    %p516 = scmp.ne.s32.totalorder %s505, %s508
    %p517 = scmp.eq.s32.totalorder %s33, 1
    %p518 = por %p516, %p517
    %p519 = scmp.ne.s32.totalorder %s508, %s509
    %p520 = scmp.eq.s32.totalorder %s33, 0
    %p521 = por %p519, %p520
    %p522 = scmp.ne.s32.totalorder %s508, %s509
    %p523 = scmp.eq.s32.totalorder %s34, 1
    %p524 = por %p522, %p523
    %p526 = scmp.ne.s32.totalorder %s509, %s525
    %p527 = scmp.eq.s32.totalorder %s34, 0
    %p528 = por %p526, %p527
    %p529 = scmp.le.s32.totalorder 1, %s28
    %p530 = scmp.lt.s32.totalorder %s28, 3
    %p531 = pnand %p529, %p530
    %p532 = pneg %p531
    // Predicated region
    $region9: #{dila_forward.1} parent=5 // pred_check
      _
    $region10: #{dila_forward.1} parent=5 // pred_check_branch
      %534 = sbr.rel (%p531) target = $region12
    $region11: #{dila_forward.1} parent=5 // pred_region
      %s535 = ssub.s32 %s28, 1
      // Predicated region
      $region13: #{dila_forward.1} parent=11 // pred_check
        %p536 = pneg %p75
      $region14: #{dila_forward.1} parent=11 // pred_check_branch
        %538 = sbr.rel (%p536) target = $region16
      $region15: #{dila_forward.1} parent=11 // pred_region
        _
      $region16: #{dila_forward.1} parent=11 // pred_fallthru
        _
      // Predicated region
      $region17: #{dila_forward.1} parent=11 // pred_check
        %p539 = pneg %p96
      $region18: #{dila_forward.1} parent=11 // pred_check_branch
        %541 = sbr.rel (%p539) target = $region20
      $region19: #{dila_forward.1} parent=11 // pred_region
        _
      $region20: #{dila_forward.1} parent=11 // pred_fallthru
        _
      // Predicated region
      $region21: #{dila_forward.1} parent=11 // pred_check
        %p542 = pneg %p117
      $region22: #{dila_forward.1} parent=11 // pred_check_branch
        %544 = sbr.rel (%p542) target = $region24
      $region23: #{dila_forward.1} parent=11 // pred_region
        _
      $region24: #{dila_forward.1} parent=11 // pred_fallthru
        _
      // Predicated region
      $region25: #{dila_forward.1} parent=11 // pred_check
        %p545 = pneg %p138
      $region26: #{dila_forward.1} parent=11 // pred_check_branch
        %547 = sbr.rel (%p545) target = $region28
      $region27: #{dila_forward.1} parent=11 // pred_region
        _
      $region28: #{dila_forward.1} parent=11 // pred_fallthru
        _
      // Predicated region
      $region29: #{dila_forward.1} parent=11 // pred_check
        %p548 = pneg %p159
      $region30: #{dila_forward.1} parent=11 // pred_check_branch
        %550 = sbr.rel (%p548) target = $region32
      $region31: #{dila_forward.1} parent=11 // pred_region
        _
      $region32: #{dila_forward.1} parent=11 // pred_fallthru
        _
      // Predicated region
      $region33: #{dila_forward.1} parent=11 // pred_check
        %p551 = pneg %p180
      $region34: #{dila_forward.1} parent=11 // pred_check_branch
        %553 = sbr.rel (%p551) target = $region36
      $region35: #{dila_forward.1} parent=11 // pred_region
        _
      $region36: #{dila_forward.1} parent=11 // pred_fallthru
        _
      // Predicated region
      $region37: #{dila_forward.1} parent=11 // pred_check
        %p554 = pneg %p201
      $region38: #{dila_forward.1} parent=11 // pred_check_branch
        %556 = sbr.rel (%p554) target = $region40
      $region39: #{dila_forward.1} parent=11 // pred_region
        _
      $region40: #{dila_forward.1} parent=11 // pred_fallthru
        _
      // Predicated region
      $region41: #{dila_forward.1} parent=11 // pred_check
        %p557 = pneg %p222
      $region42: #{dila_forward.1} parent=11 // pred_check_branch
        %559 = sbr.rel (%p557) target = $region44
      $region43: #{dila_forward.1} parent=11 // pred_region
        _
      $region44: #{dila_forward.1} parent=11 // pred_fallthru
        _
      // Predicated region
      $region45: #{dila_forward.1} parent=11 // pred_check
        %p560 = pneg %p243
      $region46: #{dila_forward.1} parent=11 // pred_check_branch
        %562 = sbr.rel (%p560) target = $region48
      $region47: #{dila_forward.1} parent=11 // pred_region
        _
      $region48: #{dila_forward.1} parent=11 // pred_fallthru
        _
      // Predicated region
      $region49: #{dila_forward.1} parent=11 // pred_check
        %p563 = pneg %p264
      $region50: #{dila_forward.1} parent=11 // pred_check_branch
        %565 = sbr.rel (%p563) target = $region52
      $region51: #{dila_forward.1} parent=11 // pred_region
        _
      $region52: #{dila_forward.1} parent=11 // pred_fallthru
        _
      // Predicated region
      $region53: #{dila_forward.1} parent=11 // pred_check
        %p566 = pneg %p285
      $region54: #{dila_forward.1} parent=11 // pred_check_branch
        %568 = sbr.rel (%p566) target = $region56
      $region55: #{dila_forward.1} parent=11 // pred_region
        _
      $region56: #{dila_forward.1} parent=11 // pred_fallthru
        _
      // Predicated region
      $region57: #{dila_forward.1} parent=11 // pred_check
        %p569 = pneg %p306
      $region58: #{dila_forward.1} parent=11 // pred_check_branch
        %571 = sbr.rel (%p569) target = $region60
      $region59: #{dila_forward.1} parent=11 // pred_region
        _
      $region60: #{dila_forward.1} parent=11 // pred_fallthru
        _
      // Predicated region
      $region61: #{dila_forward.1} parent=11 // pred_check
        %p572 = pneg %p327
      $region62: #{dila_forward.1} parent=11 // pred_check_branch
        %574 = sbr.rel (%p572) target = $region64
      $region63: #{dila_forward.1} parent=11 // pred_region
        _
      $region64: #{dila_forward.1} parent=11 // pred_fallthru
        _
      // Predicated region
      $region65: #{dila_forward.1} parent=11 // pred_check
        %p575 = pneg %p348
      $region66: #{dila_forward.1} parent=11 // pred_check_branch
        %577 = sbr.rel (%p575) target = $region68
      $region67: #{dila_forward.1} parent=11 // pred_region
        _
      $region68: #{dila_forward.1} parent=11 // pred_fallthru
        _
      // Predicated region
      $region69: #{dila_forward.1} parent=11 // pred_check
        %p578 = pneg %p369
      $region70: #{dila_forward.1} parent=11 // pred_check_branch
        %580 = sbr.rel (%p578) target = $region72
      $region71: #{dila_forward.1} parent=11 // pred_region
        _
      $region72: #{dila_forward.1} parent=11 // pred_fallthru
        _
      // Predicated region
      $region73: #{dila_forward.1} parent=11 // pred_check
        %p581 = pneg %p390
      $region74: #{dila_forward.1} parent=11 // pred_check_branch
        %583 = sbr.rel (%p581) target = $region76
      $region75: #{dila_forward.1} parent=11 // pred_region
        _
      $region76: #{dila_forward.1} parent=11 // pred_fallthru
        _
      // Predicated region
      $region77: #{dila_forward.1} parent=11 // pred_check
        %p584 = pneg %p411
      $region78: #{dila_forward.1} parent=11 // pred_check_branch
        %586 = sbr.rel (%p584) target = $region80
      $region79: #{dila_forward.1} parent=11 // pred_region
        _
      $region80: #{dila_forward.1} parent=11 // pred_fallthru
        _
      // Predicated region
      $region81: #{dila_forward.1} parent=11 // pred_check
        %p587 = pneg %p432
      $region82: #{dila_forward.1} parent=11 // pred_check_branch
        %589 = sbr.rel (%p587) target = $region84
      $region83: #{dila_forward.1} parent=11 // pred_region
        _
      $region84: #{dila_forward.1} parent=11 // pred_fallthru
        _
      // Predicated region
      $region85: #{dila_forward.1} parent=11 // pred_check
        %p590 = pneg %p453
      $region86: #{dila_forward.1} parent=11 // pred_check_branch
        %592 = sbr.rel (%p590) target = $region88
      $region87: #{dila_forward.1} parent=11 // pred_region
        _
      $region88: #{dila_forward.1} parent=11 // pred_fallthru
        _
      // Predicated region
      $region89: #{dila_forward.1} parent=11 // pred_check
        %p593 = pneg %p474
      $region90: #{dila_forward.1} parent=11 // pred_check_branch
        %595 = sbr.rel (%p593) target = $region92
      $region91: #{dila_forward.1} parent=11 // pred_region
        _
      $region92: #{dila_forward.1} parent=11 // pred_fallthru
        _
      // Predicated region
      $region93: #{dila_forward.1} parent=11 // pred_check
        %p596 = pneg %p495
      $region94: #{dila_forward.1} parent=11 // pred_check_branch
        %598 = sbr.rel (%p596) target = $region96
      $region95: #{dila_forward.1} parent=11 // pred_region
        _
      $region96: #{dila_forward.1} parent=11 // pred_fallthru
        _
    $region12: #{dila_forward.1} parent=5 // pred_fallthru
      _
    %p599 = scmp.lt.s32.totalorder %s28, 2
    // Predicated region
    $region97: #{dila_forward.1} parent=5 // pred_check
      %p600 = pneg %p599
    $region98: #{dila_forward.1} parent=5 // pred_check_branch
      %602 = sbr.rel (%p600) target = $region100
    $region99: #{dila_forward.1} parent=5 // pred_region
      // Predicated region
      $region101: #{dila_forward.1} parent=99 // pred_check
        %p603 = pneg %p48
      $region102: #{dila_forward.1} parent=99 // pred_check_branch
        %605 = sbr.rel (%p603) target = $region104
      $region103: #{dila_forward.1} parent=99 // pred_region
        %p606 = scmp.lt.s32.totalorder %s28, 1
        %s607 = scalar_select %p606, %s28, 1
        %s608 = smul.addr %s607, 2
        %s609 = smul.addr %s608, 8
        %s610 = scalar_lea.vmem %s0, %s609
      $region104: #{dila_forward.1} parent=99 // pred_fallthru
        _
    $region100: #{dila_forward.1} parent=5 // pred_fallthru
      _
    %p611 = scmp.le.s32.totalorder 1, %s28
    %p612 = scmp.lt.s32.totalorder %s28, 3
    %p613 = pnand %p611, %p612
    %p614 = pneg %p613
    // Predicated region
    $region105: #{dila_forward.1} parent=5 // pred_check
      _
    $region106: #{dila_forward.1} parent=5 // pred_check_branch
      %616 = sbr.rel (%p613) target = $region108
    $region107: #{dila_forward.1} parent=5 // pred_region
      %s617 = ssub.s32 %s28, 1
      %p618 = scmp.lt.s32.totalorder %s33, 1
      %s619 = scalar_select %p618, %s33, 1
      %s620 = smul.addr %s619, 2
      %s621 = smul.addr %s620, 8
      %s622 = scalar_lea.vmem %s0, %s621
      %p623 = pneg %p54
      %p624 = pneg %p51
      %p625 = pneg %p75
      %p626 = pneg %p72
      %p627 = pneg %p96
      %p628 = pneg %p93
      %p629 = pneg %p117
      %p630 = pneg %p114
      %p631 = pneg %p138
      %p632 = pneg %p135
      %p633 = pneg %p159
      %p634 = pneg %p156
      %p635 = pneg %p180
      %p636 = pneg %p177
      %p637 = pneg %p201
      %p638 = pneg %p198
      %p639 = pneg %p222
      %p640 = pneg %p219
      %p641 = pneg %p243
      %p642 = pneg %p240
      %p643 = pneg %p264
      %p644 = pneg %p261
      %p645 = pneg %p285
      %p646 = pneg %p282
      %p647 = pneg %p306
      %p648 = pneg %p303
      %p649 = pneg %p327
      %p650 = pneg %p324
      %p651 = pneg %p348
      %p652 = pneg %p345
      %p653 = pneg %p369
      %p654 = pneg %p366
      %p655 = pneg %p390
      %p656 = pneg %p387
      %p657 = pneg %p411
      %p658 = pneg %p408
      %p659 = pneg %p432
      %p660 = pneg %p429
      %p661 = pneg %p453
      %p662 = pneg %p450
      %p663 = pneg %p474
      %p664 = pneg %p471
      %p665 = pneg %p495
      %p666 = pneg %p492
      %p667 = pneg %p521
      %p668 = pneg %p518
      %p669 = scmp.lt.s32.totalorder %s33, 1
      %s670 = scalar_select %p669, %s33, 1
      %s671 = smul.addr %s670, 2
      %s672 = smul.addr %s671, 8
      %s673 = scalar_lea.vmem %s22, %s672
      %p674 = scmp.lt.s32.totalorder %s33, 1
      %s675 = scalar_select %p674, %s33, 1
      %s676 = smul.addr %s675, 2
      %s677 = smul.addr %s676, 8
      %s678 = scalar_lea.vmem %s0, %s677
      %p679 = scmp.lt.s32.totalorder %s33, 1
      %s680 = scalar_select %p679, %s33, 1
      %s681 = smul.addr %s680, 2
      %s682 = smul.addr %s681, 8
      %s683 = scalar_lea.vmem %s22, %s682
      %684 = vst [vmem:[#allocation2] sm:$0xff] 0.0
      %685 = vst [vmem:[#allocation2 + $0x8] sm:$0xff] 0.0
      %686 = vst [vmem:[#allocation2 + $0x10] sm:$0xff] 0.0
      %687 = vst [vmem:[#allocation2 + $0x18] sm:$0xff] 0.0
      %688 = vst [vmem:[#allocation2 + $0x20] sm:$0xff] 0.0
      %689 = vst [vmem:[#allocation2 + $0x28] sm:$0xff] 0.0
      %690 = vst [vmem:[#allocation2 + $0x30] sm:$0xff] 0.0
      %691 = vst [vmem:[#allocation2 + $0x38] sm:$0xff] 0.0
      %692 = vst [vmem:[#allocation2 + $0x40] sm:$0xff] 0.0
      %693 = vst [vmem:[#allocation2 + $0x48] sm:$0xff] 0.0
      %694 = vst [vmem:[#allocation2 + $0x50] sm:$0xff] 0.0
      %695 = vst [vmem:[#allocation2 + $0x58] sm:$0xff] 0.0
      %696 = vst [vmem:[#allocation2 + $0x60] sm:$0xff] 0.0
      %697 = vst [vmem:[#allocation2 + $0x68] sm:$0xff] 0.0
      %698 = vst [vmem:[#allocation2 + $0x70] sm:$0xff] 0.0
      %699 = vst [vmem:[#allocation2 + $0x78] sm:$0xff] 0.0
      %700 = vst [vmem:[#allocation2 + $0x80] sm:$0xff] 0.0
      %701 = vst [vmem:[#allocation2 + $0x88] sm:$0xff] 0.0
      %702 = vst [vmem:[#allocation2 + $0x90] sm:$0xff] 0.0
      %703 = vst [vmem:[#allocation2 + $0x98] sm:$0xff] 0.0
      %704 = vst [vmem:[#allocation2 + $0xa0] sm:$0xff] 0.0
      %705 = vst [vmem:[#allocation2 + $0xa8] sm:$0xff] 0.0
      %706 = vst [vmem:[#allocation2 + $0xb0] sm:$0xff] 0.0
      %707 = vst [vmem:[#allocation2 + $0xb8] sm:$0xff] 0.0
      %v708 = vld [vmem:[%s678] sm:$0xff]
      %v709 = vld [vmem:[%s678 + $0x8] sm:$0xff]
      %710 = vst [vmem:[#allocation2 + $0x10] sm:$0xff] %v708
      %711 = vst [vmem:[#allocation2 + $0x18] sm:$0xff] %v709
      %v712 = vld [vmem:[#allocation2 + $0x8] sm:$0xff]
      %v713 = vld [vmem:[#allocation2 + $0x10] sm:$0xff]
      %v714 = vld [vmem:[#allocation2 + $0x18] sm:$0xff]
      %s715 = scalar_lea.vmem %s1, 3
      %v716 = vld [vmem:[%s715] ss:$8 sm:$0x3]
      %v718 = vlaneseq
      %v719 = vshrl.u32 %v718, 7
      %v720 = vsub.s32 0, %v719
      %v721 = vrot.slane %v716, %v720
      %v722 = vlaneseq
      %v723 = vshrl.u32 %v722, 7
      %v724 = vsub.s32 1, %v723
      %v725 = vrot.slane %v716, %v724
      %726 = vrot.lane.b32.xlu0 %v721, 77
      %v727 = vpop.permute.xlu0 %726
      %728 = vrot.lane.b32.xlu0 %v725, 77
      %v729 = vpop.permute.xlu0 %728
      %vm730 = vcmask 629760
      %v731 = vsel %vm730, %v727, %v729
      %v735 = vmul.f32 %v712, %v727
      %v736 = vmul.f32 %v713, %v731
      %v737 = vmul.f32 %v714, %v729
      %741 = vrot.lane.b32.xlu0 %v735, 51
      %v742 = vpop.permute.xlu0 %741
      %743 = vrot.lane.b32.xlu0 %v736, 51
      %v744 = vpop.permute.xlu0 %743
      %745 = vrot.lane.b32.xlu0 %v737, 51
      %v746 = vpop.permute.xlu0 %745
      %vm747 = vcmask 416768
      %v748 = vsel %vm747, %v742, %v744
      %v749 = vsel %vm747, %v744, %v746
      %752 = vst [vmem:[#allocation3] sm:$0xff] %v748
      %753 = vst [vmem:[#allocation3 + $0x8] sm:$0xff] %v749
      %v754 = vld [vmem:[#allocation2 + $0x8] sm:$0xff]
      %v755 = vld [vmem:[#allocation2 + $0x10] sm:$0xff]
      %v756 = vld [vmem:[#allocation2 + $0x18] sm:$0xff]
      %760 = vrot.lane.b32.xlu0 %v754, 48
      %v761 = vpop.permute.xlu0 %760
      %762 = vrot.lane.b32.xlu0 %v755, 48
      %v763 = vpop.permute.xlu0 %762
      %764 = vrot.lane.b32.xlu0 %v756, 48
      %v765 = vpop.permute.xlu0 %764
      %vm766 = vcmask 392192
      %v767 = vsel %vm766, %v761, %v763
      %v768 = vsel %vm766, %v763, %v765
      %771 = vst [vmem:[#allocation3 + $0x10] sm:$0xff] %v767
      %772 = vst [vmem:[#allocation3 + $0x18] sm:$0xff] %v768
      %v773 = vld [vmem:[#allocation2 + $0x8] sm:$0xff]
      %v774 = vld [vmem:[#allocation2 + $0x10] sm:$0xff]
      %v775 = vld [vmem:[#allocation2 + $0x18] sm:$0xff]
      %s776 = scalar_lea.vmem %s1, 5
      %v777 = vld [vmem:[%s776] ss:$8 sm:$0x3]
      %v779 = vlaneseq
      %v780 = vshrl.u32 %v779, 7
      %v781 = vsub.s32 0, %v780
      %v782 = vrot.slane %v777, %v781
      %v783 = vlaneseq
      %v784 = vshrl.u32 %v783, 7
      %v785 = vsub.s32 1, %v784
      %v786 = vrot.slane %v777, %v785
      %787 = vrot.lane.b32.xlu0 %v782, 83
      %v788 = vpop.permute.xlu0 %787
      %789 = vrot.lane.b32.xlu0 %v786, 83
      %v790 = vpop.permute.xlu0 %789
      %vm791 = vcmask 678912
      %v792 = vsel %vm791, %v788, %v790
      %v796 = vmul.f32 %v773, %v788
      %v797 = vmul.f32 %v774, %v792
      %v798 = vmul.f32 %v775, %v790
      %802 = vrot.lane.b32.xlu0 %v796, 45
      %v803 = vpop.permute.xlu0 %802
      %804 = vrot.lane.b32.xlu0 %v797, 45
      %v805 = vpop.permute.xlu0 %804
      %806 = vrot.lane.b32.xlu0 %v798, 45
      %v807 = vpop.permute.xlu0 %806
      %vm808 = vcmask 367616
      %v809 = vsel %vm808, %v803, %v805
      %v810 = vsel %vm808, %v805, %v807
      %813 = vst [vmem:[#allocation3 + $0x20] sm:$0xff] %v809
      %814 = vst [vmem:[#allocation3 + $0x28] sm:$0xff] %v810
      %v815 = vld [vmem:[#allocation2 + $0x8] sm:$0xff]
      %v816 = vld [vmem:[#allocation2 + $0x10] sm:$0xff]
      %v817 = vld [vmem:[#allocation2 + $0x18] sm:$0xff]
      %v818 = vld [vmem:[%s715] ss:$8 sm:$0x3]
      %v820 = vlaneseq
      %v821 = vshrl.u32 %v820, 7
      %v822 = vsub.s32 0, %v821
      %v823 = vrot.slane %v818, %v822
      %v824 = vlaneseq
      %v825 = vshrl.u32 %v824, 7
      %v826 = vsub.s32 1, %v825
      %v827 = vrot.slane %v818, %v826
      %828 = vrot.lane.b32.xlu0 %v823, 125
      %v829 = vpop.permute.xlu0 %828
      %830 = vrot.lane.b32.xlu0 %v827, 125
      %v831 = vpop.permute.xlu0 %830
      %vm832 = vcmask 1022976
      %v833 = vsel %vm832, %v829, %v831
      %v837 = vmul.f32 %v815, %v829
      %v838 = vmul.f32 %v816, %v833
      %v839 = vmul.f32 %v817, %v831
      %843 = vrot.lane.b32.xlu0 %v837, 3
      %v844 = vpop.permute.xlu0 %843
      %845 = vrot.lane.b32.xlu0 %v838, 3
      %v846 = vpop.permute.xlu0 %845
      %847 = vrot.lane.b32.xlu0 %v839, 3
      %v848 = vpop.permute.xlu0 %847
      %vm849 = vcmask 23552
      %v850 = vsel %vm849, %v844, %v846
      %v851 = vsel %vm849, %v846, %v848
      %854 = vst [vmem:[#allocation3 + $0x30] sm:$0xff] %v850
      %855 = vst [vmem:[#allocation3 + $0x38] sm:$0xff] %v851
      %v856 = vld [vmem:[#allocation2 + $0x10] sm:$0xff]
      %v857 = vld [vmem:[#allocation2 + $0x18] sm:$0xff]
      %858 = vst [vmem:[#allocation3 + $0x40] sm:$0xff] %v856
      %859 = vst [vmem:[#allocation3 + $0x48] sm:$0xff] %v857
      %v860 = vld [vmem:[#allocation2 + $0x10] sm:$0xff]
      %v861 = vld [vmem:[#allocation2 + $0x18] sm:$0xff]
      %v862 = vld [vmem:[#allocation2 + $0x20] sm:$0xff]
      %v863 = vld [vmem:[%s776] ss:$8 sm:$0x3]
      %v865 = vlaneseq
      %v866 = vshrl.u32 %v865, 7
      %v867 = vsub.s32 0, %v866
      %v868 = vrot.slane %v863, %v867
      %v869 = vlaneseq
      %v870 = vshrl.u32 %v869, 7
      %v871 = vsub.s32 1, %v870
      %v872 = vrot.slane %v863, %v871
      %873 = vrot.lane.b32.xlu0 %v868, 3
      %v874 = vpop.permute.xlu0 %873
      %875 = vrot.lane.b32.xlu0 %v872, 3
      %v876 = vpop.permute.xlu0 %875
      %v877 = vsel %vm849, %v874, %v876
      %v881 = vmul.f32 %v860, %v874
      %v882 = vmul.f32 %v861, %v877
      %v883 = vmul.f32 %v862, %v876
      %887 = vrot.lane.b32.xlu0 %v881, 125
      %v888 = vpop.permute.xlu0 %887
      %889 = vrot.lane.b32.xlu0 %v882, 125
      %v890 = vpop.permute.xlu0 %889
      %891 = vrot.lane.b32.xlu0 %v883, 125
      %v892 = vpop.permute.xlu0 %891
      %v893 = vsel %vm832, %v888, %v890
      %v894 = vsel %vm832, %v890, %v892
      %897 = vst [vmem:[#allocation3 + $0x50] sm:$0xff] %v893
      %898 = vst [vmem:[#allocation3 + $0x58] sm:$0xff] %v894
      %v899 = vld [vmem:[#allocation2 + $0x10] sm:$0xff]
      %v900 = vld [vmem:[#allocation2 + $0x18] sm:$0xff]
      %v901 = vld [vmem:[#allocation2 + $0x20] sm:$0xff]
      %v902 = vld [vmem:[%s715] ss:$8 sm:$0x3]
      %v904 = vlaneseq
      %v905 = vshrl.u32 %v904, 7
      %v906 = vsub.s32 0, %v905
      %v907 = vrot.slane %v902, %v906
      %v908 = vlaneseq
      %v909 = vshrl.u32 %v908, 7
      %v910 = vsub.s32 1, %v909
      %v911 = vrot.slane %v902, %v910
      %912 = vrot.lane.b32.xlu0 %v907, 45
      %v913 = vpop.permute.xlu0 %912
      %914 = vrot.lane.b32.xlu0 %v911, 45
      %v915 = vpop.permute.xlu0 %914
      %v916 = vsel %vm808, %v913, %v915
      %v920 = vmul.f32 %v899, %v913
      %v921 = vmul.f32 %v900, %v916
      %v922 = vmul.f32 %v901, %v915
      %926 = vrot.lane.b32.xlu0 %v920, 83
      %v927 = vpop.permute.xlu0 %926
      %928 = vrot.lane.b32.xlu0 %v921, 83
      %v929 = vpop.permute.xlu0 %928
      %930 = vrot.lane.b32.xlu0 %v922, 83
      %v931 = vpop.permute.xlu0 %930
      %v932 = vsel %vm791, %v927, %v929
      %v933 = vsel %vm791, %v929, %v931
      %936 = vst [vmem:[#allocation3 + $0x60] sm:$0xff] %v932
      %937 = vst [vmem:[#allocation3 + $0x68] sm:$0xff] %v933
      %v938 = vld [vmem:[#allocation2 + $0x10] sm:$0xff]
      %v939 = vld [vmem:[#allocation2 + $0x18] sm:$0xff]
      %v940 = vld [vmem:[#allocation2 + $0x20] sm:$0xff]
      %944 = vrot.lane.b32.xlu0 %v938, 80
      %v945 = vpop.permute.xlu0 %944
      %946 = vrot.lane.b32.xlu0 %v939, 80
      %v947 = vpop.permute.xlu0 %946
      %948 = vrot.lane.b32.xlu0 %v940, 80
      %v949 = vpop.permute.xlu0 %948
      %vm950 = vcmask 654336
      %v951 = vsel %vm950, %v945, %v947
      %v952 = vsel %vm950, %v947, %v949
      %955 = vst [vmem:[#allocation3 + $0x70] sm:$0xff] %v951
      %956 = vst [vmem:[#allocation3 + $0x78] sm:$0xff] %v952
      %v957 = vld [vmem:[#allocation2 + $0x10] sm:$0xff]
      %v958 = vld [vmem:[#allocation2 + $0x18] sm:$0xff]
      %v959 = vld [vmem:[#allocation2 + $0x20] sm:$0xff]
      %v960 = vld [vmem:[%s776] ss:$8 sm:$0x3]
      %v962 = vlaneseq
      %v963 = vshrl.u32 %v962, 7
      %v964 = vsub.s32 0, %v963
      %v965 = vrot.slane %v960, %v964
      %v966 = vlaneseq
      %v967 = vshrl.u32 %v966, 7
      %v968 = vsub.s32 1, %v967
      %v969 = vrot.slane %v960, %v968
      %970 = vrot.lane.b32.xlu0 %v965, 51
      %v971 = vpop.permute.xlu0 %970
      %972 = vrot.lane.b32.xlu0 %v969, 51
      %v973 = vpop.permute.xlu0 %972
      %v974 = vsel %vm747, %v971, %v973
      %v978 = vmul.f32 %v957, %v971
      %v979 = vmul.f32 %v958, %v974
      %v980 = vmul.f32 %v959, %v973
      %984 = vrot.lane.b32.xlu0 %v978, 77
      %v985 = vpop.permute.xlu0 %984
      %986 = vrot.lane.b32.xlu0 %v979, 77
      %v987 = vpop.permute.xlu0 %986
      %988 = vrot.lane.b32.xlu0 %v980, 77
      %v989 = vpop.permute.xlu0 %988
      %v990 = vsel %vm730, %v985, %v987
      %v991 = vsel %vm730, %v987, %v989
      %994 = vst [vmem:[#allocation3 + $0x80] sm:$0xff] %v990
      %995 = vst [vmem:[#allocation3 + $0x88] sm:$0xff] %v991
      %v996 = vld [vmem:[%s2] sm:$0xff]
      %v997 = vld [vmem:[#allocation3] sm:$0xff]
      %v998 = vld [vmem:[#allocation3 + $0x8] sm:$0xff]
      %v999 = vld [vmem:[#allocation3 + $0x10] sm:$0xff]
      %v1000 = vld [vmem:[#allocation3 + $0x18] sm:$0xff]
      %v1001 = vld [vmem:[#allocation3 + $0x20] sm:$0xff]
      %v1002 = vld [vmem:[#allocation3 + $0x28] sm:$0xff]
      %v1003 = vld [vmem:[#allocation3 + $0x30] sm:$0xff]
      %v1004 = vld [vmem:[#allocation3 + $0x38] sm:$0xff]
      %v1005 = vld [vmem:[#allocation3 + $0x40] sm:$0xff]
      %v1006 = vld [vmem:[#allocation3 + $0x48] sm:$0xff]
      %v1007 = vld [vmem:[#allocation3 + $0x50] sm:$0xff]
      %v1008 = vld [vmem:[#allocation3 + $0x58] sm:$0xff]
      %v1009 = vld [vmem:[#allocation3 + $0x60] sm:$0xff]
      %v1010 = vld [vmem:[#allocation3 + $0x68] sm:$0xff]
      %v1011 = vld [vmem:[#allocation3 + $0x70] sm:$0xff]
      %v1012 = vld [vmem:[#allocation3 + $0x78] sm:$0xff]
      %v1013 = vld [vmem:[#allocation3 + $0x80] sm:$0xff]
      %v1014 = vld [vmem:[#allocation3 + $0x88] sm:$0xff]
      %v1015 = vld [vmem:[%s3] sm:$0xff]
      %1017 = vset.pattern.permute.xlu0 0
      %1018 = vperm.xlu0 %1017, %v1015
      %v1019 = vpop.permute.xlu0 %1018
      %vm1021 = vcmask 588800
      %v1023 = vsel %vm1021, %v996, 0
      %1025 = vmatprep.subr.mxu0 %v998
      %1026 = vmatpush1.msra.mxu0 %v997
      %1027 = vmatprep.subr.mxu0 %v1000
      %1028 = vmatpush1.msra.mxu0 %v999
      %1029 = vmatprep.subr.mxu0 %v1002
      %1030 = vmatpush1.msra.mxu0 %v1001
      %1031 = vmatprep.subr.mxu0 %v1004
      %1032 = vmatpush1.msra.mxu0 %v1003
      %1033 = vmatprep.subr.mxu0 %v1006
      %1034 = vmatpush1.msra.mxu0 %v1005
      %1035 = vmatprep.subr.mxu0 %v1008
      %1036 = vmatpush1.msra.mxu0 %v1007
      %1037 = vmatprep.subr.mxu0 %v1010
      %1038 = vmatpush1.msra.mxu0 %v1009
      %1039 = vmatprep.subr.mxu0 %v1012
      %1040 = vmatpush1.msra.mxu0 %v1011
      %1041 = vmatprep.subr.mxu0 %v1014
      %1042 = vmatpush1.msra.mxu0 %v1013
      %1043 = vmatprep.subr.mxu0 0.0
      %1044 = vmatpush1.msra.mxu0 0.0
      %1045 = vmatprep.subr.mxu0 0.0
      %1046 = vmatpush1.msra.mxu0 0.0
      %1047 = vmatprep.subr.mxu0 0.0
      %1048 = vmatpush1.msra.mxu0 0.0
      %1049 = vmatprep.subr.mxu0 0.0
      %1050 = vmatpush1.msra.mxu0 0.0
      %1051 = vmatprep.subr.mxu0 0.0
      %1052 = vmatpush1.msra.mxu0 0.0
      %1053 = vmatprep.subr.mxu0 0.0
      %1054 = vmatpush1.msra.mxu0 0.0
      %1055 = vmatprep.subr.mxu0 0.0
      %1056 = vmatpush1.msra.mxu0 0.0
      %1057 = vmatprep.subr.mxu0 0.0
      %1058 = vmatpush1.msra.mxu0 0.0
      %1059 = vmatprep.subr.mxu0 0.0
      %1060 = vmatpush1.msra.mxu0 0.0
      %1061 = vmatprep.subr.mxu0 0.0
      %1062 = vmatpush1.msra.mxu0 0.0
      %1063 = vmatprep.subr.mxu0 0.0
      %1064 = vmatpush1.msra.mxu0 0.0
      %1065 = vmatprep.subr.mxu0 0.0
      %1066 = vmatpush1.msra.mxu0 0.0
      %1067 = vmatprep.subr.mxu0 0.0
      %1068 = vmatpush1.msra.mxu0 0.0
      %1069 = vmatprep.subr.mxu0 0.0
      %1070 = vmatpush1.msra.mxu0 0.0
      %1071 = vmatprep.subr.mxu0 0.0
      %1072 = vmatpush1.msra.mxu0 0.0
      %1073 = vmatprep.subr.mxu0 0.0
      %1074 = vmatpush1.msra.mxu0 0.0
      %1075 = vmatprep.subr.mxu0 0.0
      %1076 = vmatpush1.msra.mxu0 0.0
      %1077 = vmatprep.subr.mxu0 0.0
      %1078 = vmatpush1.msra.mxu0 0.0
      %1079 = vmatprep.subr.mxu0 0.0
      %1080 = vmatpush1.msra.mxu0 0.0
      %1081 = vmatprep.subr.mxu0 0.0
      %1082 = vmatpush1.msra.mxu0 0.0
      %1083 = vmatprep.subr.mxu0 0.0
      %1084 = vmatpush1.msra.mxu0 0.0
      %1085 = vmatprep.subr.mxu0 0.0
      %1086 = vmatpush1.msra.mxu0 0.0
      %1087 = vmatprep.subr.mxu0 0.0
      %1088 = vmatpush1.msra.mxu0 0.0
      %1089 = vmatprep.mubr.f32.mxu0 0.0
      %1090 = vmatmul.mubr.f32.gmra.mrb[0].mxu0 %v1023
      %v1091 = vpop.f32.mrb[0].mxu0
      %v1092 = vadd.f32 %v1019, %v1091
      %v1093 = vpop.f32.mrb[0].mxu0
      %v1094 = vadd.f32 %v1019, %v1093
      %1095 = vdwg.mxu0
      %1096 = vst [vmem:[#allocation2 + $0x10] sm:$0xff] %v1092
      %1097 = vst [vmem:[#allocation2 + $0x18] sm:$0xff] %v1094
      %1098 = vst [vmem:[#allocation2 + $0x40] sm:$0xff] %v708
      %1099 = vst [vmem:[#allocation2 + $0x48] sm:$0xff] %v709
      %v1100 = vld [vmem:[%s8] sm:$0xff]
      %v1101 = vld [vmem:[%s8 + $0x8] sm:$0xff]
      %v1102 = vld [vmem:[#allocation2 + $0x8] sm:$0xff]
      %v1103 = vld [vmem:[#allocation2 + $0x10] sm:$0xff]
      %v1104 = vld [vmem:[#allocation2 + $0x18] sm:$0xff]
      %v1105 = vld [vmem:[#allocation2 + $0x38] sm:$0xff]
      %v1106 = vld [vmem:[#allocation2 + $0x40] sm:$0xff]
      %v1107 = vld [vmem:[#allocation2 + $0x48] sm:$0xff]
      %v1108 = vld [vmem:[%s1] ss:$8 sm:$0x3]
      %v1110 = vlaneseq
      %v1111 = vshrl.u32 %v1110, 7
      %v1112 = vsub.s32 0, %v1111
      %v1113 = vrot.slane %v1108, %v1112
      %v1114 = vlaneseq
      %v1115 = vshrl.u32 %v1114, 7
      %v1116 = vsub.s32 1, %v1115
      %v1117 = vrot.slane %v1108, %v1116
      %1118 = vrot.lane.b32.xlu0 %v1113, 111
      %v1119 = vpop.permute.xlu0 %1118
      %1120 = vrot.lane.b32.xlu0 %v1117, 111
      %v1121 = vpop.permute.xlu0 %1120
      %vm1122 = vcmask 908288
      %v1123 = vsel %vm1122, %v1119, %v1121
      %v1127 = vmul.f32 %v1102, %v1119
      %v1128 = vmul.f32 %v1103, %v1123
      %v1129 = vmul.f32 %v1104, %v1121
      %v1130 = vmul.f32 %v1105, %v1119
      %v1131 = vmul.f32 %v1106, %v1123
      %v1132 = vmul.f32 %v1107, %v1121
      %1134 = vset.pattern.permute.xlu0 0
      %1135 = vperm.xlu0 %1134, %v1100
      %v1136 = vpop.permute.xlu0 %1135
      %1139 = vset.pattern.permute.xlu0 0
      %1140 = vperm.xlu0 %1139, %v1101
      %v1141 = vpop.permute.xlu0 %1140
      %v1143 = vmul.f32 %v1136, %v1127
      %v1144 = vmul.f32 %v1136, %v1128
      %v1145 = vmul.f32 %v1136, %v1129
      %v1146 = vmul.f32 %v1141, %v1130
      %v1147 = vmul.f32 %v1141, %v1131
      %v1148 = vmul.f32 %v1141, %v1132
      %v1149 = vadd.f32 %v1143, 0.0
      %v1150 = vadd.f32 %v1144, 0.0
      %v1151 = vadd.f32 %v1145, 0.0
      %v1152 = vadd.f32 %v1146, 0.0
      %v1153 = vadd.f32 %v1147, 0.0
      %v1154 = vadd.f32 %v1148, 0.0
      %1155 = vset.pattern.permute.xlu0 1
      %1156 = vperm.xlu0 %1155, %v1100
      %v1157 = vpop.permute.xlu0 %1156
      %1159 = vset.pattern.permute.xlu0 1
      %1160 = vperm.xlu0 %1159, %v1101
      %v1161 = vpop.permute.xlu0 %1160
      %v1163 = vmul.f32 %v1157, %v1102
      %v1164 = vmul.f32 %v1157, %v1103
      %v1165 = vmul.f32 %v1157, %v1104
      %v1166 = vmul.f32 %v1161, %v1105
      %v1167 = vmul.f32 %v1161, %v1106
      %v1168 = vmul.f32 %v1161, %v1107
      %1175 = vrot.lane.b32.xlu0 %v1163, 127
      %v1176 = vpop.permute.xlu0 %1175
      %1177 = vrot.lane.b32.xlu0 %v1164, 127
      %v1178 = vpop.permute.xlu0 %1177
      %1179 = vrot.lane.b32.xlu0 %v1165, 127
      %v1180 = vpop.permute.xlu0 %1179
      %1181 = vrot.lane.b32.xlu0 %v1166, 127
      %v1182 = vpop.permute.xlu0 %1181
      %1183 = vrot.lane.b32.xlu0 %v1167, 127
      %v1184 = vpop.permute.xlu0 %1183
      %1185 = vrot.lane.b32.xlu0 %v1168, 127
      %v1186 = vpop.permute.xlu0 %1185
      %vm1187 = vcmask 1039360
      %v1188 = vsel %vm1187, %v1176, %v1178
      %v1189 = vsel %vm1187, %v1178, %v1180
      %v1190 = vsel %vm1187, %v1182, %v1184
      %v1191 = vsel %vm1187, %v1184, %v1186
      %v1198 = vadd.f32 %v1149, %v1188
      %v1199 = vadd.f32 %v1150, %v1189
      %v1200 = vadd.f32 %v1151, %v1180
      %v1201 = vadd.f32 %v1152, %v1190
      %v1202 = vadd.f32 %v1153, %v1191
      %v1203 = vadd.f32 %v1154, %v1186
      %s1204 = scalar_lea.vmem %s1, 2
      %v1205 = vld [vmem:[%s1204] ss:$8 sm:$0x3]
      %v1207 = vlaneseq
      %v1208 = vshrl.u32 %v1207, 7
      %v1209 = vsub.s32 0, %v1208
      %v1210 = vrot.slane %v1205, %v1209
      %v1211 = vlaneseq
      %v1212 = vshrl.u32 %v1211, 7
      %v1213 = vsub.s32 1, %v1212
      %v1214 = vrot.slane %v1205, %v1213
      %1215 = vrot.lane.b32.xlu0 %v1210, 113
      %v1216 = vpop.permute.xlu0 %1215
      %1217 = vrot.lane.b32.xlu0 %v1214, 113
      %v1218 = vpop.permute.xlu0 %1217
      %vm1219 = vcmask 924672
      %v1220 = vsel %vm1219, %v1216, %v1218
      %v1224 = vmul.f32 %v1102, %v1216
      %v1225 = vmul.f32 %v1103, %v1220
      %v1226 = vmul.f32 %v1104, %v1218
      %v1227 = vmul.f32 %v1105, %v1216
      %v1228 = vmul.f32 %v1106, %v1220
      %v1229 = vmul.f32 %v1107, %v1218
      %1230 = vset.pattern.permute.xlu0 2
      %1231 = vperm.xlu0 %1230, %v1100
      %v1232 = vpop.permute.xlu0 %1231
      %1234 = vset.pattern.permute.xlu0 2
      %1235 = vperm.xlu0 %1234, %v1101
      %v1236 = vpop.permute.xlu0 %1235
      %v1238 = vmul.f32 %v1232, %v1224
      %v1239 = vmul.f32 %v1232, %v1225
      %v1240 = vmul.f32 %v1232, %v1226
      %v1241 = vmul.f32 %v1236, %v1227
      %v1242 = vmul.f32 %v1236, %v1228
      %v1243 = vmul.f32 %v1236, %v1229
      %1250 = vrot.lane.b32.xlu0 %v1238, 126
      %v1251 = vpop.permute.xlu0 %1250
      %1252 = vrot.lane.b32.xlu0 %v1239, 126
      %v1253 = vpop.permute.xlu0 %1252
      %1254 = vrot.lane.b32.xlu0 %v1240, 126
      %v1255 = vpop.permute.xlu0 %1254
      %1256 = vrot.lane.b32.xlu0 %v1241, 126
      %v1257 = vpop.permute.xlu0 %1256
      %1258 = vrot.lane.b32.xlu0 %v1242, 126
      %v1259 = vpop.permute.xlu0 %1258
      %1260 = vrot.lane.b32.xlu0 %v1243, 126
      %v1261 = vpop.permute.xlu0 %1260
      %vm1262 = vcmask 1031168
      %v1263 = vsel %vm1262, %v1251, %v1253
      %v1264 = vsel %vm1262, %v1253, %v1255
      %v1265 = vsel %vm1262, %v1257, %v1259
      %v1266 = vsel %vm1262, %v1259, %v1261
      %v1273 = vadd.f32 %v1198, %v1263
      %v1274 = vadd.f32 %v1199, %v1264
      %v1275 = vadd.f32 %v1200, %v1255
      %v1276 = vadd.f32 %v1201, %v1265
      %v1277 = vadd.f32 %v1202, %v1266
      %v1278 = vadd.f32 %v1203, %v1261
      %1279 = vrot.lane.b32.xlu0 %v1113, 127
      %v1280 = vpop.permute.xlu0 %1279
      %1281 = vrot.lane.b32.xlu0 %v1117, 127
      %v1282 = vpop.permute.xlu0 %1281
      %v1283 = vsel %vm1187, %v1280, %v1282
      %v1287 = vmul.f32 %v1102, %v1280
      %v1288 = vmul.f32 %v1103, %v1283
      %v1289 = vmul.f32 %v1104, %v1282
      %v1290 = vmul.f32 %v1105, %v1280
      %v1291 = vmul.f32 %v1106, %v1283
      %v1292 = vmul.f32 %v1107, %v1282
      %1293 = vset.pattern.permute.xlu0 3
      %1294 = vperm.xlu0 %1293, %v1100
      %v1295 = vpop.permute.xlu0 %1294
      %1297 = vset.pattern.permute.xlu0 3
      %1298 = vperm.xlu0 %1297, %v1101
      %v1299 = vpop.permute.xlu0 %1298
      %v1301 = vmul.f32 %v1295, %v1287
      %v1302 = vmul.f32 %v1295, %v1288
      %v1303 = vmul.f32 %v1295, %v1289
      %v1304 = vmul.f32 %v1299, %v1290
      %v1305 = vmul.f32 %v1299, %v1291
      %v1306 = vmul.f32 %v1299, %v1292
      %1313 = vrot.lane.b32.xlu0 %v1301, 112
      %v1314 = vpop.permute.xlu0 %1313
      %1315 = vrot.lane.b32.xlu0 %v1302, 112
      %v1316 = vpop.permute.xlu0 %1315
      %1317 = vrot.lane.b32.xlu0 %v1303, 112
      %v1318 = vpop.permute.xlu0 %1317
      %1319 = vrot.lane.b32.xlu0 %v1304, 112
      %v1320 = vpop.permute.xlu0 %1319
      %1321 = vrot.lane.b32.xlu0 %v1305, 112
      %v1322 = vpop.permute.xlu0 %1321
      %1323 = vrot.lane.b32.xlu0 %v1306, 112
      %v1324 = vpop.permute.xlu0 %1323
      %vm1325 = vcmask 916480
      %v1326 = vsel %vm1325, %v1314, %v1316
      %v1327 = vsel %vm1325, %v1316, %v1318
      %v1328 = vsel %vm1325, %v1320, %v1322
      %v1329 = vsel %vm1325, %v1322, %v1324
      %v1336 = vadd.f32 %v1273, %v1326
      %v1337 = vadd.f32 %v1274, %v1327
      %v1338 = vadd.f32 %v1275, %v1318
      %v1339 = vadd.f32 %v1276, %v1328
      %v1340 = vadd.f32 %v1277, %v1329
      %v1341 = vadd.f32 %v1278, %v1324
      %1342 = vset.pattern.permute.xlu0 4
      %1343 = vperm.xlu0 %1342, %v1100
      %v1344 = vpop.permute.xlu0 %1343
      %1346 = vset.pattern.permute.xlu0 4
      %1347 = vperm.xlu0 %1346, %v1101
      %v1348 = vpop.permute.xlu0 %1347
      %v1350 = vmul.f32 %v1344, %v1103
      %v1351 = vmul.f32 %v1344, %v1104
      %v1352 = vmul.f32 %v1348, %v1106
      %v1353 = vmul.f32 %v1348, %v1107
      %1358 = vrot.lane.b32.xlu0 %v1350, 111
      %v1359 = vpop.permute.xlu0 %1358
      %1360 = vrot.lane.b32.xlu0 %v1351, 111
      %v1361 = vpop.permute.xlu0 %1360
      %1362 = vrot.lane.b32.xlu0 %v1352, 111
      %v1363 = vpop.permute.xlu0 %1362
      %1364 = vrot.lane.b32.xlu0 %v1353, 111
      %v1365 = vpop.permute.xlu0 %1364
      %v1366 = vsel %vm1122, %v1359, %v1361
      %v1367 = vsel %vm1122, %v1363, %v1365
      %v1374 = vadd.f32 %v1336, %v1359
      %v1375 = vadd.f32 %v1337, %v1366
      %v1376 = vadd.f32 %v1338, %v1361
      %v1377 = vadd.f32 %v1339, %v1363
      %v1378 = vadd.f32 %v1340, %v1367
      %v1379 = vadd.f32 %v1341, %v1365
      %v1380 = vld [vmem:[#allocation2 + $0x10] sm:$0xff]
      %v1381 = vld [vmem:[#allocation2 + $0x18] sm:$0xff]
      %v1382 = vld [vmem:[#allocation2 + $0x20] sm:$0xff]
      %v1383 = vld [vmem:[#allocation2 + $0x40] sm:$0xff]
      %v1384 = vld [vmem:[#allocation2 + $0x48] sm:$0xff]
      %v1385 = vld [vmem:[#allocation2 + $0x50] sm:$0xff]
      %1386 = vrot.lane.b32.xlu0 %v1210, 1
      %v1387 = vpop.permute.xlu0 %1386
      %1388 = vrot.lane.b32.xlu0 %v1214, 1
      %v1389 = vpop.permute.xlu0 %1388
      %vm1390 = vcmask 7168
      %v1391 = vsel %vm1390, %v1387, %v1389
      %v1395 = vmul.f32 %v1380, %v1387
      %v1396 = vmul.f32 %v1381, %v1391
      %v1397 = vmul.f32 %v1382, %v1389
      %v1398 = vmul.f32 %v1383, %v1387
      %v1399 = vmul.f32 %v1384, %v1391
      %v1400 = vmul.f32 %v1385, %v1389
      %1401 = vset.pattern.permute.xlu0 5
      %1402 = vperm.xlu0 %1401, %v1100
      %v1403 = vpop.permute.xlu0 %1402
      %1405 = vset.pattern.permute.xlu0 5
      %1406 = vperm.xlu0 %1405, %v1101
      %v1407 = vpop.permute.xlu0 %1406
      %v1409 = vmul.f32 %v1403, %v1395
      %v1410 = vmul.f32 %v1403, %v1396
      %v1411 = vmul.f32 %v1403, %v1397
      %v1412 = vmul.f32 %v1407, %v1398
      %v1413 = vmul.f32 %v1407, %v1399
      %v1414 = vmul.f32 %v1407, %v1400
      %1421 = vrot.lane.b32.xlu0 %v1409, 110
      %v1422 = vpop.permute.xlu0 %1421
      %1423 = vrot.lane.b32.xlu0 %v1410, 110
      %v1424 = vpop.permute.xlu0 %1423
      %1425 = vrot.lane.b32.xlu0 %v1411, 110
      %v1426 = vpop.permute.xlu0 %1425
      %1427 = vrot.lane.b32.xlu0 %v1412, 110
      %v1428 = vpop.permute.xlu0 %1427
      %1429 = vrot.lane.b32.xlu0 %v1413, 110
      %v1430 = vpop.permute.xlu0 %1429
      %1431 = vrot.lane.b32.xlu0 %v1414, 110
      %v1432 = vpop.permute.xlu0 %1431
      %vm1433 = vcmask 900096
      %v1434 = vsel %vm1433, %v1422, %v1424
      %v1435 = vsel %vm1433, %v1424, %v1426
      %v1436 = vsel %vm1433, %v1428, %v1430
      %v1437 = vsel %vm1433, %v1430, %v1432
      %v1444 = vadd.f32 %v1374, %v1422
      %v1445 = vadd.f32 %v1375, %v1434
      %v1446 = vadd.f32 %v1376, %v1435
      %v1447 = vadd.f32 %v1377, %v1428
      %v1448 = vadd.f32 %v1378, %v1436
      %v1449 = vadd.f32 %v1379, %v1437
      %1450 = vrot.lane.b32.xlu0 %v1113, 15
      %v1451 = vpop.permute.xlu0 %1450
      %1452 = vrot.lane.b32.xlu0 %v1117, 15
      %v1453 = vpop.permute.xlu0 %1452
      %vm1454 = vcmask 121856
      %v1455 = vsel %vm1454, %v1451, %v1453
      %v1459 = vmul.f32 %v1380, %v1451
      %v1460 = vmul.f32 %v1381, %v1455
      %v1461 = vmul.f32 %v1382, %v1453
      %v1462 = vmul.f32 %v1383, %v1451
      %v1463 = vmul.f32 %v1384, %v1455
      %v1464 = vmul.f32 %v1385, %v1453
      %1465 = vset.pattern.permute.xlu0 6
      %1466 = vperm.xlu0 %1465, %v1100
      %v1467 = vpop.permute.xlu0 %1466
      %1469 = vset.pattern.permute.xlu0 6
      %1470 = vperm.xlu0 %1469, %v1101
      %v1471 = vpop.permute.xlu0 %1470
      %v1473 = vmul.f32 %v1467, %v1459
      %v1474 = vmul.f32 %v1467, %v1460
      %v1475 = vmul.f32 %v1467, %v1461
      %v1476 = vmul.f32 %v1471, %v1462
      %v1477 = vmul.f32 %v1471, %v1463
      %v1478 = vmul.f32 %v1471, %v1464
      %1485 = vrot.lane.b32.xlu0 %v1473, 96
      %v1486 = vpop.permute.xlu0 %1485
      %1487 = vrot.lane.b32.xlu0 %v1474, 96
      %v1488 = vpop.permute.xlu0 %1487
      %1489 = vrot.lane.b32.xlu0 %v1475, 96
      %v1490 = vpop.permute.xlu0 %1489
      %1491 = vrot.lane.b32.xlu0 %v1476, 96
      %v1492 = vpop.permute.xlu0 %1491
      %1493 = vrot.lane.b32.xlu0 %v1477, 96
      %v1494 = vpop.permute.xlu0 %1493
      %1495 = vrot.lane.b32.xlu0 %v1478, 96
      %v1496 = vpop.permute.xlu0 %1495
      %vm1497 = vcmask 785408
      %v1498 = vsel %vm1497, %v1486, %v1488
      %v1499 = vsel %vm1497, %v1488, %v1490
      %v1500 = vsel %vm1497, %v1492, %v1494
      %v1501 = vsel %vm1497, %v1494, %v1496
      %v1508 = vadd.f32 %v1444, %v1486
      %v1509 = vadd.f32 %v1445, %v1498
      %v1510 = vadd.f32 %v1446, %v1499
      %v1511 = vadd.f32 %v1447, %v1492
      %v1512 = vadd.f32 %v1448, %v1500
      %v1513 = vadd.f32 %v1449, %v1501
      %1514 = vset.pattern.permute.xlu0 7
      %1515 = vperm.xlu0 %1514, %v1100
      %v1516 = vpop.permute.xlu0 %1515
      %1518 = vset.pattern.permute.xlu0 7
      %1519 = vperm.xlu0 %1518, %v1101
      %v1520 = vpop.permute.xlu0 %1519
      %v1522 = vmul.f32 %v1516, %v1380
      %v1523 = vmul.f32 %v1516, %v1381
      %v1524 = vmul.f32 %v1516, %v1382
      %v1525 = vmul.f32 %v1520, %v1383
      %v1526 = vmul.f32 %v1520, %v1384
      %v1527 = vmul.f32 %v1520, %v1385
      %1534 = vrot.lane.b32.xlu0 %v1522, 95
      %v1535 = vpop.permute.xlu0 %1534
      %1536 = vrot.lane.b32.xlu0 %v1523, 95
      %v1537 = vpop.permute.xlu0 %1536
      %1538 = vrot.lane.b32.xlu0 %v1524, 95
      %v1539 = vpop.permute.xlu0 %1538
      %1540 = vrot.lane.b32.xlu0 %v1525, 95
      %v1541 = vpop.permute.xlu0 %1540
      %1542 = vrot.lane.b32.xlu0 %v1526, 95
      %v1543 = vpop.permute.xlu0 %1542
      %1544 = vrot.lane.b32.xlu0 %v1527, 95
      %v1545 = vpop.permute.xlu0 %1544
      %vm1546 = vcmask 777216
      %v1547 = vsel %vm1546, %v1535, %v1537
      %v1548 = vsel %vm1546, %v1537, %v1539
      %v1549 = vsel %vm1546, %v1541, %v1543
      %v1550 = vsel %vm1546, %v1543, %v1545
      %v1557 = vadd.f32 %v1508, %v1535
      %v1558 = vadd.f32 %v1509, %v1547
      %v1559 = vadd.f32 %v1510, %v1548
      %v1560 = vadd.f32 %v1511, %v1541
      %v1561 = vadd.f32 %v1512, %v1549
      %v1562 = vadd.f32 %v1513, %v1550
      %1563 = vrot.lane.b32.xlu0 %v1210, 17
      %v1564 = vpop.permute.xlu0 %1563
      %1565 = vrot.lane.b32.xlu0 %v1214, 17
      %v1566 = vpop.permute.xlu0 %1565
      %vm1567 = vcmask 138240
      %v1568 = vsel %vm1567, %v1564, %v1566
      %v1572 = vmul.f32 %v1380, %v1564
      %v1573 = vmul.f32 %v1381, %v1568
      %v1574 = vmul.f32 %v1382, %v1566
      %v1575 = vmul.f32 %v1383, %v1564
      %v1576 = vmul.f32 %v1384, %v1568
      %v1577 = vmul.f32 %v1385, %v1566
      %1578 = vset.pattern.permute.xlu0 8
      %1579 = vperm.xlu0 %1578, %v1100
      %v1580 = vpop.permute.xlu0 %1579
      %1582 = vset.pattern.permute.xlu0 8
      %1583 = vperm.xlu0 %1582, %v1101
      %v1584 = vpop.permute.xlu0 %1583
      %v1586 = vmul.f32 %v1580, %v1572
      %v1587 = vmul.f32 %v1580, %v1573
      %v1588 = vmul.f32 %v1580, %v1574
      %v1589 = vmul.f32 %v1584, %v1575
      %v1590 = vmul.f32 %v1584, %v1576
      %v1591 = vmul.f32 %v1584, %v1577
      %1598 = vrot.lane.b32.xlu0 %v1586, 94
      %v1599 = vpop.permute.xlu0 %1598
      %1600 = vrot.lane.b32.xlu0 %v1587, 94
      %v1601 = vpop.permute.xlu0 %1600
      %1602 = vrot.lane.b32.xlu0 %v1588, 94
      %v1603 = vpop.permute.xlu0 %1602
      %1604 = vrot.lane.b32.xlu0 %v1589, 94
      %v1605 = vpop.permute.xlu0 %1604
      %1606 = vrot.lane.b32.xlu0 %v1590, 94
      %v1607 = vpop.permute.xlu0 %1606
      %1608 = vrot.lane.b32.xlu0 %v1591, 94
      %v1609 = vpop.permute.xlu0 %1608
      %vm1610 = vcmask 769024
      %v1611 = vsel %vm1610, %v1599, %v1601
      %v1612 = vsel %vm1610, %v1601, %v1603
      %v1613 = vsel %vm1610, %v1605, %v1607
      %v1614 = vsel %vm1610, %v1607, %v1609
      %v1621 = vadd.f32 %v1557, %v1599
      %v1622 = vadd.f32 %v1558, %v1611
      %v1623 = vadd.f32 %v1559, %v1612
      %v1624 = vadd.f32 %v1560, %v1605
      %v1625 = vadd.f32 %v1561, %v1613
      %v1626 = vadd.f32 %v1562, %v1614
      %v1627 = vld [vmem:[%s9] sm:$0xff]
      %v1628 = vld [vmem:[%s9 + $0x8] sm:$0xff]
      %1630 = vset.pattern.permute.xlu0 0
      %1631 = vperm.xlu0 %1630, %v1627
      %v1632 = vpop.permute.xlu0 %1631
      %1635 = vset.pattern.permute.xlu0 0
      %1636 = vperm.xlu0 %1635, %v1628
      %v1637 = vpop.permute.xlu0 %1636
      %v1639 = vadd.f32 %v1621, %v1632
      %v1640 = vadd.f32 %v1622, %v1632
      %v1641 = vadd.f32 %v1623, %v1632
      %v1642 = vadd.f32 %v1624, %v1637
      %v1643 = vadd.f32 %v1625, %v1637
      %v1644 = vadd.f32 %v1626, %v1637
      %v1645 = vld [vmem:[%s10] sm:$0xff]
      %v1646 = vld [vmem:[%s11] sm:$0xff]
      %1648 = vset.pattern.permute.xlu0 0
      %1649 = vperm.xlu0 %1648, %v1646
      %v1650 = vpop.permute.xlu0 %1649
      %1658 = vrot.lane.b32.xlu0 %v1639, 17
      %v1659 = vpop.permute.xlu0 %1658
      %1660 = vrot.lane.b32.xlu0 %v1640, 17
      %v1661 = vpop.permute.xlu0 %1660
      %1662 = vrot.lane.b32.xlu0 %v1641, 17
      %v1663 = vpop.permute.xlu0 %1662
      %1664 = vrot.lane.b32.xlu0 %v1642, 17
      %v1665 = vpop.permute.xlu0 %1664
      %1666 = vrot.lane.b32.xlu0 %v1643, 17
      %v1667 = vpop.permute.xlu0 %1666
      %1668 = vrot.lane.b32.xlu0 %v1644, 17
      %v1669 = vpop.permute.xlu0 %1668
      %v1670 = vsel %vm1567, %v1659, %v1661
      %v1671 = vsel %vm1567, %v1661, %v1663
      %v1672 = vsel %vm1567, %v1665, %v1667
      %v1673 = vsel %vm1567, %v1667, %v1669
      %vm1678 = vcmask 130048
      %v1680 = vsel %vm1678, %v1645, 0
      %1682 = vmatprep.subr.mxu0 %v1671
      %1683 = vmatpush1.msra.mxu0 %v1670
      %1684 = vmatprep.subr.mxu0 %v1673
      %1685 = vmatpush1.msra.mxu0 %v1672
      %1686 = vmatprep.subr.mxu0 0.0
      %1687 = vmatpush1.msra.mxu0 0.0
      %1688 = vmatprep.subr.mxu0 0.0
      %1689 = vmatpush1.msra.mxu0 0.0
      %1690 = vmatprep.subr.mxu0 0.0
      %1691 = vmatpush1.msra.mxu0 0.0
      %1692 = vmatprep.subr.mxu0 0.0
      %1693 = vmatpush1.msra.mxu0 0.0
      %1694 = vmatprep.subr.mxu0 0.0
      %1695 = vmatpush1.msra.mxu0 0.0
      %1696 = vmatprep.subr.mxu0 0.0
      %1697 = vmatpush1.msra.mxu0 0.0
      %1698 = vmatprep.subr.mxu0 0.0
      %1699 = vmatpush1.msra.mxu0 0.0
      %1700 = vmatprep.subr.mxu0 0.0
      %1701 = vmatpush1.msra.mxu0 0.0
      %1702 = vmatprep.subr.mxu0 0.0
      %1703 = vmatpush1.msra.mxu0 0.0
      %1704 = vmatprep.subr.mxu0 0.0
      %1705 = vmatpush1.msra.mxu0 0.0
      %1706 = vmatprep.subr.mxu0 0.0
      %1707 = vmatpush1.msra.mxu0 0.0
      %1708 = vmatprep.subr.mxu0 0.0
      %1709 = vmatpush1.msra.mxu0 0.0
      %1710 = vmatprep.subr.mxu0 0.0
      %1711 = vmatpush1.msra.mxu0 0.0
      %1712 = vmatprep.subr.mxu0 0.0
      %1713 = vmatpush1.msra.mxu0 0.0
      %1714 = vmatprep.subr.mxu0 0.0
      %1715 = vmatpush1.msra.mxu0 0.0
      %1716 = vmatprep.subr.mxu0 0.0
      %1717 = vmatpush1.msra.mxu0 0.0
      %1718 = vmatprep.subr.mxu0 0.0
      %1719 = vmatpush1.msra.mxu0 0.0
      %1720 = vmatprep.subr.mxu0 0.0
      %1721 = vmatpush1.msra.mxu0 0.0
      %1722 = vmatprep.subr.mxu0 0.0
      %1723 = vmatpush1.msra.mxu0 0.0
      %1724 = vmatprep.subr.mxu0 0.0
      %1725 = vmatpush1.msra.mxu0 0.0
      %1726 = vmatprep.subr.mxu0 0.0
      %1727 = vmatpush1.msra.mxu0 0.0
      %1728 = vmatprep.subr.mxu0 0.0
      %1729 = vmatpush1.msra.mxu0 0.0
      %1730 = vmatprep.subr.mxu0 0.0
      %1731 = vmatpush1.msra.mxu0 0.0
      %1732 = vmatprep.subr.mxu0 0.0
      %1733 = vmatpush1.msra.mxu0 0.0
      %1734 = vmatprep.subr.mxu0 0.0
      %1735 = vmatpush1.msra.mxu0 0.0
      %1736 = vmatprep.subr.mxu0 0.0
      %1737 = vmatpush1.msra.mxu0 0.0
      %1738 = vmatprep.subr.mxu0 0.0
      %1739 = vmatpush1.msra.mxu0 0.0
      %1740 = vmatprep.subr.mxu0 0.0
      %1741 = vmatpush1.msra.mxu0 0.0
      %1742 = vmatprep.subr.mxu0 0.0
      %1743 = vmatpush1.msra.mxu0 0.0
      %1744 = vmatprep.subr.mxu0 0.0
      %1745 = vmatpush1.msra.mxu0 0.0
      %1746 = vmatprep.mubr.f32.mxu0 0.0
      %1747 = vmatmul.mubr.f32.gmra.mrb[0].mxu0 %v1680
      %v1748 = vpop.f32.mrb[0].mxu0
      %v1749 = vadd.f32 %v1650, %v1748
      %v1750 = vpop.f32.mrb[0].mxu0
      %v1751 = vadd.f32 %v1650, %v1750
      %1752 = vdwg.mxu0
      %v1753 = vmax.f32 %v1749, 0.0
      %v1754 = vmax.f32 %v1751, 0.0
      %1755 = vst [vmem:[#allocation2 + $0x10] sm:$0xff] %v1753
      %1756 = vst [vmem:[#allocation2 + $0x18] sm:$0xff] %v1754
      %v1757 = vld [vmem:[#allocation2 + $0x8] sm:$0xff]
      %v1758 = vld [vmem:[#allocation2 + $0x10] sm:$0xff]
      %v1759 = vld [vmem:[#allocation2 + $0x18] sm:$0xff]
      %s1760 = scalar_lea.vmem %s1, 6
      %v1761 = vld [vmem:[%s1760] ss:$8 sm:$0x3]
      %v1763 = vlaneseq
      %v1764 = vshrl.u32 %v1763, 7
      %v1765 = vsub.s32 0, %v1764
      %v1766 = vrot.slane %v1761, %v1765
      %v1767 = vlaneseq
      %v1768 = vshrl.u32 %v1767, 7
      %v1769 = vsub.s32 1, %v1768
      %v1770 = vrot.slane %v1761, %v1769
      %1771 = vrot.lane.b32.xlu0 %v1766, 26
      %v1772 = vpop.permute.xlu0 %1771
      %1773 = vrot.lane.b32.xlu0 %v1770, 26
      %v1774 = vpop.permute.xlu0 %1773
      %vm1775 = vcmask 211968
      %v1776 = vsel %vm1775, %v1772, %v1774
      %v1780 = vmul.f32 %v1757, %v1772
      %v1781 = vmul.f32 %v1758, %v1776
      %v1782 = vmul.f32 %v1759, %v1774
      %1786 = vrot.lane.b32.xlu0 %v1780, 102
      %v1787 = vpop.permute.xlu0 %1786
      %1788 = vrot.lane.b32.xlu0 %v1781, 102
      %v1789 = vpop.permute.xlu0 %1788
      %1790 = vrot.lane.b32.xlu0 %v1782, 102
      %v1791 = vpop.permute.xlu0 %1790
      %vm1792 = vcmask 834560
      %v1793 = vsel %vm1792, %v1787, %v1789
      %v1794 = vsel %vm1792, %v1789, %v1791
      %1797 = vst [vmem:[#allocation3] sm:$0xff] %v1793
      %1798 = vst [vmem:[#allocation3 + $0x8] sm:$0xff] %v1794
      %v1799 = vld [vmem:[#allocation2 + $0x8] sm:$0xff]
      %v1800 = vld [vmem:[#allocation2 + $0x10] sm:$0xff]
      %v1801 = vld [vmem:[#allocation2 + $0x18] sm:$0xff]
      %1805 = vrot.lane.b32.xlu0 %v1799, 96
      %v1806 = vpop.permute.xlu0 %1805
      %1807 = vrot.lane.b32.xlu0 %v1800, 96
      %v1808 = vpop.permute.xlu0 %1807
      %1809 = vrot.lane.b32.xlu0 %v1801, 96
      %v1810 = vpop.permute.xlu0 %1809
      %v1811 = vsel %vm1497, %v1806, %v1808
      %v1812 = vsel %vm1497, %v1808, %v1810
      %1815 = vst [vmem:[#allocation3 + $0x10] sm:$0xff] %v1811
      %1816 = vst [vmem:[#allocation3 + $0x18] sm:$0xff] %v1812
      %v1817 = vld [vmem:[#allocation2 + $0x8] sm:$0xff]
      %v1818 = vld [vmem:[#allocation2 + $0x10] sm:$0xff]
      %v1819 = vld [vmem:[#allocation2 + $0x18] sm:$0xff]
      %s1820 = scalar_lea.vmem %s1, 16
      %v1821 = vld [vmem:[%s1820] ss:$8 sm:$0x3]
      %v1823 = vlaneseq
      %v1824 = vshrl.u32 %v1823, 7
      %v1825 = vsub.s32 0, %v1824
      %v1826 = vrot.slane %v1821, %v1825
      %v1827 = vlaneseq
      %v1828 = vshrl.u32 %v1827, 7
      %v1829 = vsub.s32 1, %v1828
      %v1830 = vrot.slane %v1821, %v1829
      %1831 = vrot.lane.b32.xlu0 %v1826, 38
      %v1832 = vpop.permute.xlu0 %1831
      %1833 = vrot.lane.b32.xlu0 %v1830, 38
      %v1834 = vpop.permute.xlu0 %1833
      %vm1835 = vcmask 310272
      %v1836 = vsel %vm1835, %v1832, %v1834
      %v1840 = vmul.f32 %v1817, %v1832
      %v1841 = vmul.f32 %v1818, %v1836
      %v1842 = vmul.f32 %v1819, %v1834
      %1846 = vrot.lane.b32.xlu0 %v1840, 90
      %v1847 = vpop.permute.xlu0 %1846
      %1848 = vrot.lane.b32.xlu0 %v1841, 90
      %v1849 = vpop.permute.xlu0 %1848
      %1850 = vrot.lane.b32.xlu0 %v1842, 90
      %v1851 = vpop.permute.xlu0 %1850
      %vm1852 = vcmask 736256
      %v1853 = vsel %vm1852, %v1847, %v1849
      %v1854 = vsel %vm1852, %v1849, %v1851
      %1857 = vst [vmem:[#allocation3 + $0x20] sm:$0xff] %v1853
      %1858 = vst [vmem:[#allocation3 + $0x28] sm:$0xff] %v1854
      %v1859 = vld [vmem:[#allocation2 + $0x8] sm:$0xff]
      %v1860 = vld [vmem:[#allocation2 + $0x10] sm:$0xff]
      %v1861 = vld [vmem:[#allocation2 + $0x18] sm:$0xff]
      %v1862 = vld [vmem:[%s1760] ss:$8 sm:$0x3]
      %v1864 = vlaneseq
      %v1865 = vshrl.u32 %v1864, 7
      %v1866 = vsub.s32 0, %v1865
      %v1867 = vrot.slane %v1862, %v1866
      %v1868 = vlaneseq
      %v1869 = vshrl.u32 %v1868, 7
      %v1870 = vsub.s32 1, %v1869
      %v1871 = vrot.slane %v1862, %v1870
      %1872 = vrot.lane.b32.xlu0 %v1867, 122
      %v1873 = vpop.permute.xlu0 %1872
      %1874 = vrot.lane.b32.xlu0 %v1871, 122
      %v1875 = vpop.permute.xlu0 %1874
      %vm1876 = vcmask 998400
      %v1877 = vsel %vm1876, %v1873, %v1875
      %v1881 = vmul.f32 %v1859, %v1873
      %v1882 = vmul.f32 %v1860, %v1877
      %v1883 = vmul.f32 %v1861, %v1875
      %1887 = vrot.lane.b32.xlu0 %v1881, 6
      %v1888 = vpop.permute.xlu0 %1887
      %1889 = vrot.lane.b32.xlu0 %v1882, 6
      %v1890 = vpop.permute.xlu0 %1889
      %1891 = vrot.lane.b32.xlu0 %v1883, 6
      %v1892 = vpop.permute.xlu0 %1891
      %vm1893 = vcmask 48128
      %v1894 = vsel %vm1893, %v1888, %v1890
      %v1895 = vsel %vm1893, %v1890, %v1892
      %1898 = vst [vmem:[#allocation3 + $0x30] sm:$0xff] %v1894
      %1899 = vst [vmem:[#allocation3 + $0x38] sm:$0xff] %v1895
      %v1900 = vld [vmem:[#allocation2 + $0x10] sm:$0xff]
      %v1901 = vld [vmem:[#allocation2 + $0x18] sm:$0xff]
      %1902 = vst [vmem:[#allocation3 + $0x40] sm:$0xff] %v1900
      %1903 = vst [vmem:[#allocation3 + $0x48] sm:$0xff] %v1901
      %v1904 = vld [vmem:[#allocation2 + $0x10] sm:$0xff]
      %v1905 = vld [vmem:[#allocation2 + $0x18] sm:$0xff]
      %v1906 = vld [vmem:[#allocation2 + $0x20] sm:$0xff]
      %v1907 = vld [vmem:[%s1820] ss:$8 sm:$0x3]
      %v1909 = vlaneseq
      %v1910 = vshrl.u32 %v1909, 7
      %v1911 = vsub.s32 0, %v1910
      %v1912 = vrot.slane %v1907, %v1911
      %v1913 = vlaneseq
      %v1914 = vshrl.u32 %v1913, 7
      %v1915 = vsub.s32 1, %v1914
      %v1916 = vrot.slane %v1907, %v1915
      %1917 = vrot.lane.b32.xlu0 %v1912, 6
      %v1918 = vpop.permute.xlu0 %1917
      %1919 = vrot.lane.b32.xlu0 %v1916, 6
      %v1920 = vpop.permute.xlu0 %1919
      %v1921 = vsel %vm1893, %v1918, %v1920
      %v1925 = vmul.f32 %v1904, %v1918
      %v1926 = vmul.f32 %v1905, %v1921
      %v1927 = vmul.f32 %v1906, %v1920
      %1931 = vrot.lane.b32.xlu0 %v1925, 122
      %v1932 = vpop.permute.xlu0 %1931
      %1933 = vrot.lane.b32.xlu0 %v1926, 122
      %v1934 = vpop.permute.xlu0 %1933
      %1935 = vrot.lane.b32.xlu0 %v1927, 122
      %v1936 = vpop.permute.xlu0 %1935
      %v1937 = vsel %vm1876, %v1932, %v1934
      %v1938 = vsel %vm1876, %v1934, %v1936
      %1941 = vst [vmem:[#allocation3 + $0x50] sm:$0xff] %v1937
      %1942 = vst [vmem:[#allocation3 + $0x58] sm:$0xff] %v1938
      %v1943 = vld [vmem:[#allocation2 + $0x10] sm:$0xff]
      %v1944 = vld [vmem:[#allocation2 + $0x18] sm:$0xff]
      %v1945 = vld [vmem:[#allocation2 + $0x20] sm:$0xff]
      %v1946 = vld [vmem:[%s1760] ss:$8 sm:$0x3]
      %v1948 = vlaneseq
      %v1949 = vshrl.u32 %v1948, 7
      %v1950 = vsub.s32 0, %v1949
      %v1951 = vrot.slane %v1946, %v1950
      %v1952 = vlaneseq
      %v1953 = vshrl.u32 %v1952, 7
      %v1954 = vsub.s32 1, %v1953
      %v1955 = vrot.slane %v1946, %v1954
      %1956 = vrot.lane.b32.xlu0 %v1951, 90
      %v1957 = vpop.permute.xlu0 %1956
      %1958 = vrot.lane.b32.xlu0 %v1955, 90
      %v1959 = vpop.permute.xlu0 %1958
      %v1960 = vsel %vm1852, %v1957, %v1959
      %v1964 = vmul.f32 %v1943, %v1957
      %v1965 = vmul.f32 %v1944, %v1960
      %v1966 = vmul.f32 %v1945, %v1959
      %1970 = vrot.lane.b32.xlu0 %v1964, 38
      %v1971 = vpop.permute.xlu0 %1970
      %1972 = vrot.lane.b32.xlu0 %v1965, 38
      %v1973 = vpop.permute.xlu0 %1972
      %1974 = vrot.lane.b32.xlu0 %v1966, 38
      %v1975 = vpop.permute.xlu0 %1974
      %v1976 = vsel %vm1835, %v1971, %v1973
      %v1977 = vsel %vm1835, %v1973, %v1975
      %1980 = vst [vmem:[#allocation3 + $0x60] sm:$0xff] %v1976
      %1981 = vst [vmem:[#allocation3 + $0x68] sm:$0xff] %v1977
      %v1982 = vld [vmem:[#allocation2 + $0x10] sm:$0xff]
      %v1983 = vld [vmem:[#allocation2 + $0x18] sm:$0xff]
      %v1984 = vld [vmem:[#allocation2 + $0x20] sm:$0xff]
      %1988 = vrot.lane.b32.xlu0 %v1982, 32
      %v1989 = vpop.permute.xlu0 %1988
      %1990 = vrot.lane.b32.xlu0 %v1983, 32
      %v1991 = vpop.permute.xlu0 %1990
      %1992 = vrot.lane.b32.xlu0 %v1984, 32
      %v1993 = vpop.permute.xlu0 %1992
      %vm1994 = vcmask 261120
      %v1995 = vsel %vm1994, %v1989, %v1991
      %v1996 = vsel %vm1994, %v1991, %v1993
      %1999 = vst [vmem:[#allocation3 + $0x70] sm:$0xff] %v1995
      %2000 = vst [vmem:[#allocation3 + $0x78] sm:$0xff] %v1996
      %v2001 = vld [vmem:[#allocation2 + $0x10] sm:$0xff]
      %v2002 = vld [vmem:[#allocation2 + $0x18] sm:$0xff]
      %v2003 = vld [vmem:[#allocation2 + $0x20] sm:$0xff]
      %v2004 = vld [vmem:[%s1820] ss:$8 sm:$0x3]
      %v2006 = vlaneseq
      %v2007 = vshrl.u32 %v2006, 7
      %v2008 = vsub.s32 0, %v2007
      %v2009 = vrot.slane %v2004, %v2008
      %v2010 = vlaneseq
      %v2011 = vshrl.u32 %v2010, 7
      %v2012 = vsub.s32 1, %v2011
      %v2013 = vrot.slane %v2004, %v2012
      %2014 = vrot.lane.b32.xlu0 %v2009, 102
      %v2015 = vpop.permute.xlu0 %2014
      %2016 = vrot.lane.b32.xlu0 %v2013, 102
      %v2017 = vpop.permute.xlu0 %2016
      %v2018 = vsel %vm1792, %v2015, %v2017
      %v2022 = vmul.f32 %v2001, %v2015
      %v2023 = vmul.f32 %v2002, %v2018
      %v2024 = vmul.f32 %v2003, %v2017
      %2028 = vrot.lane.b32.xlu0 %v2022, 26
      %v2029 = vpop.permute.xlu0 %2028
      %2030 = vrot.lane.b32.xlu0 %v2023, 26
      %v2031 = vpop.permute.xlu0 %2030
      %2032 = vrot.lane.b32.xlu0 %v2024, 26
      %v2033 = vpop.permute.xlu0 %2032
      %v2034 = vsel %vm1775, %v2029, %v2031
      %v2035 = vsel %vm1775, %v2031, %v2033
      %2038 = vst [vmem:[#allocation3 + $0x80] sm:$0xff] %v2034
      %2039 = vst [vmem:[#allocation3 + $0x88] sm:$0xff] %v2035
      %v2040 = vld [vmem:[%s4] sm:$0xff]
      %v2041 = vld [vmem:[#allocation3] sm:$0xff]
      %v2042 = vld [vmem:[#allocation3 + $0x8] sm:$0xff]
      %v2043 = vld [vmem:[#allocation3 + $0x10] sm:$0xff]
      %v2044 = vld [vmem:[#allocation3 + $0x18] sm:$0xff]
      %v2045 = vld [vmem:[#allocation3 + $0x20] sm:$0xff]
      %v2046 = vld [vmem:[#allocation3 + $0x28] sm:$0xff]
      %v2047 = vld [vmem:[#allocation3 + $0x30] sm:$0xff]
      %v2048 = vld [vmem:[#allocation3 + $0x38] sm:$0xff]
      %v2049 = vld [vmem:[#allocation3 + $0x40] sm:$0xff]
      %v2050 = vld [vmem:[#allocation3 + $0x48] sm:$0xff]
      %v2051 = vld [vmem:[#allocation3 + $0x50] sm:$0xff]
      %v2052 = vld [vmem:[#allocation3 + $0x58] sm:$0xff]
      %v2053 = vld [vmem:[#allocation3 + $0x60] sm:$0xff]
      %v2054 = vld [vmem:[#allocation3 + $0x68] sm:$0xff]
      %v2055 = vld [vmem:[#allocation3 + $0x70] sm:$0xff]
      %v2056 = vld [vmem:[#allocation3 + $0x78] sm:$0xff]
      %v2057 = vld [vmem:[#allocation3 + $0x80] sm:$0xff]
      %v2058 = vld [vmem:[#allocation3 + $0x88] sm:$0xff]
      %v2059 = vld [vmem:[%s5] sm:$0xff]
      %2061 = vset.pattern.permute.xlu0 0
      %2062 = vperm.xlu0 %2061, %v2059
      %v2063 = vpop.permute.xlu0 %2062
      %v2066 = vsel %vm1021, %v2040, 0
      %2068 = vmatprep.subr.mxu0 %v2042
      %2069 = vmatpush1.msra.mxu0 %v2041
      %2070 = vmatprep.subr.mxu0 %v2044
      %2071 = vmatpush1.msra.mxu0 %v2043
      %2072 = vmatprep.subr.mxu0 %v2046
      %2073 = vmatpush1.msra.mxu0 %v2045
      %2074 = vmatprep.subr.mxu0 %v2048
      %2075 = vmatpush1.msra.mxu0 %v2047
      %2076 = vmatprep.subr.mxu0 %v2050
      %2077 = vmatpush1.msra.mxu0 %v2049
      %2078 = vmatprep.subr.mxu0 %v2052
      %2079 = vmatpush1.msra.mxu0 %v2051
      %2080 = vmatprep.subr.mxu0 %v2054
      %2081 = vmatpush1.msra.mxu0 %v2053
      %2082 = vmatprep.subr.mxu0 %v2056
      %2083 = vmatpush1.msra.mxu0 %v2055
      %2084 = vmatprep.subr.mxu0 %v2058
      %2085 = vmatpush1.msra.mxu0 %v2057
      %2086 = vmatprep.subr.mxu0 0.0
      %2087 = vmatpush1.msra.mxu0 0.0
      %2088 = vmatprep.subr.mxu0 0.0
      %2089 = vmatpush1.msra.mxu0 0.0
      %2090 = vmatprep.subr.mxu0 0.0
      %2091 = vmatpush1.msra.mxu0 0.0
      %2092 = vmatprep.subr.mxu0 0.0
      %2093 = vmatpush1.msra.mxu0 0.0
      %2094 = vmatprep.subr.mxu0 0.0
      %2095 = vmatpush1.msra.mxu0 0.0
      %2096 = vmatprep.subr.mxu0 0.0
      %2097 = vmatpush1.msra.mxu0 0.0
      %2098 = vmatprep.subr.mxu0 0.0
      %2099 = vmatpush1.msra.mxu0 0.0
      %2100 = vmatprep.subr.mxu0 0.0
      %2101 = vmatpush1.msra.mxu0 0.0
      %2102 = vmatprep.subr.mxu0 0.0
      %2103 = vmatpush1.msra.mxu0 0.0
      %2104 = vmatprep.subr.mxu0 0.0
      %2105 = vmatpush1.msra.mxu0 0.0
      %2106 = vmatprep.subr.mxu0 0.0
      %2107 = vmatpush1.msra.mxu0 0.0
      %2108 = vmatprep.subr.mxu0 0.0
      %2109 = vmatpush1.msra.mxu0 0.0
      %2110 = vmatprep.subr.mxu0 0.0
      %2111 = vmatpush1.msra.mxu0 0.0
      %2112 = vmatprep.subr.mxu0 0.0
      %2113 = vmatpush1.msra.mxu0 0.0
      %2114 = vmatprep.subr.mxu0 0.0
      %2115 = vmatpush1.msra.mxu0 0.0
      %2116 = vmatprep.subr.mxu0 0.0
      %2117 = vmatpush1.msra.mxu0 0.0
      %2118 = vmatprep.subr.mxu0 0.0
      %2119 = vmatpush1.msra.mxu0 0.0
      %2120 = vmatprep.subr.mxu0 0.0
      %2121 = vmatpush1.msra.mxu0 0.0
      %2122 = vmatprep.subr.mxu0 0.0
      %2123 = vmatpush1.msra.mxu0 0.0
      %2124 = vmatprep.subr.mxu0 0.0
      %2125 = vmatpush1.msra.mxu0 0.0
      %2126 = vmatprep.subr.mxu0 0.0
      %2127 = vmatpush1.msra.mxu0 0.0
      %2128 = vmatprep.subr.mxu0 0.0
      %2129 = vmatpush1.msra.mxu0 0.0
      %2130 = vmatprep.subr.mxu0 0.0
      %2131 = vmatpush1.msra.mxu0 0.0
      %2132 = vmatprep.mubr.f32.mxu0 0.0
      %2133 = vmatmul.mubr.f32.gmra.mrb[0].mxu0 %v2066
      %v2134 = vpop.f32.mrb[0].mxu0
      %v2135 = vadd.f32 %v2063, %v2134
      %v2136 = vpop.f32.mrb[0].mxu0
      %v2137 = vadd.f32 %v2063, %v2136
      %2138 = vdwg.mxu0
      %2139 = vst [vmem:[#allocation2 + $0x10] sm:$0xff] %v2135
      %2140 = vst [vmem:[#allocation2 + $0x18] sm:$0xff] %v2137
      %2141 = vst [vmem:[#allocation2 + $0x40] sm:$0xff] %v1092
      %2142 = vst [vmem:[#allocation2 + $0x48] sm:$0xff] %v1094
      %2143 = vst [vmem:[#allocation2 + $0x70] sm:$0xff] %v708
      %2144 = vst [vmem:[#allocation2 + $0x78] sm:$0xff] %v709
      %v2145 = vld [vmem:[%s12] sm:$0xff]
      %v2146 = vld [vmem:[%s12 + $0x8] sm:$0xff]
      %v2147 = vld [vmem:[%s12 + $0x10] sm:$0xff]
      %v2148 = vld [vmem:[#allocation2 + $0x8] sm:$0xff]
      %v2149 = vld [vmem:[#allocation2 + $0x10] sm:$0xff]
      %v2150 = vld [vmem:[#allocation2 + $0x18] sm:$0xff]
      %v2151 = vld [vmem:[#allocation2 + $0x38] sm:$0xff]
      %v2152 = vld [vmem:[#allocation2 + $0x40] sm:$0xff]
      %v2153 = vld [vmem:[#allocation2 + $0x48] sm:$0xff]
      %v2154 = vld [vmem:[#allocation2 + $0x68] sm:$0xff]
      %v2155 = vld [vmem:[#allocation2 + $0x70] sm:$0xff]
      %v2156 = vld [vmem:[#allocation2 + $0x78] sm:$0xff]
      %v2157 = vld [vmem:[%s1] ss:$8 sm:$0x3]
      %v2159 = vlaneseq
      %v2160 = vshrl.u32 %v2159, 7
      %v2161 = vsub.s32 0, %v2160
      %v2162 = vrot.slane %v2157, %v2161
      %v2163 = vlaneseq
      %v2164 = vshrl.u32 %v2163, 7
      %v2165 = vsub.s32 1, %v2164
      %v2166 = vrot.slane %v2157, %v2165
      %2167 = vrot.lane.b32.xlu0 %v2162, 111
      %v2168 = vpop.permute.xlu0 %2167
      %2169 = vrot.lane.b32.xlu0 %v2166, 111
      %v2170 = vpop.permute.xlu0 %2169
      %v2171 = vsel %vm1122, %v2168, %v2170
      %v2175 = vmul.f32 %v2148, %v2168
      %v2176 = vmul.f32 %v2149, %v2171
      %v2177 = vmul.f32 %v2150, %v2170
      %v2178 = vmul.f32 %v2151, %v2168
      %v2179 = vmul.f32 %v2152, %v2171
      %v2180 = vmul.f32 %v2153, %v2170
      %v2181 = vmul.f32 %v2154, %v2168
      %v2182 = vmul.f32 %v2155, %v2171
      %v2183 = vmul.f32 %v2156, %v2170
      %2185 = vset.pattern.permute.xlu0 0
      %2186 = vperm.xlu0 %2185, %v2145
      %v2187 = vpop.permute.xlu0 %2186
      %2190 = vset.pattern.permute.xlu0 0
      %2191 = vperm.xlu0 %2190, %v2146
      %v2192 = vpop.permute.xlu0 %2191
      %2195 = vset.pattern.permute.xlu0 0
      %2196 = vperm.xlu0 %2195, %v2147
      %v2197 = vpop.permute.xlu0 %2196
      %v2199 = vmul.f32 %v2187, %v2175
      %v2200 = vmul.f32 %v2187, %v2176
      %v2201 = vmul.f32 %v2187, %v2177
      %v2202 = vmul.f32 %v2192, %v2178
      %v2203 = vmul.f32 %v2192, %v2179
      %v2204 = vmul.f32 %v2192, %v2180
      %v2205 = vmul.f32 %v2197, %v2181
      %v2206 = vmul.f32 %v2197, %v2182
      %v2207 = vmul.f32 %v2197, %v2183
      %v2208 = vadd.f32 %v2199, 0.0
      %v2209 = vadd.f32 %v2200, 0.0
      %v2210 = vadd.f32 %v2201, 0.0
      %v2211 = vadd.f32 %v2202, 0.0
      %v2212 = vadd.f32 %v2203, 0.0
      %v2213 = vadd.f32 %v2204, 0.0
      %v2214 = vadd.f32 %v2205, 0.0
      %v2215 = vadd.f32 %v2206, 0.0
      %v2216 = vadd.f32 %v2207, 0.0
      %2217 = vset.pattern.permute.xlu0 1
      %2218 = vperm.xlu0 %2217, %v2145
      %v2219 = vpop.permute.xlu0 %2218
      %2221 = vset.pattern.permute.xlu0 1
      %2222 = vperm.xlu0 %2221, %v2146
      %v2223 = vpop.permute.xlu0 %2222
      %2225 = vset.pattern.permute.xlu0 1
      %2226 = vperm.xlu0 %2225, %v2147
      %v2227 = vpop.permute.xlu0 %2226
      %v2229 = vmul.f32 %v2219, %v2148
      %v2230 = vmul.f32 %v2219, %v2149
      %v2231 = vmul.f32 %v2219, %v2150
      %v2232 = vmul.f32 %v2223, %v2151
      %v2233 = vmul.f32 %v2223, %v2152
      %v2234 = vmul.f32 %v2223, %v2153
      %v2235 = vmul.f32 %v2227, %v2154
      %v2236 = vmul.f32 %v2227, %v2155
      %v2237 = vmul.f32 %v2227, %v2156
      %2247 = vrot.lane.b32.xlu0 %v2229, 127
      %v2248 = vpop.permute.xlu0 %2247
      %2249 = vrot.lane.b32.xlu0 %v2230, 127
      %v2250 = vpop.permute.xlu0 %2249
      %2251 = vrot.lane.b32.xlu0 %v2231, 127
      %v2252 = vpop.permute.xlu0 %2251
      %2253 = vrot.lane.b32.xlu0 %v2232, 127
      %v2254 = vpop.permute.xlu0 %2253
      %2255 = vrot.lane.b32.xlu0 %v2233, 127
      %v2256 = vpop.permute.xlu0 %2255
      %2257 = vrot.lane.b32.xlu0 %v2234, 127
      %v2258 = vpop.permute.xlu0 %2257
      %2259 = vrot.lane.b32.xlu0 %v2235, 127
      %v2260 = vpop.permute.xlu0 %2259
      %2261 = vrot.lane.b32.xlu0 %v2236, 127
      %v2262 = vpop.permute.xlu0 %2261
      %2263 = vrot.lane.b32.xlu0 %v2237, 127
      %v2264 = vpop.permute.xlu0 %2263
      %v2265 = vsel %vm1187, %v2248, %v2250
      %v2266 = vsel %vm1187, %v2250, %v2252
      %v2267 = vsel %vm1187, %v2254, %v2256
      %v2268 = vsel %vm1187, %v2256, %v2258
      %v2269 = vsel %vm1187, %v2260, %v2262
      %v2270 = vsel %vm1187, %v2262, %v2264
      %v2280 = vadd.f32 %v2208, %v2265
      %v2281 = vadd.f32 %v2209, %v2266
      %v2282 = vadd.f32 %v2210, %v2252
      %v2283 = vadd.f32 %v2211, %v2267
      %v2284 = vadd.f32 %v2212, %v2268
      %v2285 = vadd.f32 %v2213, %v2258
      %v2286 = vadd.f32 %v2214, %v2269
      %v2287 = vadd.f32 %v2215, %v2270
      %v2288 = vadd.f32 %v2216, %v2264
      %v2289 = vld [vmem:[%s1204] ss:$8 sm:$0x3]
      %v2291 = vlaneseq
      %v2292 = vshrl.u32 %v2291, 7
      %v2293 = vsub.s32 0, %v2292
      %v2294 = vrot.slane %v2289, %v2293
      %v2295 = vlaneseq
      %v2296 = vshrl.u32 %v2295, 7
      %v2297 = vsub.s32 1, %v2296
      %v2298 = vrot.slane %v2289, %v2297
      %2299 = vrot.lane.b32.xlu0 %v2294, 113
      %v2300 = vpop.permute.xlu0 %2299
      %2301 = vrot.lane.b32.xlu0 %v2298, 113
      %v2302 = vpop.permute.xlu0 %2301
      %v2303 = vsel %vm1219, %v2300, %v2302
      %v2307 = vmul.f32 %v2148, %v2300
      %v2308 = vmul.f32 %v2149, %v2303
      %v2309 = vmul.f32 %v2150, %v2302
      %v2310 = vmul.f32 %v2151, %v2300
      %v2311 = vmul.f32 %v2152, %v2303
      %v2312 = vmul.f32 %v2153, %v2302
      %v2313 = vmul.f32 %v2154, %v2300
      %v2314 = vmul.f32 %v2155, %v2303
      %v2315 = vmul.f32 %v2156, %v2302
      %2316 = vset.pattern.permute.xlu0 2
      %2317 = vperm.xlu0 %2316, %v2145
      %v2318 = vpop.permute.xlu0 %2317
      %2320 = vset.pattern.permute.xlu0 2
      %2321 = vperm.xlu0 %2320, %v2146
      %v2322 = vpop.permute.xlu0 %2321
      %2324 = vset.pattern.permute.xlu0 2
      %2325 = vperm.xlu0 %2324, %v2147
      %v2326 = vpop.permute.xlu0 %2325
      %v2328 = vmul.f32 %v2318, %v2307
      %v2329 = vmul.f32 %v2318, %v2308
      %v2330 = vmul.f32 %v2318, %v2309
      %v2331 = vmul.f32 %v2322, %v2310
      %v2332 = vmul.f32 %v2322, %v2311
      %v2333 = vmul.f32 %v2322, %v2312
      %v2334 = vmul.f32 %v2326, %v2313
      %v2335 = vmul.f32 %v2326, %v2314
      %v2336 = vmul.f32 %v2326, %v2315
      %2346 = vrot.lane.b32.xlu0 %v2328, 126
      %v2347 = vpop.permute.xlu0 %2346
      %2348 = vrot.lane.b32.xlu0 %v2329, 126
      %v2349 = vpop.permute.xlu0 %2348
      %2350 = vrot.lane.b32.xlu0 %v2330, 126
      %v2351 = vpop.permute.xlu0 %2350
      %2352 = vrot.lane.b32.xlu0 %v2331, 126
      %v2353 = vpop.permute.xlu0 %2352
      %2354 = vrot.lane.b32.xlu0 %v2332, 126
      %v2355 = vpop.permute.xlu0 %2354
      %2356 = vrot.lane.b32.xlu0 %v2333, 126
      %v2357 = vpop.permute.xlu0 %2356
      %2358 = vrot.lane.b32.xlu0 %v2334, 126
      %v2359 = vpop.permute.xlu0 %2358
      %2360 = vrot.lane.b32.xlu0 %v2335, 126
      %v2361 = vpop.permute.xlu0 %2360
      %2362 = vrot.lane.b32.xlu0 %v2336, 126
      %v2363 = vpop.permute.xlu0 %2362
      %v2364 = vsel %vm1262, %v2347, %v2349
      %v2365 = vsel %vm1262, %v2349, %v2351
      %v2366 = vsel %vm1262, %v2353, %v2355
      %v2367 = vsel %vm1262, %v2355, %v2357
      %v2368 = vsel %vm1262, %v2359, %v2361
      %v2369 = vsel %vm1262, %v2361, %v2363
      %v2379 = vadd.f32 %v2280, %v2364
      %v2380 = vadd.f32 %v2281, %v2365
      %v2381 = vadd.f32 %v2282, %v2351
      %v2382 = vadd.f32 %v2283, %v2366
      %v2383 = vadd.f32 %v2284, %v2367
      %v2384 = vadd.f32 %v2285, %v2357
      %v2385 = vadd.f32 %v2286, %v2368
      %v2386 = vadd.f32 %v2287, %v2369
      %v2387 = vadd.f32 %v2288, %v2363
      %2388 = vrot.lane.b32.xlu0 %v2162, 127
      %v2389 = vpop.permute.xlu0 %2388
      %2390 = vrot.lane.b32.xlu0 %v2166, 127
      %v2391 = vpop.permute.xlu0 %2390
      %v2392 = vsel %vm1187, %v2389, %v2391
      %v2396 = vmul.f32 %v2148, %v2389
      %v2397 = vmul.f32 %v2149, %v2392
      %v2398 = vmul.f32 %v2150, %v2391
      %v2399 = vmul.f32 %v2151, %v2389
      %v2400 = vmul.f32 %v2152, %v2392
      %v2401 = vmul.f32 %v2153, %v2391
      %v2402 = vmul.f32 %v2154, %v2389
      %v2403 = vmul.f32 %v2155, %v2392
      %v2404 = vmul.f32 %v2156, %v2391
      %2405 = vset.pattern.permute.xlu0 3
      %2406 = vperm.xlu0 %2405, %v2145
      %v2407 = vpop.permute.xlu0 %2406
      %2409 = vset.pattern.permute.xlu0 3
      %2410 = vperm.xlu0 %2409, %v2146
      %v2411 = vpop.permute.xlu0 %2410
      %2413 = vset.pattern.permute.xlu0 3
      %2414 = vperm.xlu0 %2413, %v2147
      %v2415 = vpop.permute.xlu0 %2414
      %v2417 = vmul.f32 %v2407, %v2396
      %v2418 = vmul.f32 %v2407, %v2397
      %v2419 = vmul.f32 %v2407, %v2398
      %v2420 = vmul.f32 %v2411, %v2399
      %v2421 = vmul.f32 %v2411, %v2400
      %v2422 = vmul.f32 %v2411, %v2401
      %v2423 = vmul.f32 %v2415, %v2402
      %v2424 = vmul.f32 %v2415, %v2403
      %v2425 = vmul.f32 %v2415, %v2404
      %2435 = vrot.lane.b32.xlu0 %v2417, 112
      %v2436 = vpop.permute.xlu0 %2435
      %2437 = vrot.lane.b32.xlu0 %v2418, 112
      %v2438 = vpop.permute.xlu0 %2437
      %2439 = vrot.lane.b32.xlu0 %v2419, 112
      %v2440 = vpop.permute.xlu0 %2439
      %2441 = vrot.lane.b32.xlu0 %v2420, 112
      %v2442 = vpop.permute.xlu0 %2441
      %2443 = vrot.lane.b32.xlu0 %v2421, 112
      %v2444 = vpop.permute.xlu0 %2443
      %2445 = vrot.lane.b32.xlu0 %v2422, 112
      %v2446 = vpop.permute.xlu0 %2445
      %2447 = vrot.lane.b32.xlu0 %v2423, 112
      %v2448 = vpop.permute.xlu0 %2447
      %2449 = vrot.lane.b32.xlu0 %v2424, 112
      %v2450 = vpop.permute.xlu0 %2449
      %2451 = vrot.lane.b32.xlu0 %v2425, 112
      %v2452 = vpop.permute.xlu0 %2451
      %v2453 = vsel %vm1325, %v2436, %v2438
      %v2454 = vsel %vm1325, %v2438, %v2440
      %v2455 = vsel %vm1325, %v2442, %v2444
      %v2456 = vsel %vm1325, %v2444, %v2446
      %v2457 = vsel %vm1325, %v2448, %v2450
      %v2458 = vsel %vm1325, %v2450, %v2452
      %v2468 = vadd.f32 %v2379, %v2453
      %v2469 = vadd.f32 %v2380, %v2454
      %v2470 = vadd.f32 %v2381, %v2440
      %v2471 = vadd.f32 %v2382, %v2455
      %v2472 = vadd.f32 %v2383, %v2456
      %v2473 = vadd.f32 %v2384, %v2446
      %v2474 = vadd.f32 %v2385, %v2457
      %v2475 = vadd.f32 %v2386, %v2458
      %v2476 = vadd.f32 %v2387, %v2452
      %2477 = vset.pattern.permute.xlu0 4
      %2478 = vperm.xlu0 %2477, %v2145
      %v2479 = vpop.permute.xlu0 %2478
      %2481 = vset.pattern.permute.xlu0 4
      %2482 = vperm.xlu0 %2481, %v2146
      %v2483 = vpop.permute.xlu0 %2482
      %2485 = vset.pattern.permute.xlu0 4
      %2486 = vperm.xlu0 %2485, %v2147
      %v2487 = vpop.permute.xlu0 %2486
      %v2489 = vmul.f32 %v2479, %v2149
      %v2490 = vmul.f32 %v2479, %v2150
      %v2491 = vmul.f32 %v2483, %v2152
      %v2492 = vmul.f32 %v2483, %v2153
      %v2493 = vmul.f32 %v2487, %v2155
      %v2494 = vmul.f32 %v2487, %v2156
      %2501 = vrot.lane.b32.xlu0 %v2489, 111
      %v2502 = vpop.permute.xlu0 %2501
      %2503 = vrot.lane.b32.xlu0 %v2490, 111
      %v2504 = vpop.permute.xlu0 %2503
      %2505 = vrot.lane.b32.xlu0 %v2491, 111
      %v2506 = vpop.permute.xlu0 %2505
      %2507 = vrot.lane.b32.xlu0 %v2492, 111
      %v2508 = vpop.permute.xlu0 %2507
      %2509 = vrot.lane.b32.xlu0 %v2493, 111
      %v2510 = vpop.permute.xlu0 %2509
      %2511 = vrot.lane.b32.xlu0 %v2494, 111
      %v2512 = vpop.permute.xlu0 %2511
      %v2513 = vsel %vm1122, %v2502, %v2504
      %v2514 = vsel %vm1122, %v2506, %v2508
      %v2515 = vsel %vm1122, %v2510, %v2512
      %v2525 = vadd.f32 %v2468, %v2502
      %v2526 = vadd.f32 %v2469, %v2513
      %v2527 = vadd.f32 %v2470, %v2504
      %v2528 = vadd.f32 %v2471, %v2506
      %v2529 = vadd.f32 %v2472, %v2514
      %v2530 = vadd.f32 %v2473, %v2508
      %v2531 = vadd.f32 %v2474, %v2510
      %v2532 = vadd.f32 %v2475, %v2515
      %v2533 = vadd.f32 %v2476, %v2512
      %v2534 = vld [vmem:[#allocation2 + $0x10] sm:$0xff]
      %v2535 = vld [vmem:[#allocation2 + $0x18] sm:$0xff]
      %v2536 = vld [vmem:[#allocation2 + $0x20] sm:$0xff]
      %v2537 = vld [vmem:[#allocation2 + $0x40] sm:$0xff]
      %v2538 = vld [vmem:[#allocation2 + $0x48] sm:$0xff]
      %v2539 = vld [vmem:[#allocation2 + $0x50] sm:$0xff]
      %v2540 = vld [vmem:[#allocation2 + $0x70] sm:$0xff]
      %v2541 = vld [vmem:[#allocation2 + $0x78] sm:$0xff]
      %v2542 = vld [vmem:[#allocation2 + $0x80] sm:$0xff]
      %2543 = vrot.lane.b32.xlu0 %v2294, 1
      %v2544 = vpop.permute.xlu0 %2543
      %2545 = vrot.lane.b32.xlu0 %v2298, 1
      %v2546 = vpop.permute.xlu0 %2545
      %v2547 = vsel %vm1390, %v2544, %v2546
      %v2551 = vmul.f32 %v2534, %v2544
      %v2552 = vmul.f32 %v2535, %v2547
      %v2553 = vmul.f32 %v2536, %v2546
      %v2554 = vmul.f32 %v2537, %v2544
      %v2555 = vmul.f32 %v2538, %v2547
      %v2556 = vmul.f32 %v2539, %v2546
      %v2557 = vmul.f32 %v2540, %v2544
      %v2558 = vmul.f32 %v2541, %v2547
      %v2559 = vmul.f32 %v2542, %v2546
      %2560 = vset.pattern.permute.xlu0 5
      %2561 = vperm.xlu0 %2560, %v2145
      %v2562 = vpop.permute.xlu0 %2561
      %2564 = vset.pattern.permute.xlu0 5
      %2565 = vperm.xlu0 %2564, %v2146
      %v2566 = vpop.permute.xlu0 %2565
      %2568 = vset.pattern.permute.xlu0 5
      %2569 = vperm.xlu0 %2568, %v2147
      %v2570 = vpop.permute.xlu0 %2569
      %v2572 = vmul.f32 %v2562, %v2551
      %v2573 = vmul.f32 %v2562, %v2552
      %v2574 = vmul.f32 %v2562, %v2553
      %v2575 = vmul.f32 %v2566, %v2554
      %v2576 = vmul.f32 %v2566, %v2555
      %v2577 = vmul.f32 %v2566, %v2556
      %v2578 = vmul.f32 %v2570, %v2557
      %v2579 = vmul.f32 %v2570, %v2558
      %v2580 = vmul.f32 %v2570, %v2559
      %2590 = vrot.lane.b32.xlu0 %v2572, 110
      %v2591 = vpop.permute.xlu0 %2590
      %2592 = vrot.lane.b32.xlu0 %v2573, 110
      %v2593 = vpop.permute.xlu0 %2592
      %2594 = vrot.lane.b32.xlu0 %v2574, 110
      %v2595 = vpop.permute.xlu0 %2594
      %2596 = vrot.lane.b32.xlu0 %v2575, 110
      %v2597 = vpop.permute.xlu0 %2596
      %2598 = vrot.lane.b32.xlu0 %v2576, 110
      %v2599 = vpop.permute.xlu0 %2598
      %2600 = vrot.lane.b32.xlu0 %v2577, 110
      %v2601 = vpop.permute.xlu0 %2600
      %2602 = vrot.lane.b32.xlu0 %v2578, 110
      %v2603 = vpop.permute.xlu0 %2602
      %2604 = vrot.lane.b32.xlu0 %v2579, 110
      %v2605 = vpop.permute.xlu0 %2604
      %2606 = vrot.lane.b32.xlu0 %v2580, 110
      %v2607 = vpop.permute.xlu0 %2606
      %v2608 = vsel %vm1433, %v2591, %v2593
      %v2609 = vsel %vm1433, %v2593, %v2595
      %v2610 = vsel %vm1433, %v2597, %v2599
      %v2611 = vsel %vm1433, %v2599, %v2601
      %v2612 = vsel %vm1433, %v2603, %v2605
      %v2613 = vsel %vm1433, %v2605, %v2607
      %v2623 = vadd.f32 %v2525, %v2591
      %v2624 = vadd.f32 %v2526, %v2608
      %v2625 = vadd.f32 %v2527, %v2609
      %v2626 = vadd.f32 %v2528, %v2597
      %v2627 = vadd.f32 %v2529, %v2610
      %v2628 = vadd.f32 %v2530, %v2611
      %v2629 = vadd.f32 %v2531, %v2603
      %v2630 = vadd.f32 %v2532, %v2612
      %v2631 = vadd.f32 %v2533, %v2613
      %2632 = vrot.lane.b32.xlu0 %v2162, 15
      %v2633 = vpop.permute.xlu0 %2632
      %2634 = vrot.lane.b32.xlu0 %v2166, 15
      %v2635 = vpop.permute.xlu0 %2634
      %v2636 = vsel %vm1454, %v2633, %v2635
      %v2640 = vmul.f32 %v2534, %v2633
      %v2641 = vmul.f32 %v2535, %v2636
      %v2642 = vmul.f32 %v2536, %v2635
      %v2643 = vmul.f32 %v2537, %v2633
      %v2644 = vmul.f32 %v2538, %v2636
      %v2645 = vmul.f32 %v2539, %v2635
      %v2646 = vmul.f32 %v2540, %v2633
      %v2647 = vmul.f32 %v2541, %v2636
      %v2648 = vmul.f32 %v2542, %v2635
      %2649 = vset.pattern.permute.xlu0 6
      %2650 = vperm.xlu0 %2649, %v2145
      %v2651 = vpop.permute.xlu0 %2650
      %2653 = vset.pattern.permute.xlu0 6
      %2654 = vperm.xlu0 %2653, %v2146
      %v2655 = vpop.permute.xlu0 %2654
      %2657 = vset.pattern.permute.xlu0 6
      %2658 = vperm.xlu0 %2657, %v2147
      %v2659 = vpop.permute.xlu0 %2658
      %v2661 = vmul.f32 %v2651, %v2640
      %v2662 = vmul.f32 %v2651, %v2641
      %v2663 = vmul.f32 %v2651, %v2642
      %v2664 = vmul.f32 %v2655, %v2643
      %v2665 = vmul.f32 %v2655, %v2644
      %v2666 = vmul.f32 %v2655, %v2645
      %v2667 = vmul.f32 %v2659, %v2646
      %v2668 = vmul.f32 %v2659, %v2647
      %v2669 = vmul.f32 %v2659, %v2648
      %2679 = vrot.lane.b32.xlu0 %v2661, 96
      %v2680 = vpop.permute.xlu0 %2679
      %2681 = vrot.lane.b32.xlu0 %v2662, 96
      %v2682 = vpop.permute.xlu0 %2681
      %2683 = vrot.lane.b32.xlu0 %v2663, 96
      %v2684 = vpop.permute.xlu0 %2683
      %2685 = vrot.lane.b32.xlu0 %v2664, 96
      %v2686 = vpop.permute.xlu0 %2685
      %2687 = vrot.lane.b32.xlu0 %v2665, 96
      %v2688 = vpop.permute.xlu0 %2687
      %2689 = vrot.lane.b32.xlu0 %v2666, 96
      %v2690 = vpop.permute.xlu0 %2689
      %2691 = vrot.lane.b32.xlu0 %v2667, 96
      %v2692 = vpop.permute.xlu0 %2691
      %2693 = vrot.lane.b32.xlu0 %v2668, 96
      %v2694 = vpop.permute.xlu0 %2693
      %2695 = vrot.lane.b32.xlu0 %v2669, 96
      %v2696 = vpop.permute.xlu0 %2695
      %v2697 = vsel %vm1497, %v2680, %v2682
      %v2698 = vsel %vm1497, %v2682, %v2684
      %v2699 = vsel %vm1497, %v2686, %v2688
      %v2700 = vsel %vm1497, %v2688, %v2690
      %v2701 = vsel %vm1497, %v2692, %v2694
      %v2702 = vsel %vm1497, %v2694, %v2696
      %v2712 = vadd.f32 %v2623, %v2680
      %v2713 = vadd.f32 %v2624, %v2697
      %v2714 = vadd.f32 %v2625, %v2698
      %v2715 = vadd.f32 %v2626, %v2686
      %v2716 = vadd.f32 %v2627, %v2699
      %v2717 = vadd.f32 %v2628, %v2700
      %v2718 = vadd.f32 %v2629, %v2692
      %v2719 = vadd.f32 %v2630, %v2701
      %v2720 = vadd.f32 %v2631, %v2702
      %2721 = vset.pattern.permute.xlu0 7
      %2722 = vperm.xlu0 %2721, %v2145
      %v2723 = vpop.permute.xlu0 %2722
      %2725 = vset.pattern.permute.xlu0 7
      %2726 = vperm.xlu0 %2725, %v2146
      %v2727 = vpop.permute.xlu0 %2726
      %2729 = vset.pattern.permute.xlu0 7
      %2730 = vperm.xlu0 %2729, %v2147
      %v2731 = vpop.permute.xlu0 %2730
      %v2733 = vmul.f32 %v2723, %v2534
      %v2734 = vmul.f32 %v2723, %v2535
      %v2735 = vmul.f32 %v2723, %v2536
      %v2736 = vmul.f32 %v2727, %v2537
      %v2737 = vmul.f32 %v2727, %v2538
      %v2738 = vmul.f32 %v2727, %v2539
      %v2739 = vmul.f32 %v2731, %v2540
      %v2740 = vmul.f32 %v2731, %v2541
      %v2741 = vmul.f32 %v2731, %v2542
      %2751 = vrot.lane.b32.xlu0 %v2733, 95
      %v2752 = vpop.permute.xlu0 %2751
      %2753 = vrot.lane.b32.xlu0 %v2734, 95
      %v2754 = vpop.permute.xlu0 %2753
      %2755 = vrot.lane.b32.xlu0 %v2735, 95
      %v2756 = vpop.permute.xlu0 %2755
      %2757 = vrot.lane.b32.xlu0 %v2736, 95
      %v2758 = vpop.permute.xlu0 %2757
      %2759 = vrot.lane.b32.xlu0 %v2737, 95
      %v2760 = vpop.permute.xlu0 %2759
      %2761 = vrot.lane.b32.xlu0 %v2738, 95
      %v2762 = vpop.permute.xlu0 %2761
      %2763 = vrot.lane.b32.xlu0 %v2739, 95
      %v2764 = vpop.permute.xlu0 %2763
      %2765 = vrot.lane.b32.xlu0 %v2740, 95
      %v2766 = vpop.permute.xlu0 %2765
      %2767 = vrot.lane.b32.xlu0 %v2741, 95
      %v2768 = vpop.permute.xlu0 %2767
      %v2769 = vsel %vm1546, %v2752, %v2754
      %v2770 = vsel %vm1546, %v2754, %v2756
      %v2771 = vsel %vm1546, %v2758, %v2760
      %v2772 = vsel %vm1546, %v2760, %v2762
      %v2773 = vsel %vm1546, %v2764, %v2766
      %v2774 = vsel %vm1546, %v2766, %v2768
      %v2784 = vadd.f32 %v2712, %v2752
      %v2785 = vadd.f32 %v2713, %v2769
      %v2786 = vadd.f32 %v2714, %v2770
      %v2787 = vadd.f32 %v2715, %v2758
      %v2788 = vadd.f32 %v2716, %v2771
      %v2789 = vadd.f32 %v2717, %v2772
      %v2790 = vadd.f32 %v2718, %v2764
      %v2791 = vadd.f32 %v2719, %v2773
      %v2792 = vadd.f32 %v2720, %v2774
      %2793 = vrot.lane.b32.xlu0 %v2294, 17
      %v2794 = vpop.permute.xlu0 %2793
      %2795 = vrot.lane.b32.xlu0 %v2298, 17
      %v2796 = vpop.permute.xlu0 %2795
      %v2797 = vsel %vm1567, %v2794, %v2796
      %v2801 = vmul.f32 %v2534, %v2794
      %v2802 = vmul.f32 %v2535, %v2797
      %v2803 = vmul.f32 %v2536, %v2796
      %v2804 = vmul.f32 %v2537, %v2794
      %v2805 = vmul.f32 %v2538, %v2797
      %v2806 = vmul.f32 %v2539, %v2796
      %v2807 = vmul.f32 %v2540, %v2794
      %v2808 = vmul.f32 %v2541, %v2797
      %v2809 = vmul.f32 %v2542, %v2796
      %2810 = vset.pattern.permute.xlu0 8
      %2811 = vperm.xlu0 %2810, %v2145
      %v2812 = vpop.permute.xlu0 %2811
      %2814 = vset.pattern.permute.xlu0 8
      %2815 = vperm.xlu0 %2814, %v2146
      %v2816 = vpop.permute.xlu0 %2815
      %2818 = vset.pattern.permute.xlu0 8
      %2819 = vperm.xlu0 %2818, %v2147
      %v2820 = vpop.permute.xlu0 %2819
      %v2822 = vmul.f32 %v2812, %v2801
      %v2823 = vmul.f32 %v2812, %v2802
      %v2824 = vmul.f32 %v2812, %v2803
      %v2825 = vmul.f32 %v2816, %v2804
      %v2826 = vmul.f32 %v2816, %v2805
      %v2827 = vmul.f32 %v2816, %v2806
      %v2828 = vmul.f32 %v2820, %v2807
      %v2829 = vmul.f32 %v2820, %v2808
      %v2830 = vmul.f32 %v2820, %v2809
      %2840 = vrot.lane.b32.xlu0 %v2822, 94
      %v2841 = vpop.permute.xlu0 %2840
      %2842 = vrot.lane.b32.xlu0 %v2823, 94
      %v2843 = vpop.permute.xlu0 %2842
      %2844 = vrot.lane.b32.xlu0 %v2824, 94
      %v2845 = vpop.permute.xlu0 %2844
      %2846 = vrot.lane.b32.xlu0 %v2825, 94
      %v2847 = vpop.permute.xlu0 %2846
      %2848 = vrot.lane.b32.xlu0 %v2826, 94
      %v2849 = vpop.permute.xlu0 %2848
      %2850 = vrot.lane.b32.xlu0 %v2827, 94
      %v2851 = vpop.permute.xlu0 %2850
      %2852 = vrot.lane.b32.xlu0 %v2828, 94
      %v2853 = vpop.permute.xlu0 %2852
      %2854 = vrot.lane.b32.xlu0 %v2829, 94
      %v2855 = vpop.permute.xlu0 %2854
      %2856 = vrot.lane.b32.xlu0 %v2830, 94
      %v2857 = vpop.permute.xlu0 %2856
      %v2858 = vsel %vm1610, %v2841, %v2843
      %v2859 = vsel %vm1610, %v2843, %v2845
      %v2860 = vsel %vm1610, %v2847, %v2849
      %v2861 = vsel %vm1610, %v2849, %v2851
      %v2862 = vsel %vm1610, %v2853, %v2855
      %v2863 = vsel %vm1610, %v2855, %v2857
      %v2873 = vadd.f32 %v2784, %v2841
      %v2874 = vadd.f32 %v2785, %v2858
      %v2875 = vadd.f32 %v2786, %v2859
      %v2876 = vadd.f32 %v2787, %v2847
      %v2877 = vadd.f32 %v2788, %v2860
      %v2878 = vadd.f32 %v2789, %v2861
      %v2879 = vadd.f32 %v2790, %v2853
      %v2880 = vadd.f32 %v2791, %v2862
      %v2881 = vadd.f32 %v2792, %v2863
      %v2882 = vld [vmem:[%s13] sm:$0xff]
      %v2883 = vld [vmem:[%s13 + $0x8] sm:$0xff]
      %v2884 = vld [vmem:[%s13 + $0x10] sm:$0xff]
      %2886 = vset.pattern.permute.xlu0 0
      %2887 = vperm.xlu0 %2886, %v2882
      %v2888 = vpop.permute.xlu0 %2887
      %2891 = vset.pattern.permute.xlu0 0
      %2892 = vperm.xlu0 %2891, %v2883
      %v2893 = vpop.permute.xlu0 %2892
      %2896 = vset.pattern.permute.xlu0 0
      %2897 = vperm.xlu0 %2896, %v2884
      %v2898 = vpop.permute.xlu0 %2897
      %v2900 = vadd.f32 %v2873, %v2888
      %v2901 = vadd.f32 %v2874, %v2888
      %v2902 = vadd.f32 %v2875, %v2888
      %v2903 = vadd.f32 %v2876, %v2893
      %v2904 = vadd.f32 %v2877, %v2893
      %v2905 = vadd.f32 %v2878, %v2893
      %v2906 = vadd.f32 %v2879, %v2898
      %v2907 = vadd.f32 %v2880, %v2898
      %v2908 = vadd.f32 %v2881, %v2898
      %v2909 = vld [vmem:[%s14] sm:$0xff]
      %v2910 = vld [vmem:[%s15] sm:$0xff]
      %2912 = vset.pattern.permute.xlu0 0
      %2913 = vperm.xlu0 %2912, %v2910
      %v2914 = vpop.permute.xlu0 %2913
      %2925 = vrot.lane.b32.xlu0 %v2900, 17
      %v2926 = vpop.permute.xlu0 %2925
      %2927 = vrot.lane.b32.xlu0 %v2901, 17
      %v2928 = vpop.permute.xlu0 %2927
      %2929 = vrot.lane.b32.xlu0 %v2902, 17
      %v2930 = vpop.permute.xlu0 %2929
      %2931 = vrot.lane.b32.xlu0 %v2903, 17
      %v2932 = vpop.permute.xlu0 %2931
      %2933 = vrot.lane.b32.xlu0 %v2904, 17
      %v2934 = vpop.permute.xlu0 %2933
      %2935 = vrot.lane.b32.xlu0 %v2905, 17
      %v2936 = vpop.permute.xlu0 %2935
      %2937 = vrot.lane.b32.xlu0 %v2906, 17
      %v2938 = vpop.permute.xlu0 %2937
      %2939 = vrot.lane.b32.xlu0 %v2907, 17
      %v2940 = vpop.permute.xlu0 %2939
      %2941 = vrot.lane.b32.xlu0 %v2908, 17
      %v2942 = vpop.permute.xlu0 %2941
      %v2943 = vsel %vm1567, %v2926, %v2928
      %v2944 = vsel %vm1567, %v2928, %v2930
      %v2945 = vsel %vm1567, %v2932, %v2934
      %v2946 = vsel %vm1567, %v2934, %v2936
      %v2947 = vsel %vm1567, %v2938, %v2940
      %v2948 = vsel %vm1567, %v2940, %v2942
      %vm2955 = vcmask 195584
      %v2957 = vsel %vm2955, %v2909, 0
      %2959 = vmatprep.subr.mxu0 %v2944
      %2960 = vmatpush1.msra.mxu0 %v2943
      %2961 = vmatprep.subr.mxu0 %v2946
      %2962 = vmatpush1.msra.mxu0 %v2945
      %2963 = vmatprep.subr.mxu0 %v2948
      %2964 = vmatpush1.msra.mxu0 %v2947
      %2965 = vmatprep.subr.mxu0 0.0
      %2966 = vmatpush1.msra.mxu0 0.0
      %2967 = vmatprep.subr.mxu0 0.0
      %2968 = vmatpush1.msra.mxu0 0.0
      %2969 = vmatprep.subr.mxu0 0.0
      %2970 = vmatpush1.msra.mxu0 0.0
      %2971 = vmatprep.subr.mxu0 0.0
      %2972 = vmatpush1.msra.mxu0 0.0
      %2973 = vmatprep.subr.mxu0 0.0
      %2974 = vmatpush1.msra.mxu0 0.0
      %2975 = vmatprep.subr.mxu0 0.0
      %2976 = vmatpush1.msra.mxu0 0.0
      %2977 = vmatprep.subr.mxu0 0.0
      %2978 = vmatpush1.msra.mxu0 0.0
      %2979 = vmatprep.subr.mxu0 0.0
      %2980 = vmatpush1.msra.mxu0 0.0
      %2981 = vmatprep.subr.mxu0 0.0
      %2982 = vmatpush1.msra.mxu0 0.0
      %2983 = vmatprep.subr.mxu0 0.0
      %2984 = vmatpush1.msra.mxu0 0.0
      %2985 = vmatprep.subr.mxu0 0.0
      %2986 = vmatpush1.msra.mxu0 0.0
      %2987 = vmatprep.subr.mxu0 0.0
      %2988 = vmatpush1.msra.mxu0 0.0
      %2989 = vmatprep.subr.mxu0 0.0
      %2990 = vmatpush1.msra.mxu0 0.0
      %2991 = vmatprep.subr.mxu0 0.0
      %2992 = vmatpush1.msra.mxu0 0.0
      %2993 = vmatprep.subr.mxu0 0.0
      %2994 = vmatpush1.msra.mxu0 0.0
      %2995 = vmatprep.subr.mxu0 0.0
      %2996 = vmatpush1.msra.mxu0 0.0
      %2997 = vmatprep.subr.mxu0 0.0
      %2998 = vmatpush1.msra.mxu0 0.0
      %2999 = vmatprep.subr.mxu0 0.0
      %3000 = vmatpush1.msra.mxu0 0.0
      %3001 = vmatprep.subr.mxu0 0.0
      %3002 = vmatpush1.msra.mxu0 0.0
      %3003 = vmatprep.subr.mxu0 0.0
      %3004 = vmatpush1.msra.mxu0 0.0
      %3005 = vmatprep.subr.mxu0 0.0
      %3006 = vmatpush1.msra.mxu0 0.0
      %3007 = vmatprep.subr.mxu0 0.0
      %3008 = vmatpush1.msra.mxu0 0.0
      %3009 = vmatprep.subr.mxu0 0.0
      %3010 = vmatpush1.msra.mxu0 0.0
      %3011 = vmatprep.subr.mxu0 0.0
      %3012 = vmatpush1.msra.mxu0 0.0
      %3013 = vmatprep.subr.mxu0 0.0
      %3014 = vmatpush1.msra.mxu0 0.0
      %3015 = vmatprep.subr.mxu0 0.0
      %3016 = vmatpush1.msra.mxu0 0.0
      %3017 = vmatprep.subr.mxu0 0.0
      %3018 = vmatpush1.msra.mxu0 0.0
      %3019 = vmatprep.subr.mxu0 0.0
      %3020 = vmatpush1.msra.mxu0 0.0
      %3021 = vmatprep.subr.mxu0 0.0
      %3022 = vmatpush1.msra.mxu0 0.0
      %3023 = vmatprep.mubr.f32.mxu0 0.0
      %3024 = vmatmul.mubr.f32.gmra.mrb[0].mxu0 %v2957
      %v3025 = vpop.f32.mrb[0].mxu0
      %v3026 = vadd.f32 %v2914, %v3025
      %v3027 = vpop.f32.mrb[0].mxu0
      %v3028 = vadd.f32 %v2914, %v3027
      %3029 = vdwg.mxu0
      %v3030 = vmax.f32 %v3026, 0.0
      %v3031 = vmax.f32 %v3028, 0.0
      %3032 = vst [vmem:[#allocation2 + $0x10] sm:$0xff] %v3030
      %3033 = vst [vmem:[#allocation2 + $0x18] sm:$0xff] %v3031
      %v3034 = vld [vmem:[#allocation2] sm:$0xff]
      %v3035 = vld [vmem:[#allocation2 + $0x8] sm:$0xff]
      %v3036 = vld [vmem:[#allocation2 + $0x10] sm:$0xff]
      %s3037 = scalar_lea.vmem %s1, 17
      %v3038 = vld [vmem:[%s3037] ss:$8 sm:$0x3]
      %v3040 = vlaneseq
      %v3041 = vshrl.u32 %v3040, 7
      %v3042 = vsub.s32 0, %v3041
      %v3043 = vrot.slane %v3038, %v3042
      %v3044 = vlaneseq
      %v3045 = vshrl.u32 %v3044, 7
      %v3046 = vsub.s32 1, %v3045
      %v3047 = vrot.slane %v3038, %v3046
      %3048 = vrot.lane.b32.xlu0 %v3043, 103
      %v3049 = vpop.permute.xlu0 %3048
      %3050 = vrot.lane.b32.xlu0 %v3047, 103
      %v3051 = vpop.permute.xlu0 %3050
      %vm3052 = vcmask 842752
      %v3053 = vsel %vm3052, %v3049, %v3051
      %v3057 = vmul.f32 %v3034, %v3049
      %v3058 = vmul.f32 %v3035, %v3053
      %v3059 = vmul.f32 %v3036, %v3051
      %3063 = vrot.lane.b32.xlu0 %v3057, 25
      %v3064 = vpop.permute.xlu0 %3063
      %3065 = vrot.lane.b32.xlu0 %v3058, 25
      %v3066 = vpop.permute.xlu0 %3065
      %3067 = vrot.lane.b32.xlu0 %v3059, 25
      %v3068 = vpop.permute.xlu0 %3067
      %vm3069 = vcmask 203776
      %v3070 = vsel %vm3069, %v3064, %v3066
      %v3071 = vsel %vm3069, %v3066, %v3068
      %3074 = vst [vmem:[#allocation3] sm:$0xff] %v3070
      %3075 = vst [vmem:[#allocation3 + $0x8] sm:$0xff] %v3071
      %v3076 = vld [vmem:[#allocation2] sm:$0xff]
      %v3077 = vld [vmem:[#allocation2 + $0x8] sm:$0xff]
      %v3078 = vld [vmem:[#allocation2 + $0x10] sm:$0xff]
      %3082 = vrot.lane.b32.xlu0 %v3076, 16
      %v3083 = vpop.permute.xlu0 %3082
      %3084 = vrot.lane.b32.xlu0 %v3077, 16
      %v3085 = vpop.permute.xlu0 %3084
      %3086 = vrot.lane.b32.xlu0 %v3078, 16
      %v3087 = vpop.permute.xlu0 %3086
      %v3088 = vsel %vm1678, %v3083, %v3085
      %v3089 = vsel %vm1678, %v3085, %v3087
      %3092 = vst [vmem:[#allocation3 + $0x10] sm:$0xff] %v3088
      %3093 = vst [vmem:[#allocation3 + $0x18] sm:$0xff] %v3089
      %v3094 = vld [vmem:[#allocation2] sm:$0xff]
      %v3095 = vld [vmem:[#allocation2 + $0x8] sm:$0xff]
      %v3096 = vld [vmem:[#allocation2 + $0x10] sm:$0xff]
      %s3097 = scalar_lea.vmem %s1, 19
      %v3098 = vld [vmem:[%s3097] ss:$8 sm:$0x3]
      %v3100 = vlaneseq
      %v3101 = vshrl.u32 %v3100, 7
      %v3102 = vsub.s32 0, %v3101
      %v3103 = vrot.slane %v3098, %v3102
      %v3104 = vlaneseq
      %v3105 = vshrl.u32 %v3104, 7
      %v3106 = vsub.s32 1, %v3105
      %v3107 = vrot.slane %v3098, %v3106
      %3108 = vrot.lane.b32.xlu0 %v3103, 121
      %v3109 = vpop.permute.xlu0 %3108
      %3110 = vrot.lane.b32.xlu0 %v3107, 121
      %v3111 = vpop.permute.xlu0 %3110
      %vm3112 = vcmask 990208
      %v3113 = vsel %vm3112, %v3109, %v3111
      %v3117 = vmul.f32 %v3094, %v3109
      %v3118 = vmul.f32 %v3095, %v3113
      %v3119 = vmul.f32 %v3096, %v3111
      %3123 = vrot.lane.b32.xlu0 %v3117, 7
      %v3124 = vpop.permute.xlu0 %3123
      %3125 = vrot.lane.b32.xlu0 %v3118, 7
      %v3126 = vpop.permute.xlu0 %3125
      %3127 = vrot.lane.b32.xlu0 %v3119, 7
      %v3128 = vpop.permute.xlu0 %3127
      %vm3129 = vcmask 56320
      %v3130 = vsel %vm3129, %v3124, %v3126
      %v3131 = vsel %vm3129, %v3126, %v3128
      %3134 = vst [vmem:[#allocation3 + $0x20] sm:$0xff] %v3130
      %3135 = vst [vmem:[#allocation3 + $0x28] sm:$0xff] %v3131
      %v3136 = vld [vmem:[#allocation2 + $0x8] sm:$0xff]
      %v3137 = vld [vmem:[#allocation2 + $0x10] sm:$0xff]
      %v3138 = vld [vmem:[#allocation2 + $0x18] sm:$0xff]
      %v3139 = vld [vmem:[%s3037] ss:$8 sm:$0x3]
      %v3141 = vlaneseq
      %v3142 = vshrl.u32 %v3141, 7
      %v3143 = vsub.s32 0, %v3142
      %v3144 = vrot.slane %v3139, %v3143
      %v3145 = vlaneseq
      %v3146 = vshrl.u32 %v3145, 7
      %v3147 = vsub.s32 1, %v3146
      %v3148 = vrot.slane %v3139, %v3147
      %3149 = vrot.lane.b32.xlu0 %v3144, 119
      %v3150 = vpop.permute.xlu0 %3149
      %3151 = vrot.lane.b32.xlu0 %v3148, 119
      %v3152 = vpop.permute.xlu0 %3151
      %vm3153 = vcmask 973824
      %v3154 = vsel %vm3153, %v3150, %v3152
      %v3158 = vmul.f32 %v3136, %v3150
      %v3159 = vmul.f32 %v3137, %v3154
      %v3160 = vmul.f32 %v3138, %v3152
      %3164 = vrot.lane.b32.xlu0 %v3158, 9
      %v3165 = vpop.permute.xlu0 %3164
      %3166 = vrot.lane.b32.xlu0 %v3159, 9
      %v3167 = vpop.permute.xlu0 %3166
      %3168 = vrot.lane.b32.xlu0 %v3160, 9
      %v3169 = vpop.permute.xlu0 %3168
      %vm3170 = vcmask 72704
      %v3171 = vsel %vm3170, %v3165, %v3167
      %v3172 = vsel %vm3170, %v3167, %v3169
      %3175 = vst [vmem:[#allocation3 + $0x30] sm:$0xff] %v3171
      %3176 = vst [vmem:[#allocation3 + $0x38] sm:$0xff] %v3172
      %v3177 = vld [vmem:[#allocation2 + $0x10] sm:$0xff]
      %v3178 = vld [vmem:[#allocation2 + $0x18] sm:$0xff]
      %3179 = vst [vmem:[#allocation3 + $0x40] sm:$0xff] %v3177
      %3180 = vst [vmem:[#allocation3 + $0x48] sm:$0xff] %v3178
      %v3181 = vld [vmem:[#allocation2 + $0x10] sm:$0xff]
      %v3182 = vld [vmem:[#allocation2 + $0x18] sm:$0xff]
      %v3183 = vld [vmem:[#allocation2 + $0x20] sm:$0xff]
      %v3184 = vld [vmem:[%s3097] ss:$8 sm:$0x3]
      %v3186 = vlaneseq
      %v3187 = vshrl.u32 %v3186, 7
      %v3188 = vsub.s32 0, %v3187
      %v3189 = vrot.slane %v3184, %v3188
      %v3190 = vlaneseq
      %v3191 = vshrl.u32 %v3190, 7
      %v3192 = vsub.s32 1, %v3191
      %v3193 = vrot.slane %v3184, %v3192
      %3194 = vrot.lane.b32.xlu0 %v3189, 9
      %v3195 = vpop.permute.xlu0 %3194
      %3196 = vrot.lane.b32.xlu0 %v3193, 9
      %v3197 = vpop.permute.xlu0 %3196
      %v3198 = vsel %vm3170, %v3195, %v3197
      %v3202 = vmul.f32 %v3181, %v3195
      %v3203 = vmul.f32 %v3182, %v3198
      %v3204 = vmul.f32 %v3183, %v3197
      %3208 = vrot.lane.b32.xlu0 %v3202, 119
      %v3209 = vpop.permute.xlu0 %3208
      %3210 = vrot.lane.b32.xlu0 %v3203, 119
      %v3211 = vpop.permute.xlu0 %3210
      %3212 = vrot.lane.b32.xlu0 %v3204, 119
      %v3213 = vpop.permute.xlu0 %3212
      %v3214 = vsel %vm3153, %v3209, %v3211
      %v3215 = vsel %vm3153, %v3211, %v3213
      %3218 = vst [vmem:[#allocation3 + $0x50] sm:$0xff] %v3214
      %3219 = vst [vmem:[#allocation3 + $0x58] sm:$0xff] %v3215
      %v3220 = vld [vmem:[#allocation2 + $0x18] sm:$0xff]
      %v3221 = vld [vmem:[#allocation2 + $0x20] sm:$0xff]
      %v3222 = vld [vmem:[#allocation2 + $0x28] sm:$0xff]
      %v3223 = vld [vmem:[%s3037] ss:$8 sm:$0x3]
      %v3225 = vlaneseq
      %v3226 = vshrl.u32 %v3225, 7
      %v3227 = vsub.s32 0, %v3226
      %v3228 = vrot.slane %v3223, %v3227
      %v3229 = vlaneseq
      %v3230 = vshrl.u32 %v3229, 7
      %v3231 = vsub.s32 1, %v3230
      %v3232 = vrot.slane %v3223, %v3231
      %3233 = vrot.lane.b32.xlu0 %v3228, 7
      %v3234 = vpop.permute.xlu0 %3233
      %3235 = vrot.lane.b32.xlu0 %v3232, 7
      %v3236 = vpop.permute.xlu0 %3235
      %v3237 = vsel %vm3129, %v3234, %v3236
      %v3241 = vmul.f32 %v3220, %v3234
      %v3242 = vmul.f32 %v3221, %v3237
      %v3243 = vmul.f32 %v3222, %v3236
      %3247 = vrot.lane.b32.xlu0 %v3241, 121
      %v3248 = vpop.permute.xlu0 %3247
      %3249 = vrot.lane.b32.xlu0 %v3242, 121
      %v3250 = vpop.permute.xlu0 %3249
      %3251 = vrot.lane.b32.xlu0 %v3243, 121
      %v3252 = vpop.permute.xlu0 %3251
      %v3253 = vsel %vm3112, %v3248, %v3250
      %v3254 = vsel %vm3112, %v3250, %v3252
      %3257 = vst [vmem:[#allocation3 + $0x60] sm:$0xff] %v3253
      %3258 = vst [vmem:[#allocation3 + $0x68] sm:$0xff] %v3254
      %v3259 = vld [vmem:[#allocation2 + $0x18] sm:$0xff]
      %v3260 = vld [vmem:[#allocation2 + $0x20] sm:$0xff]
      %v3261 = vld [vmem:[#allocation2 + $0x28] sm:$0xff]
      %3265 = vrot.lane.b32.xlu0 %v3259, 112
      %v3266 = vpop.permute.xlu0 %3265
      %3267 = vrot.lane.b32.xlu0 %v3260, 112
      %v3268 = vpop.permute.xlu0 %3267
      %3269 = vrot.lane.b32.xlu0 %v3261, 112
      %v3270 = vpop.permute.xlu0 %3269
      %v3271 = vsel %vm1325, %v3266, %v3268
      %v3272 = vsel %vm1325, %v3268, %v3270
      %3275 = vst [vmem:[#allocation3 + $0x70] sm:$0xff] %v3271
      %3276 = vst [vmem:[#allocation3 + $0x78] sm:$0xff] %v3272
      %v3277 = vld [vmem:[#allocation2 + $0x18] sm:$0xff]
      %v3278 = vld [vmem:[#allocation2 + $0x20] sm:$0xff]
      %v3279 = vld [vmem:[#allocation2 + $0x28] sm:$0xff]
      %v3280 = vld [vmem:[%s3097] ss:$8 sm:$0x3]
      %v3282 = vlaneseq
      %v3283 = vshrl.u32 %v3282, 7
      %v3284 = vsub.s32 0, %v3283
      %v3285 = vrot.slane %v3280, %v3284
      %v3286 = vlaneseq
      %v3287 = vshrl.u32 %v3286, 7
      %v3288 = vsub.s32 1, %v3287
      %v3289 = vrot.slane %v3280, %v3288
      %3290 = vrot.lane.b32.xlu0 %v3285, 25
      %v3291 = vpop.permute.xlu0 %3290
      %3292 = vrot.lane.b32.xlu0 %v3289, 25
      %v3293 = vpop.permute.xlu0 %3292
      %v3294 = vsel %vm3069, %v3291, %v3293
      %v3298 = vmul.f32 %v3277, %v3291
      %v3299 = vmul.f32 %v3278, %v3294
      %v3300 = vmul.f32 %v3279, %v3293
      %3304 = vrot.lane.b32.xlu0 %v3298, 103
      %v3305 = vpop.permute.xlu0 %3304
      %3306 = vrot.lane.b32.xlu0 %v3299, 103
      %v3307 = vpop.permute.xlu0 %3306
      %3308 = vrot.lane.b32.xlu0 %v3300, 103
      %v3309 = vpop.permute.xlu0 %3308
      %v3310 = vsel %vm3052, %v3305, %v3307
      %v3311 = vsel %vm3052, %v3307, %v3309
      %3314 = vst [vmem:[#allocation3 + $0x80] sm:$0xff] %v3310
      %3315 = vst [vmem:[#allocation3 + $0x88] sm:$0xff] %v3311
      %v3316 = vld [vmem:[%s6] sm:$0xff]
      %v3317 = vld [vmem:[#allocation3] sm:$0xff]
      %v3318 = vld [vmem:[#allocation3 + $0x8] sm:$0xff]
      %v3319 = vld [vmem:[#allocation3 + $0x10] sm:$0xff]
      %v3320 = vld [vmem:[#allocation3 + $0x18] sm:$0xff]
      %v3321 = vld [vmem:[#allocation3 + $0x20] sm:$0xff]
      %v3322 = vld [vmem:[#allocation3 + $0x28] sm:$0xff]
      %v3323 = vld [vmem:[#allocation3 + $0x30] sm:$0xff]
      %v3324 = vld [vmem:[#allocation3 + $0x38] sm:$0xff]
      %v3325 = vld [vmem:[#allocation3 + $0x40] sm:$0xff]
      %v3326 = vld [vmem:[#allocation3 + $0x48] sm:$0xff]
      %v3327 = vld [vmem:[#allocation3 + $0x50] sm:$0xff]
      %v3328 = vld [vmem:[#allocation3 + $0x58] sm:$0xff]
      %v3329 = vld [vmem:[#allocation3 + $0x60] sm:$0xff]
      %v3330 = vld [vmem:[#allocation3 + $0x68] sm:$0xff]
      %v3331 = vld [vmem:[#allocation3 + $0x70] sm:$0xff]
      %v3332 = vld [vmem:[#allocation3 + $0x78] sm:$0xff]
      %v3333 = vld [vmem:[#allocation3 + $0x80] sm:$0xff]
      %v3334 = vld [vmem:[#allocation3 + $0x88] sm:$0xff]
      %v3335 = vld [vmem:[%s7] sm:$0xff]
      %3337 = vset.pattern.permute.xlu0 0
      %3338 = vperm.xlu0 %3337, %v3335
      %v3339 = vpop.permute.xlu0 %3338
      %v3342 = vsel %vm1021, %v3316, 0
      %3344 = vmatprep.subr.mxu0 %v3318
      %3345 = vmatpush1.msra.mxu0 %v3317
      %3346 = vmatprep.subr.mxu0 %v3320
      %3347 = vmatpush1.msra.mxu0 %v3319
      %3348 = vmatprep.subr.mxu0 %v3322
      %3349 = vmatpush1.msra.mxu0 %v3321
      %3350 = vmatprep.subr.mxu0 %v3324
      %3351 = vmatpush1.msra.mxu0 %v3323
      %3352 = vmatprep.subr.mxu0 %v3326
      %3353 = vmatpush1.msra.mxu0 %v3325
      %3354 = vmatprep.subr.mxu0 %v3328
      %3355 = vmatpush1.msra.mxu0 %v3327
      %3356 = vmatprep.subr.mxu0 %v3330
      %3357 = vmatpush1.msra.mxu0 %v3329
      %3358 = vmatprep.subr.mxu0 %v3332
      %3359 = vmatpush1.msra.mxu0 %v3331
      %3360 = vmatprep.subr.mxu0 %v3334
      %3361 = vmatpush1.msra.mxu0 %v3333
      %3362 = vmatprep.subr.mxu0 0.0
      %3363 = vmatpush1.msra.mxu0 0.0
      %3364 = vmatprep.subr.mxu0 0.0
      %3365 = vmatpush1.msra.mxu0 0.0
      %3366 = vmatprep.subr.mxu0 0.0
      %3367 = vmatpush1.msra.mxu0 0.0
      %3368 = vmatprep.subr.mxu0 0.0
      %3369 = vmatpush1.msra.mxu0 0.0
      %3370 = vmatprep.subr.mxu0 0.0
      %3371 = vmatpush1.msra.mxu0 0.0
      %3372 = vmatprep.subr.mxu0 0.0
      %3373 = vmatpush1.msra.mxu0 0.0
      %3374 = vmatprep.subr.mxu0 0.0
      %3375 = vmatpush1.msra.mxu0 0.0
      %3376 = vmatprep.subr.mxu0 0.0
      %3377 = vmatpush1.msra.mxu0 0.0
      %3378 = vmatprep.subr.mxu0 0.0
      %3379 = vmatpush1.msra.mxu0 0.0
      %3380 = vmatprep.subr.mxu0 0.0
      %3381 = vmatpush1.msra.mxu0 0.0
      %3382 = vmatprep.subr.mxu0 0.0
      %3383 = vmatpush1.msra.mxu0 0.0
      %3384 = vmatprep.subr.mxu0 0.0
      %3385 = vmatpush1.msra.mxu0 0.0
      %3386 = vmatprep.subr.mxu0 0.0
      %3387 = vmatpush1.msra.mxu0 0.0
      %3388 = vmatprep.subr.mxu0 0.0
      %3389 = vmatpush1.msra.mxu0 0.0
      %3390 = vmatprep.subr.mxu0 0.0
      %3391 = vmatpush1.msra.mxu0 0.0
      %3392 = vmatprep.subr.mxu0 0.0
      %3393 = vmatpush1.msra.mxu0 0.0
      %3394 = vmatprep.subr.mxu0 0.0
      %3395 = vmatpush1.msra.mxu0 0.0
      %3396 = vmatprep.subr.mxu0 0.0
      %3397 = vmatpush1.msra.mxu0 0.0
      %3398 = vmatprep.subr.mxu0 0.0
      %3399 = vmatpush1.msra.mxu0 0.0
      %3400 = vmatprep.subr.mxu0 0.0
      %3401 = vmatpush1.msra.mxu0 0.0
      %3402 = vmatprep.subr.mxu0 0.0
      %3403 = vmatpush1.msra.mxu0 0.0
      %3404 = vmatprep.subr.mxu0 0.0
      %3405 = vmatpush1.msra.mxu0 0.0
      %3406 = vmatprep.subr.mxu0 0.0
      %3407 = vmatpush1.msra.mxu0 0.0
      %3408 = vmatprep.mubr.f32.mxu0 0.0
      %3409 = vmatmul.mubr.f32.gmra.mrb[0].mxu0 %v3342
      %v3410 = vpop.f32.mrb[0].mxu0
      %v3411 = vadd.f32 %v3339, %v3410
      %v3412 = vpop.f32.mrb[0].mxu0
      %v3413 = vadd.f32 %v3339, %v3412
      %3414 = vdwg.mxu0
      %3415 = vst [vmem:[#allocation2 + $0x10] sm:$0xff] %v3411
      %3416 = vst [vmem:[#allocation2 + $0x18] sm:$0xff] %v3413
      %3417 = vst [vmem:[#allocation2 + $0x40] sm:$0xff] %v2135
      %3418 = vst [vmem:[#allocation2 + $0x48] sm:$0xff] %v2137
      %3419 = vst [vmem:[#allocation2 + $0x70] sm:$0xff] %v1092
      %3420 = vst [vmem:[#allocation2 + $0x78] sm:$0xff] %v1094
      %3421 = vst [vmem:[#allocation2 + $0xa0] sm:$0xff] %v708
      %3422 = vst [vmem:[#allocation2 + $0xa8] sm:$0xff] %v709
      %v3423 = vld [vmem:[%s16] sm:$0xff]
      %v3424 = vld [vmem:[%s16 + $0x8] sm:$0xff]
      %v3425 = vld [vmem:[%s16 + $0x10] sm:$0xff]
      %v3426 = vld [vmem:[%s16 + $0x18] sm:$0xff]
      %v3427 = vld [vmem:[#allocation2 + $0x8] sm:$0xff]
      %v3428 = vld [vmem:[#allocation2 + $0x10] sm:$0xff]
      %v3429 = vld [vmem:[#allocation2 + $0x18] sm:$0xff]
      %v3430 = vld [vmem:[#allocation2 + $0x38] sm:$0xff]
      %v3431 = vld [vmem:[#allocation2 + $0x40] sm:$0xff]
      %v3432 = vld [vmem:[#allocation2 + $0x48] sm:$0xff]
      %v3433 = vld [vmem:[#allocation2 + $0x68] sm:$0xff]
      %v3434 = vld [vmem:[#allocation2 + $0x70] sm:$0xff]
      %v3435 = vld [vmem:[#allocation2 + $0x78] sm:$0xff]
      %v3436 = vld [vmem:[#allocation2 + $0x98] sm:$0xff]
      %v3437 = vld [vmem:[#allocation2 + $0xa0] sm:$0xff]
      %v3438 = vld [vmem:[#allocation2 + $0xa8] sm:$0xff]
      %v3439 = vld [vmem:[%s1] ss:$8 sm:$0x3]
      %v3441 = vlaneseq
      %v3442 = vshrl.u32 %v3441, 7
      %v3443 = vsub.s32 0, %v3442
      %v3444 = vrot.slane %v3439, %v3443
      %v3445 = vlaneseq
      %v3446 = vshrl.u32 %v3445, 7
      %v3447 = vsub.s32 1, %v3446
      %v3448 = vrot.slane %v3439, %v3447
      %3449 = vrot.lane.b32.xlu0 %v3444, 111
      %v3450 = vpop.permute.xlu0 %3449
      %3451 = vrot.lane.b32.xlu0 %v3448, 111
      %v3452 = vpop.permute.xlu0 %3451
      %v3453 = vsel %vm1122, %v3450, %v3452
      %v3457 = vmul.f32 %v3427, %v3450
      %v3458 = vmul.f32 %v3428, %v3453
      %v3459 = vmul.f32 %v3429, %v3452
      %v3460 = vmul.f32 %v3430, %v3450
      %v3461 = vmul.f32 %v3431, %v3453
      %v3462 = vmul.f32 %v3432, %v3452
      %v3463 = vmul.f32 %v3433, %v3450
      %v3464 = vmul.f32 %v3434, %v3453
      %v3465 = vmul.f32 %v3435, %v3452
      %v3466 = vmul.f32 %v3436, %v3450
      %v3467 = vmul.f32 %v3437, %v3453
      %v3468 = vmul.f32 %v3438, %v3452
      %3470 = vset.pattern.permute.xlu0 0
      %3471 = vperm.xlu0 %3470, %v3423
      %v3472 = vpop.permute.xlu0 %3471
      %3475 = vset.pattern.permute.xlu0 0
      %3476 = vperm.xlu0 %3475, %v3424
      %v3477 = vpop.permute.xlu0 %3476
      %3480 = vset.pattern.permute.xlu0 0
      %3481 = vperm.xlu0 %3480, %v3425
      %v3482 = vpop.permute.xlu0 %3481
      %3485 = vset.pattern.permute.xlu0 0
      %3486 = vperm.xlu0 %3485, %v3426
      %v3487 = vpop.permute.xlu0 %3486
      %v3489 = vmul.f32 %v3472, %v3457
      %v3490 = vmul.f32 %v3472, %v3458
      %v3491 = vmul.f32 %v3472, %v3459
      %v3492 = vmul.f32 %v3477, %v3460
      %v3493 = vmul.f32 %v3477, %v3461
      %v3494 = vmul.f32 %v3477, %v3462
      %v3495 = vmul.f32 %v3482, %v3463
      %v3496 = vmul.f32 %v3482, %v3464
      %v3497 = vmul.f32 %v3482, %v3465
      %v3498 = vmul.f32 %v3487, %v3466
      %v3499 = vmul.f32 %v3487, %v3467
      %v3500 = vmul.f32 %v3487, %v3468
      %v3501 = vadd.f32 %v3489, 0.0
      %v3502 = vadd.f32 %v3490, 0.0
      %v3503 = vadd.f32 %v3491, 0.0
      %v3504 = vadd.f32 %v3492, 0.0
      %v3505 = vadd.f32 %v3493, 0.0
      %v3506 = vadd.f32 %v3494, 0.0
      %v3507 = vadd.f32 %v3495, 0.0
      %v3508 = vadd.f32 %v3496, 0.0
      %v3509 = vadd.f32 %v3497, 0.0
      %v3510 = vadd.f32 %v3498, 0.0
      %v3511 = vadd.f32 %v3499, 0.0
      %v3512 = vadd.f32 %v3500, 0.0
      %3513 = vset.pattern.permute.xlu0 1
      %3514 = vperm.xlu0 %3513, %v3423
      %v3515 = vpop.permute.xlu0 %3514
      %3517 = vset.pattern.permute.xlu0 1
      %3518 = vperm.xlu0 %3517, %v3424
      %v3519 = vpop.permute.xlu0 %3518
      %3521 = vset.pattern.permute.xlu0 1
      %3522 = vperm.xlu0 %3521, %v3425
      %v3523 = vpop.permute.xlu0 %3522
      %3525 = vset.pattern.permute.xlu0 1
      %3526 = vperm.xlu0 %3525, %v3426
      %v3527 = vpop.permute.xlu0 %3526
      %v3529 = vmul.f32 %v3515, %v3427
      %v3530 = vmul.f32 %v3515, %v3428
      %v3531 = vmul.f32 %v3515, %v3429
      %v3532 = vmul.f32 %v3519, %v3430
      %v3533 = vmul.f32 %v3519, %v3431
      %v3534 = vmul.f32 %v3519, %v3432
      %v3535 = vmul.f32 %v3523, %v3433
      %v3536 = vmul.f32 %v3523, %v3434
      %v3537 = vmul.f32 %v3523, %v3435
      %v3538 = vmul.f32 %v3527, %v3436
      %v3539 = vmul.f32 %v3527, %v3437
      %v3540 = vmul.f32 %v3527, %v3438
      %3553 = vrot.lane.b32.xlu0 %v3529, 127
      %v3554 = vpop.permute.xlu0 %3553
      %3555 = vrot.lane.b32.xlu0 %v3530, 127
      %v3556 = vpop.permute.xlu0 %3555
      %3557 = vrot.lane.b32.xlu0 %v3531, 127
      %v3558 = vpop.permute.xlu0 %3557
      %3559 = vrot.lane.b32.xlu0 %v3532, 127
      %v3560 = vpop.permute.xlu0 %3559
      %3561 = vrot.lane.b32.xlu0 %v3533, 127
      %v3562 = vpop.permute.xlu0 %3561
      %3563 = vrot.lane.b32.xlu0 %v3534, 127
      %v3564 = vpop.permute.xlu0 %3563
      %3565 = vrot.lane.b32.xlu0 %v3535, 127
      %v3566 = vpop.permute.xlu0 %3565
      %3567 = vrot.lane.b32.xlu0 %v3536, 127
      %v3568 = vpop.permute.xlu0 %3567
      %3569 = vrot.lane.b32.xlu0 %v3537, 127
      %v3570 = vpop.permute.xlu0 %3569
      %3571 = vrot.lane.b32.xlu0 %v3538, 127
      %v3572 = vpop.permute.xlu0 %3571
      %3573 = vrot.lane.b32.xlu0 %v3539, 127
      %v3574 = vpop.permute.xlu0 %3573
      %3575 = vrot.lane.b32.xlu0 %v3540, 127
      %v3576 = vpop.permute.xlu0 %3575
      %v3577 = vsel %vm1187, %v3554, %v3556
      %v3578 = vsel %vm1187, %v3556, %v3558
      %v3579 = vsel %vm1187, %v3560, %v3562
      %v3580 = vsel %vm1187, %v3562, %v3564
      %v3581 = vsel %vm1187, %v3566, %v3568
      %v3582 = vsel %vm1187, %v3568, %v3570
      %v3583 = vsel %vm1187, %v3572, %v3574
      %v3584 = vsel %vm1187, %v3574, %v3576
      %v3597 = vadd.f32 %v3501, %v3577
      %v3598 = vadd.f32 %v3502, %v3578
      %v3599 = vadd.f32 %v3503, %v3558
      %v3600 = vadd.f32 %v3504, %v3579
      %v3601 = vadd.f32 %v3505, %v3580
      %v3602 = vadd.f32 %v3506, %v3564
      %v3603 = vadd.f32 %v3507, %v3581
      %v3604 = vadd.f32 %v3508, %v3582
      %v3605 = vadd.f32 %v3509, %v3570
      %v3606 = vadd.f32 %v3510, %v3583
      %v3607 = vadd.f32 %v3511, %v3584
      %v3608 = vadd.f32 %v3512, %v3576
      %v3609 = vld [vmem:[%s1204] ss:$8 sm:$0x3]
      %v3611 = vlaneseq
      %v3612 = vshrl.u32 %v3611, 7
      %v3613 = vsub.s32 0, %v3612
      %v3614 = vrot.slane %v3609, %v3613
      %v3615 = vlaneseq
      %v3616 = vshrl.u32 %v3615, 7
      %v3617 = vsub.s32 1, %v3616
      %v3618 = vrot.slane %v3609, %v3617
      %3619 = vrot.lane.b32.xlu0 %v3614, 113
      %v3620 = vpop.permute.xlu0 %3619
      %3621 = vrot.lane.b32.xlu0 %v3618, 113
      %v3622 = vpop.permute.xlu0 %3621
      %v3623 = vsel %vm1219, %v3620, %v3622
      %v3627 = vmul.f32 %v3427, %v3620
      %v3628 = vmul.f32 %v3428, %v3623
      %v3629 = vmul.f32 %v3429, %v3622
      %v3630 = vmul.f32 %v3430, %v3620
      %v3631 = vmul.f32 %v3431, %v3623
      %v3632 = vmul.f32 %v3432, %v3622
      %v3633 = vmul.f32 %v3433, %v3620
      %v3634 = vmul.f32 %v3434, %v3623
      %v3635 = vmul.f32 %v3435, %v3622
      %v3636 = vmul.f32 %v3436, %v3620
      %v3637 = vmul.f32 %v3437, %v3623
      %v3638 = vmul.f32 %v3438, %v3622
      %3639 = vset.pattern.permute.xlu0 2
      %3640 = vperm.xlu0 %3639, %v3423
      %v3641 = vpop.permute.xlu0 %3640
      %3643 = vset.pattern.permute.xlu0 2
      %3644 = vperm.xlu0 %3643, %v3424
      %v3645 = vpop.permute.xlu0 %3644
      %3647 = vset.pattern.permute.xlu0 2
      %3648 = vperm.xlu0 %3647, %v3425
      %v3649 = vpop.permute.xlu0 %3648
      %3651 = vset.pattern.permute.xlu0 2
      %3652 = vperm.xlu0 %3651, %v3426
      %v3653 = vpop.permute.xlu0 %3652
      %v3655 = vmul.f32 %v3641, %v3627
      %v3656 = vmul.f32 %v3641, %v3628
      %v3657 = vmul.f32 %v3641, %v3629
      %v3658 = vmul.f32 %v3645, %v3630
      %v3659 = vmul.f32 %v3645, %v3631
      %v3660 = vmul.f32 %v3645, %v3632
      %v3661 = vmul.f32 %v3649, %v3633
      %v3662 = vmul.f32 %v3649, %v3634
      %v3663 = vmul.f32 %v3649, %v3635
      %v3664 = vmul.f32 %v3653, %v3636
      %v3665 = vmul.f32 %v3653, %v3637
      %v3666 = vmul.f32 %v3653, %v3638
      %3679 = vrot.lane.b32.xlu0 %v3655, 126
      %v3680 = vpop.permute.xlu0 %3679
      %3681 = vrot.lane.b32.xlu0 %v3656, 126
      %v3682 = vpop.permute.xlu0 %3681
      %3683 = vrot.lane.b32.xlu0 %v3657, 126
      %v3684 = vpop.permute.xlu0 %3683
      %3685 = vrot.lane.b32.xlu0 %v3658, 126
      %v3686 = vpop.permute.xlu0 %3685
      %3687 = vrot.lane.b32.xlu0 %v3659, 126
      %v3688 = vpop.permute.xlu0 %3687
      %3689 = vrot.lane.b32.xlu0 %v3660, 126
      %v3690 = vpop.permute.xlu0 %3689
      %3691 = vrot.lane.b32.xlu0 %v3661, 126
      %v3692 = vpop.permute.xlu0 %3691
      %3693 = vrot.lane.b32.xlu0 %v3662, 126
      %v3694 = vpop.permute.xlu0 %3693
      %3695 = vrot.lane.b32.xlu0 %v3663, 126
      %v3696 = vpop.permute.xlu0 %3695
      %3697 = vrot.lane.b32.xlu0 %v3664, 126
      %v3698 = vpop.permute.xlu0 %3697
      %3699 = vrot.lane.b32.xlu0 %v3665, 126
      %v3700 = vpop.permute.xlu0 %3699
      %3701 = vrot.lane.b32.xlu0 %v3666, 126
      %v3702 = vpop.permute.xlu0 %3701
      %v3703 = vsel %vm1262, %v3680, %v3682
      %v3704 = vsel %vm1262, %v3682, %v3684
      %v3705 = vsel %vm1262, %v3686, %v3688
      %v3706 = vsel %vm1262, %v3688, %v3690
      %v3707 = vsel %vm1262, %v3692, %v3694
      %v3708 = vsel %vm1262, %v3694, %v3696
      %v3709 = vsel %vm1262, %v3698, %v3700
      %v3710 = vsel %vm1262, %v3700, %v3702
      %v3723 = vadd.f32 %v3597, %v3703
      %v3724 = vadd.f32 %v3598, %v3704
      %v3725 = vadd.f32 %v3599, %v3684
      %v3726 = vadd.f32 %v3600, %v3705
      %v3727 = vadd.f32 %v3601, %v3706
      %v3728 = vadd.f32 %v3602, %v3690
      %v3729 = vadd.f32 %v3603, %v3707
      %v3730 = vadd.f32 %v3604, %v3708
      %v3731 = vadd.f32 %v3605, %v3696
      %v3732 = vadd.f32 %v3606, %v3709
      %v3733 = vadd.f32 %v3607, %v3710
      %v3734 = vadd.f32 %v3608, %v3702
      %3735 = vrot.lane.b32.xlu0 %v3444, 127
      %v3736 = vpop.permute.xlu0 %3735
      %3737 = vrot.lane.b32.xlu0 %v3448, 127
      %v3738 = vpop.permute.xlu0 %3737
      %v3739 = vsel %vm1187, %v3736, %v3738
      %v3743 = vmul.f32 %v3427, %v3736
      %v3744 = vmul.f32 %v3428, %v3739
      %v3745 = vmul.f32 %v3429, %v3738
      %v3746 = vmul.f32 %v3430, %v3736
      %v3747 = vmul.f32 %v3431, %v3739
      %v3748 = vmul.f32 %v3432, %v3738
      %v3749 = vmul.f32 %v3433, %v3736
      %v3750 = vmul.f32 %v3434, %v3739
      %v3751 = vmul.f32 %v3435, %v3738
      %v3752 = vmul.f32 %v3436, %v3736
      %v3753 = vmul.f32 %v3437, %v3739
      %v3754 = vmul.f32 %v3438, %v3738
      %3755 = vset.pattern.permute.xlu0 3
      %3756 = vperm.xlu0 %3755, %v3423
      %v3757 = vpop.permute.xlu0 %3756
      %3759 = vset.pattern.permute.xlu0 3
      %3760 = vperm.xlu0 %3759, %v3424
      %v3761 = vpop.permute.xlu0 %3760
      %3763 = vset.pattern.permute.xlu0 3
      %3764 = vperm.xlu0 %3763, %v3425
      %v3765 = vpop.permute.xlu0 %3764
      %3767 = vset.pattern.permute.xlu0 3
      %3768 = vperm.xlu0 %3767, %v3426
      %v3769 = vpop.permute.xlu0 %3768
      %v3771 = vmul.f32 %v3757, %v3743
      %v3772 = vmul.f32 %v3757, %v3744
      %v3773 = vmul.f32 %v3757, %v3745
      %v3774 = vmul.f32 %v3761, %v3746
      %v3775 = vmul.f32 %v3761, %v3747
      %v3776 = vmul.f32 %v3761, %v3748
      %v3777 = vmul.f32 %v3765, %v3749
      %v3778 = vmul.f32 %v3765, %v3750
      %v3779 = vmul.f32 %v3765, %v3751
      %v3780 = vmul.f32 %v3769, %v3752
      %v3781 = vmul.f32 %v3769, %v3753
      %v3782 = vmul.f32 %v3769, %v3754
      %3795 = vrot.lane.b32.xlu0 %v3771, 112
      %v3796 = vpop.permute.xlu0 %3795
      %3797 = vrot.lane.b32.xlu0 %v3772, 112
      %v3798 = vpop.permute.xlu0 %3797
      %3799 = vrot.lane.b32.xlu0 %v3773, 112
      %v3800 = vpop.permute.xlu0 %3799
      %3801 = vrot.lane.b32.xlu0 %v3774, 112
      %v3802 = vpop.permute.xlu0 %3801
      %3803 = vrot.lane.b32.xlu0 %v3775, 112
      %v3804 = vpop.permute.xlu0 %3803
      %3805 = vrot.lane.b32.xlu0 %v3776, 112
      %v3806 = vpop.permute.xlu0 %3805
      %3807 = vrot.lane.b32.xlu0 %v3777, 112
      %v3808 = vpop.permute.xlu0 %3807
      %3809 = vrot.lane.b32.xlu0 %v3778, 112
      %v3810 = vpop.permute.xlu0 %3809
      %3811 = vrot.lane.b32.xlu0 %v3779, 112
      %v3812 = vpop.permute.xlu0 %3811
      %3813 = vrot.lane.b32.xlu0 %v3780, 112
      %v3814 = vpop.permute.xlu0 %3813
      %3815 = vrot.lane.b32.xlu0 %v3781, 112
      %v3816 = vpop.permute.xlu0 %3815
      %3817 = vrot.lane.b32.xlu0 %v3782, 112
      %v3818 = vpop.permute.xlu0 %3817
      %v3819 = vsel %vm1325, %v3796, %v3798
      %v3820 = vsel %vm1325, %v3798, %v3800
      %v3821 = vsel %vm1325, %v3802, %v3804
      %v3822 = vsel %vm1325, %v3804, %v3806
      %v3823 = vsel %vm1325, %v3808, %v3810
      %v3824 = vsel %vm1325, %v3810, %v3812
      %v3825 = vsel %vm1325, %v3814, %v3816
      %v3826 = vsel %vm1325, %v3816, %v3818
      %v3839 = vadd.f32 %v3723, %v3819
      %v3840 = vadd.f32 %v3724, %v3820
      %v3841 = vadd.f32 %v3725, %v3800
      %v3842 = vadd.f32 %v3726, %v3821
      %v3843 = vadd.f32 %v3727, %v3822
      %v3844 = vadd.f32 %v3728, %v3806
      %v3845 = vadd.f32 %v3729, %v3823
      %v3846 = vadd.f32 %v3730, %v3824
      %v3847 = vadd.f32 %v3731, %v3812
      %v3848 = vadd.f32 %v3732, %v3825
      %v3849 = vadd.f32 %v3733, %v3826
      %v3850 = vadd.f32 %v3734, %v3818
      %3851 = vset.pattern.permute.xlu0 4
      %3852 = vperm.xlu0 %3851, %v3423
      %v3853 = vpop.permute.xlu0 %3852
      %3855 = vset.pattern.permute.xlu0 4
      %3856 = vperm.xlu0 %3855, %v3424
      %v3857 = vpop.permute.xlu0 %3856
      %3859 = vset.pattern.permute.xlu0 4
      %3860 = vperm.xlu0 %3859, %v3425
      %v3861 = vpop.permute.xlu0 %3860
      %3863 = vset.pattern.permute.xlu0 4
      %3864 = vperm.xlu0 %3863, %v3426
      %v3865 = vpop.permute.xlu0 %3864
      %v3867 = vmul.f32 %v3853, %v3428
      %v3868 = vmul.f32 %v3853, %v3429
      %v3869 = vmul.f32 %v3857, %v3431
      %v3870 = vmul.f32 %v3857, %v3432
      %v3871 = vmul.f32 %v3861, %v3434
      %v3872 = vmul.f32 %v3861, %v3435
      %v3873 = vmul.f32 %v3865, %v3437
      %v3874 = vmul.f32 %v3865, %v3438
      %3883 = vrot.lane.b32.xlu0 %v3867, 111
      %v3884 = vpop.permute.xlu0 %3883
      %3885 = vrot.lane.b32.xlu0 %v3868, 111
      %v3886 = vpop.permute.xlu0 %3885
      %3887 = vrot.lane.b32.xlu0 %v3869, 111
      %v3888 = vpop.permute.xlu0 %3887
      %3889 = vrot.lane.b32.xlu0 %v3870, 111
      %v3890 = vpop.permute.xlu0 %3889
      %3891 = vrot.lane.b32.xlu0 %v3871, 111
      %v3892 = vpop.permute.xlu0 %3891
      %3893 = vrot.lane.b32.xlu0 %v3872, 111
      %v3894 = vpop.permute.xlu0 %3893
      %3895 = vrot.lane.b32.xlu0 %v3873, 111
      %v3896 = vpop.permute.xlu0 %3895
      %3897 = vrot.lane.b32.xlu0 %v3874, 111
      %v3898 = vpop.permute.xlu0 %3897
      %v3899 = vsel %vm1122, %v3884, %v3886
      %v3900 = vsel %vm1122, %v3888, %v3890
      %v3901 = vsel %vm1122, %v3892, %v3894
      %v3902 = vsel %vm1122, %v3896, %v3898
      %v3915 = vadd.f32 %v3839, %v3884
      %v3916 = vadd.f32 %v3840, %v3899
      %v3917 = vadd.f32 %v3841, %v3886
      %v3918 = vadd.f32 %v3842, %v3888
      %v3919 = vadd.f32 %v3843, %v3900
      %v3920 = vadd.f32 %v3844, %v3890
      %v3921 = vadd.f32 %v3845, %v3892
      %v3922 = vadd.f32 %v3846, %v3901
      %v3923 = vadd.f32 %v3847, %v3894
      %v3924 = vadd.f32 %v3848, %v3896
      %v3925 = vadd.f32 %v3849, %v3902
      %v3926 = vadd.f32 %v3850, %v3898
      %v3927 = vld [vmem:[#allocation2 + $0x10] sm:$0xff]
      %v3928 = vld [vmem:[#allocation2 + $0x18] sm:$0xff]
      %v3929 = vld [vmem:[#allocation2 + $0x20] sm:$0xff]
      %v3930 = vld [vmem:[#allocation2 + $0x40] sm:$0xff]
      %v3931 = vld [vmem:[#allocation2 + $0x48] sm:$0xff]
      %v3932 = vld [vmem:[#allocation2 + $0x50] sm:$0xff]
      %v3933 = vld [vmem:[#allocation2 + $0x70] sm:$0xff]
      %v3934 = vld [vmem:[#allocation2 + $0x78] sm:$0xff]
      %v3935 = vld [vmem:[#allocation2 + $0x80] sm:$0xff]
      %v3936 = vld [vmem:[#allocation2 + $0xa0] sm:$0xff]
      %v3937 = vld [vmem:[#allocation2 + $0xa8] sm:$0xff]
      %v3938 = vld [vmem:[#allocation2 + $0xb0] sm:$0xff]
      %3939 = vrot.lane.b32.xlu0 %v3614, 1
      %v3940 = vpop.permute.xlu0 %3939
      %3941 = vrot.lane.b32.xlu0 %v3618, 1
      %v3942 = vpop.permute.xlu0 %3941
      %v3943 = vsel %vm1390, %v3940, %v3942
      %v3947 = vmul.f32 %v3927, %v3940
      %v3948 = vmul.f32 %v3928, %v3943
      %v3949 = vmul.f32 %v3929, %v3942
      %v3950 = vmul.f32 %v3930, %v3940
      %v3951 = vmul.f32 %v3931, %v3943
      %v3952 = vmul.f32 %v3932, %v3942
      %v3953 = vmul.f32 %v3933, %v3940
      %v3954 = vmul.f32 %v3934, %v3943
      %v3955 = vmul.f32 %v3935, %v3942
      %v3956 = vmul.f32 %v3936, %v3940
      %v3957 = vmul.f32 %v3937, %v3943
      %v3958 = vmul.f32 %v3938, %v3942
      %3959 = vset.pattern.permute.xlu0 5
      %3960 = vperm.xlu0 %3959, %v3423
      %v3961 = vpop.permute.xlu0 %3960
      %3963 = vset.pattern.permute.xlu0 5
      %3964 = vperm.xlu0 %3963, %v3424
      %v3965 = vpop.permute.xlu0 %3964
      %3967 = vset.pattern.permute.xlu0 5
      %3968 = vperm.xlu0 %3967, %v3425
      %v3969 = vpop.permute.xlu0 %3968
      %3971 = vset.pattern.permute.xlu0 5
      %3972 = vperm.xlu0 %3971, %v3426
      %v3973 = vpop.permute.xlu0 %3972
      %v3975 = vmul.f32 %v3961, %v3947
      %v3976 = vmul.f32 %v3961, %v3948
      %v3977 = vmul.f32 %v3961, %v3949
      %v3978 = vmul.f32 %v3965, %v3950
      %v3979 = vmul.f32 %v3965, %v3951
      %v3980 = vmul.f32 %v3965, %v3952
      %v3981 = vmul.f32 %v3969, %v3953
      %v3982 = vmul.f32 %v3969, %v3954
      %v3983 = vmul.f32 %v3969, %v3955
      %v3984 = vmul.f32 %v3973, %v3956
      %v3985 = vmul.f32 %v3973, %v3957
      %v3986 = vmul.f32 %v3973, %v3958
      %3999 = vrot.lane.b32.xlu0 %v3975, 110
      %v4000 = vpop.permute.xlu0 %3999
      %4001 = vrot.lane.b32.xlu0 %v3976, 110
      %v4002 = vpop.permute.xlu0 %4001
      %4003 = vrot.lane.b32.xlu0 %v3977, 110
      %v4004 = vpop.permute.xlu0 %4003
      %4005 = vrot.lane.b32.xlu0 %v3978, 110
      %v4006 = vpop.permute.xlu0 %4005
      %4007 = vrot.lane.b32.xlu0 %v3979, 110
      %v4008 = vpop.permute.xlu0 %4007
      %4009 = vrot.lane.b32.xlu0 %v3980, 110
      %v4010 = vpop.permute.xlu0 %4009
      %4011 = vrot.lane.b32.xlu0 %v3981, 110
      %v4012 = vpop.permute.xlu0 %4011
      %4013 = vrot.lane.b32.xlu0 %v3982, 110
      %v4014 = vpop.permute.xlu0 %4013
      %4015 = vrot.lane.b32.xlu0 %v3983, 110
      %v4016 = vpop.permute.xlu0 %4015
      %4017 = vrot.lane.b32.xlu0 %v3984, 110
      %v4018 = vpop.permute.xlu0 %4017
      %4019 = vrot.lane.b32.xlu0 %v3985, 110
      %v4020 = vpop.permute.xlu0 %4019
      %4021 = vrot.lane.b32.xlu0 %v3986, 110
      %v4022 = vpop.permute.xlu0 %4021
      %v4023 = vsel %vm1433, %v4000, %v4002
      %v4024 = vsel %vm1433, %v4002, %v4004
      %v4025 = vsel %vm1433, %v4006, %v4008
      %v4026 = vsel %vm1433, %v4008, %v4010
      %v4027 = vsel %vm1433, %v4012, %v4014
      %v4028 = vsel %vm1433, %v4014, %v4016
      %v4029 = vsel %vm1433, %v4018, %v4020
      %v4030 = vsel %vm1433, %v4020, %v4022
      %v4043 = vadd.f32 %v3915, %v4000
      %v4044 = vadd.f32 %v3916, %v4023
      %v4045 = vadd.f32 %v3917, %v4024
      %v4046 = vadd.f32 %v3918, %v4006
      %v4047 = vadd.f32 %v3919, %v4025
      %v4048 = vadd.f32 %v3920, %v4026
      %v4049 = vadd.f32 %v3921, %v4012
      %v4050 = vadd.f32 %v3922, %v4027
      %v4051 = vadd.f32 %v3923, %v4028
      %v4052 = vadd.f32 %v3924, %v4018
      %v4053 = vadd.f32 %v3925, %v4029
      %v4054 = vadd.f32 %v3926, %v4030
      %4055 = vrot.lane.b32.xlu0 %v3444, 15
      %v4056 = vpop.permute.xlu0 %4055
      %4057 = vrot.lane.b32.xlu0 %v3448, 15
      %v4058 = vpop.permute.xlu0 %4057
      %v4059 = vsel %vm1454, %v4056, %v4058
      %v4063 = vmul.f32 %v3927, %v4056
      %v4064 = vmul.f32 %v3928, %v4059
      %v4065 = vmul.f32 %v3929, %v4058
      %v4066 = vmul.f32 %v3930, %v4056
      %v4067 = vmul.f32 %v3931, %v4059
      %v4068 = vmul.f32 %v3932, %v4058
      %v4069 = vmul.f32 %v3933, %v4056
      %v4070 = vmul.f32 %v3934, %v4059
      %v4071 = vmul.f32 %v3935, %v4058
      %v4072 = vmul.f32 %v3936, %v4056
      %v4073 = vmul.f32 %v3937, %v4059
      %v4074 = vmul.f32 %v3938, %v4058
      %4075 = vset.pattern.permute.xlu0 6
      %4076 = vperm.xlu0 %4075, %v3423
      %v4077 = vpop.permute.xlu0 %4076
      %4079 = vset.pattern.permute.xlu0 6
      %4080 = vperm.xlu0 %4079, %v3424
      %v4081 = vpop.permute.xlu0 %4080
      %4083 = vset.pattern.permute.xlu0 6
      %4084 = vperm.xlu0 %4083, %v3425
      %v4085 = vpop.permute.xlu0 %4084
      %4087 = vset.pattern.permute.xlu0 6
      %4088 = vperm.xlu0 %4087, %v3426
      %v4089 = vpop.permute.xlu0 %4088
      %v4091 = vmul.f32 %v4077, %v4063
      %v4092 = vmul.f32 %v4077, %v4064
      %v4093 = vmul.f32 %v4077, %v4065
      %v4094 = vmul.f32 %v4081, %v4066
      %v4095 = vmul.f32 %v4081, %v4067
      %v4096 = vmul.f32 %v4081, %v4068
      %v4097 = vmul.f32 %v4085, %v4069
      %v4098 = vmul.f32 %v4085, %v4070
      %v4099 = vmul.f32 %v4085, %v4071
      %v4100 = vmul.f32 %v4089, %v4072
      %v4101 = vmul.f32 %v4089, %v4073
      %v4102 = vmul.f32 %v4089, %v4074
      %4115 = vrot.lane.b32.xlu0 %v4091, 96
      %v4116 = vpop.permute.xlu0 %4115
      %4117 = vrot.lane.b32.xlu0 %v4092, 96
      %v4118 = vpop.permute.xlu0 %4117
      %4119 = vrot.lane.b32.xlu0 %v4093, 96
      %v4120 = vpop.permute.xlu0 %4119
      %4121 = vrot.lane.b32.xlu0 %v4094, 96
      %v4122 = vpop.permute.xlu0 %4121
      %4123 = vrot.lane.b32.xlu0 %v4095, 96
      %v4124 = vpop.permute.xlu0 %4123
      %4125 = vrot.lane.b32.xlu0 %v4096, 96
      %v4126 = vpop.permute.xlu0 %4125
      %4127 = vrot.lane.b32.xlu0 %v4097, 96
      %v4128 = vpop.permute.xlu0 %4127
      %4129 = vrot.lane.b32.xlu0 %v4098, 96
      %v4130 = vpop.permute.xlu0 %4129
      %4131 = vrot.lane.b32.xlu0 %v4099, 96
      %v4132 = vpop.permute.xlu0 %4131
      %4133 = vrot.lane.b32.xlu0 %v4100, 96
      %v4134 = vpop.permute.xlu0 %4133
      %4135 = vrot.lane.b32.xlu0 %v4101, 96
      %v4136 = vpop.permute.xlu0 %4135
      %4137 = vrot.lane.b32.xlu0 %v4102, 96
      %v4138 = vpop.permute.xlu0 %4137
      %v4139 = vsel %vm1497, %v4116, %v4118
      %v4140 = vsel %vm1497, %v4118, %v4120
      %v4141 = vsel %vm1497, %v4122, %v4124
      %v4142 = vsel %vm1497, %v4124, %v4126
      %v4143 = vsel %vm1497, %v4128, %v4130
      %v4144 = vsel %vm1497, %v4130, %v4132
      %v4145 = vsel %vm1497, %v4134, %v4136
      %v4146 = vsel %vm1497, %v4136, %v4138
      %v4159 = vadd.f32 %v4043, %v4116
      %v4160 = vadd.f32 %v4044, %v4139
      %v4161 = vadd.f32 %v4045, %v4140
      %v4162 = vadd.f32 %v4046, %v4122
      %v4163 = vadd.f32 %v4047, %v4141
      %v4164 = vadd.f32 %v4048, %v4142
      %v4165 = vadd.f32 %v4049, %v4128
      %v4166 = vadd.f32 %v4050, %v4143
      %v4167 = vadd.f32 %v4051, %v4144
      %v4168 = vadd.f32 %v4052, %v4134
      %v4169 = vadd.f32 %v4053, %v4145
      %v4170 = vadd.f32 %v4054, %v4146
      %4171 = vset.pattern.permute.xlu0 7
      %4172 = vperm.xlu0 %4171, %v3423
      %v4173 = vpop.permute.xlu0 %4172
      %4175 = vset.pattern.permute.xlu0 7
      %4176 = vperm.xlu0 %4175, %v3424
      %v4177 = vpop.permute.xlu0 %4176
      %4179 = vset.pattern.permute.xlu0 7
      %4180 = vperm.xlu0 %4179, %v3425
      %v4181 = vpop.permute.xlu0 %4180
      %4183 = vset.pattern.permute.xlu0 7
      %4184 = vperm.xlu0 %4183, %v3426
      %v4185 = vpop.permute.xlu0 %4184
      %v4187 = vmul.f32 %v4173, %v3927
      %v4188 = vmul.f32 %v4173, %v3928
      %v4189 = vmul.f32 %v4173, %v3929
      %v4190 = vmul.f32 %v4177, %v3930
      %v4191 = vmul.f32 %v4177, %v3931
      %v4192 = vmul.f32 %v4177, %v3932
      %v4193 = vmul.f32 %v4181, %v3933
      %v4194 = vmul.f32 %v4181, %v3934
      %v4195 = vmul.f32 %v4181, %v3935
      %v4196 = vmul.f32 %v4185, %v3936
      %v4197 = vmul.f32 %v4185, %v3937
      %v4198 = vmul.f32 %v4185, %v3938
      %4211 = vrot.lane.b32.xlu0 %v4187, 95
      %v4212 = vpop.permute.xlu0 %4211
      %4213 = vrot.lane.b32.xlu0 %v4188, 95
      %v4214 = vpop.permute.xlu0 %4213
      %4215 = vrot.lane.b32.xlu0 %v4189, 95
      %v4216 = vpop.permute.xlu0 %4215
      %4217 = vrot.lane.b32.xlu0 %v4190, 95
      %v4218 = vpop.permute.xlu0 %4217
      %4219 = vrot.lane.b32.xlu0 %v4191, 95
      %v4220 = vpop.permute.xlu0 %4219
      %4221 = vrot.lane.b32.xlu0 %v4192, 95
      %v4222 = vpop.permute.xlu0 %4221
      %4223 = vrot.lane.b32.xlu0 %v4193, 95
      %v4224 = vpop.permute.xlu0 %4223
      %4225 = vrot.lane.b32.xlu0 %v4194, 95
      %v4226 = vpop.permute.xlu0 %4225
      %4227 = vrot.lane.b32.xlu0 %v4195, 95
      %v4228 = vpop.permute.xlu0 %4227
      %4229 = vrot.lane.b32.xlu0 %v4196, 95
      %v4230 = vpop.permute.xlu0 %4229
      %4231 = vrot.lane.b32.xlu0 %v4197, 95
      %v4232 = vpop.permute.xlu0 %4231
      %4233 = vrot.lane.b32.xlu0 %v4198, 95
      %v4234 = vpop.permute.xlu0 %4233
      %v4235 = vsel %vm1546, %v4212, %v4214
      %v4236 = vsel %vm1546, %v4214, %v4216
      %v4237 = vsel %vm1546, %v4218, %v4220
      %v4238 = vsel %vm1546, %v4220, %v4222
      %v4239 = vsel %vm1546, %v4224, %v4226
      %v4240 = vsel %vm1546, %v4226, %v4228
      %v4241 = vsel %vm1546, %v4230, %v4232
      %v4242 = vsel %vm1546, %v4232, %v4234
      %v4255 = vadd.f32 %v4159, %v4212
      %v4256 = vadd.f32 %v4160, %v4235
      %v4257 = vadd.f32 %v4161, %v4236
      %v4258 = vadd.f32 %v4162, %v4218
      %v4259 = vadd.f32 %v4163, %v4237
      %v4260 = vadd.f32 %v4164, %v4238
      %v4261 = vadd.f32 %v4165, %v4224
      %v4262 = vadd.f32 %v4166, %v4239
      %v4263 = vadd.f32 %v4167, %v4240
      %v4264 = vadd.f32 %v4168, %v4230
      %v4265 = vadd.f32 %v4169, %v4241
      %v4266 = vadd.f32 %v4170, %v4242
      %4267 = vrot.lane.b32.xlu0 %v3614, 17
      %v4268 = vpop.permute.xlu0 %4267
      %4269 = vrot.lane.b32.xlu0 %v3618, 17
      %v4270 = vpop.permute.xlu0 %4269
      %v4271 = vsel %vm1567, %v4268, %v4270
      %v4275 = vmul.f32 %v3927, %v4268
      %v4276 = vmul.f32 %v3928, %v4271
      %v4277 = vmul.f32 %v3929, %v4270
      %v4278 = vmul.f32 %v3930, %v4268
      %v4279 = vmul.f32 %v3931, %v4271
      %v4280 = vmul.f32 %v3932, %v4270
      %v4281 = vmul.f32 %v3933, %v4268
      %v4282 = vmul.f32 %v3934, %v4271
      %v4283 = vmul.f32 %v3935, %v4270
      %v4284 = vmul.f32 %v3936, %v4268
      %v4285 = vmul.f32 %v3937, %v4271
      %v4286 = vmul.f32 %v3938, %v4270
      %4287 = vset.pattern.permute.xlu0 8
      %4288 = vperm.xlu0 %4287, %v3423
      %v4289 = vpop.permute.xlu0 %4288
      %4291 = vset.pattern.permute.xlu0 8
      %4292 = vperm.xlu0 %4291, %v3424
      %v4293 = vpop.permute.xlu0 %4292
      %4295 = vset.pattern.permute.xlu0 8
      %4296 = vperm.xlu0 %4295, %v3425
      %v4297 = vpop.permute.xlu0 %4296
      %4299 = vset.pattern.permute.xlu0 8
      %4300 = vperm.xlu0 %4299, %v3426
      %v4301 = vpop.permute.xlu0 %4300
      %v4303 = vmul.f32 %v4289, %v4275
      %v4304 = vmul.f32 %v4289, %v4276
      %v4305 = vmul.f32 %v4289, %v4277
      %v4306 = vmul.f32 %v4293, %v4278
      %v4307 = vmul.f32 %v4293, %v4279
      %v4308 = vmul.f32 %v4293, %v4280
      %v4309 = vmul.f32 %v4297, %v4281
      %v4310 = vmul.f32 %v4297, %v4282
      %v4311 = vmul.f32 %v4297, %v4283
      %v4312 = vmul.f32 %v4301, %v4284
      %v4313 = vmul.f32 %v4301, %v4285
      %v4314 = vmul.f32 %v4301, %v4286
      %4327 = vrot.lane.b32.xlu0 %v4303, 94
      %v4328 = vpop.permute.xlu0 %4327
      %4329 = vrot.lane.b32.xlu0 %v4304, 94
      %v4330 = vpop.permute.xlu0 %4329
      %4331 = vrot.lane.b32.xlu0 %v4305, 94
      %v4332 = vpop.permute.xlu0 %4331
      %4333 = vrot.lane.b32.xlu0 %v4306, 94
      %v4334 = vpop.permute.xlu0 %4333
      %4335 = vrot.lane.b32.xlu0 %v4307, 94
      %v4336 = vpop.permute.xlu0 %4335
      %4337 = vrot.lane.b32.xlu0 %v4308, 94
      %v4338 = vpop.permute.xlu0 %4337
      %4339 = vrot.lane.b32.xlu0 %v4309, 94
      %v4340 = vpop.permute.xlu0 %4339
      %4341 = vrot.lane.b32.xlu0 %v4310, 94
      %v4342 = vpop.permute.xlu0 %4341
      %4343 = vrot.lane.b32.xlu0 %v4311, 94
      %v4344 = vpop.permute.xlu0 %4343
      %4345 = vrot.lane.b32.xlu0 %v4312, 94
      %v4346 = vpop.permute.xlu0 %4345
      %4347 = vrot.lane.b32.xlu0 %v4313, 94
      %v4348 = vpop.permute.xlu0 %4347
      %4349 = vrot.lane.b32.xlu0 %v4314, 94
      %v4350 = vpop.permute.xlu0 %4349
      %v4351 = vsel %vm1610, %v4328, %v4330
      %v4352 = vsel %vm1610, %v4330, %v4332
      %v4353 = vsel %vm1610, %v4334, %v4336
      %v4354 = vsel %vm1610, %v4336, %v4338
      %v4355 = vsel %vm1610, %v4340, %v4342
      %v4356 = vsel %vm1610, %v4342, %v4344
      %v4357 = vsel %vm1610, %v4346, %v4348
      %v4358 = vsel %vm1610, %v4348, %v4350
      %v4371 = vadd.f32 %v4255, %v4328
      %v4372 = vadd.f32 %v4256, %v4351
      %v4373 = vadd.f32 %v4257, %v4352
      %v4374 = vadd.f32 %v4258, %v4334
      %v4375 = vadd.f32 %v4259, %v4353
      %v4376 = vadd.f32 %v4260, %v4354
      %v4377 = vadd.f32 %v4261, %v4340
      %v4378 = vadd.f32 %v4262, %v4355
      %v4379 = vadd.f32 %v4263, %v4356
      %v4380 = vadd.f32 %v4264, %v4346
      %v4381 = vadd.f32 %v4265, %v4357
      %v4382 = vadd.f32 %v4266, %v4358
      %v4383 = vld [vmem:[%s17] sm:$0xff]
      %v4384 = vld [vmem:[%s17 + $0x8] sm:$0xff]
      %v4385 = vld [vmem:[%s17 + $0x10] sm:$0xff]
      %v4386 = vld [vmem:[%s17 + $0x18] sm:$0xff]
      %4388 = vset.pattern.permute.xlu0 0
      %4389 = vperm.xlu0 %4388, %v4383
      %v4390 = vpop.permute.xlu0 %4389
      %4393 = vset.pattern.permute.xlu0 0
      %4394 = vperm.xlu0 %4393, %v4384
      %v4395 = vpop.permute.xlu0 %4394
      %4398 = vset.pattern.permute.xlu0 0
      %4399 = vperm.xlu0 %4398, %v4385
      %v4400 = vpop.permute.xlu0 %4399
      %4403 = vset.pattern.permute.xlu0 0
      %4404 = vperm.xlu0 %4403, %v4386
      %v4405 = vpop.permute.xlu0 %4404
      %v4407 = vadd.f32 %v4371, %v4390
      %v4408 = vadd.f32 %v4372, %v4390
      %v4409 = vadd.f32 %v4373, %v4390
      %v4410 = vadd.f32 %v4374, %v4395
      %v4411 = vadd.f32 %v4375, %v4395
      %v4412 = vadd.f32 %v4376, %v4395
      %v4413 = vadd.f32 %v4377, %v4400
      %v4414 = vadd.f32 %v4378, %v4400
      %v4415 = vadd.f32 %v4379, %v4400
      %v4416 = vadd.f32 %v4380, %v4405
      %v4417 = vadd.f32 %v4381, %v4405
      %v4418 = vadd.f32 %v4382, %v4405
      %v4419 = vld [vmem:[%s18] sm:$0xff]
      %v4420 = vld [vmem:[%s19] sm:$0xff]
      %4422 = vset.pattern.permute.xlu0 0
      %4423 = vperm.xlu0 %4422, %v4420
      %v4424 = vpop.permute.xlu0 %4423
      %4438 = vrot.lane.b32.xlu0 %v4407, 17
      %v4439 = vpop.permute.xlu0 %4438
      %4440 = vrot.lane.b32.xlu0 %v4408, 17
      %v4441 = vpop.permute.xlu0 %4440
      %4442 = vrot.lane.b32.xlu0 %v4409, 17
      %v4443 = vpop.permute.xlu0 %4442
      %4444 = vrot.lane.b32.xlu0 %v4410, 17
      %v4445 = vpop.permute.xlu0 %4444
      %4446 = vrot.lane.b32.xlu0 %v4411, 17
      %v4447 = vpop.permute.xlu0 %4446
      %4448 = vrot.lane.b32.xlu0 %v4412, 17
      %v4449 = vpop.permute.xlu0 %4448
      %4450 = vrot.lane.b32.xlu0 %v4413, 17
      %v4451 = vpop.permute.xlu0 %4450
      %4452 = vrot.lane.b32.xlu0 %v4414, 17
      %v4453 = vpop.permute.xlu0 %4452
      %4454 = vrot.lane.b32.xlu0 %v4415, 17
      %v4455 = vpop.permute.xlu0 %4454
      %4456 = vrot.lane.b32.xlu0 %v4416, 17
      %v4457 = vpop.permute.xlu0 %4456
      %4458 = vrot.lane.b32.xlu0 %v4417, 17
      %v4459 = vpop.permute.xlu0 %4458
      %4460 = vrot.lane.b32.xlu0 %v4418, 17
      %v4461 = vpop.permute.xlu0 %4460
      %v4462 = vsel %vm1567, %v4439, %v4441
      %v4463 = vsel %vm1567, %v4441, %v4443
      %v4464 = vsel %vm1567, %v4445, %v4447
      %v4465 = vsel %vm1567, %v4447, %v4449
      %v4466 = vsel %vm1567, %v4451, %v4453
      %v4467 = vsel %vm1567, %v4453, %v4455
      %v4468 = vsel %vm1567, %v4457, %v4459
      %v4469 = vsel %vm1567, %v4459, %v4461
      %v4479 = vsel %vm1994, %v4419, 0
      %4481 = vmatprep.subr.mxu0 %v4463
      %4482 = vmatpush1.msra.mxu0 %v4462
      %4483 = vmatprep.subr.mxu0 %v4465
      %4484 = vmatpush1.msra.mxu0 %v4464
      %4485 = vmatprep.subr.mxu0 %v4467
      %4486 = vmatpush1.msra.mxu0 %v4466
      %4487 = vmatprep.subr.mxu0 %v4469
      %4488 = vmatpush1.msra.mxu0 %v4468
      %4489 = vmatprep.subr.mxu0 0.0
      %4490 = vmatpush1.msra.mxu0 0.0
      %4491 = vmatprep.subr.mxu0 0.0
      %4492 = vmatpush1.msra.mxu0 0.0
      %4493 = vmatprep.subr.mxu0 0.0
      %4494 = vmatpush1.msra.mxu0 0.0
      %4495 = vmatprep.subr.mxu0 0.0
      %4496 = vmatpush1.msra.mxu0 0.0
      %4497 = vmatprep.subr.mxu0 0.0
      %4498 = vmatpush1.msra.mxu0 0.0
      %4499 = vmatprep.subr.mxu0 0.0
      %4500 = vmatpush1.msra.mxu0 0.0
      %4501 = vmatprep.subr.mxu0 0.0
      %4502 = vmatpush1.msra.mxu0 0.0
      %4503 = vmatprep.subr.mxu0 0.0
      %4504 = vmatpush1.msra.mxu0 0.0
      %4505 = vmatprep.subr.mxu0 0.0
      %4506 = vmatpush1.msra.mxu0 0.0
      %4507 = vmatprep.subr.mxu0 0.0
      %4508 = vmatpush1.msra.mxu0 0.0
      %4509 = vmatprep.subr.mxu0 0.0
      %4510 = vmatpush1.msra.mxu0 0.0
      %4511 = vmatprep.subr.mxu0 0.0
      %4512 = vmatpush1.msra.mxu0 0.0
      %4513 = vmatprep.subr.mxu0 0.0
      %4514 = vmatpush1.msra.mxu0 0.0
      %4515 = vmatprep.subr.mxu0 0.0
      %4516 = vmatpush1.msra.mxu0 0.0
      %4517 = vmatprep.subr.mxu0 0.0
      %4518 = vmatpush1.msra.mxu0 0.0
      %4519 = vmatprep.subr.mxu0 0.0
      %4520 = vmatpush1.msra.mxu0 0.0
      %4521 = vmatprep.subr.mxu0 0.0
      %4522 = vmatpush1.msra.mxu0 0.0
      %4523 = vmatprep.subr.mxu0 0.0
      %4524 = vmatpush1.msra.mxu0 0.0
      %4525 = vmatprep.subr.mxu0 0.0
      %4526 = vmatpush1.msra.mxu0 0.0
      %4527 = vmatprep.subr.mxu0 0.0
      %4528 = vmatpush1.msra.mxu0 0.0
      %4529 = vmatprep.subr.mxu0 0.0
      %4530 = vmatpush1.msra.mxu0 0.0
      %4531 = vmatprep.subr.mxu0 0.0
      %4532 = vmatpush1.msra.mxu0 0.0
      %4533 = vmatprep.subr.mxu0 0.0
      %4534 = vmatpush1.msra.mxu0 0.0
      %4535 = vmatprep.subr.mxu0 0.0
      %4536 = vmatpush1.msra.mxu0 0.0
      %4537 = vmatprep.subr.mxu0 0.0
      %4538 = vmatpush1.msra.mxu0 0.0
      %4539 = vmatprep.subr.mxu0 0.0
      %4540 = vmatpush1.msra.mxu0 0.0
      %4541 = vmatprep.subr.mxu0 0.0
      %4542 = vmatpush1.msra.mxu0 0.0
      %4543 = vmatprep.subr.mxu0 0.0
      %4544 = vmatpush1.msra.mxu0 0.0
      %4545 = vmatprep.mubr.f32.mxu0 0.0
      %4546 = vmatmul.mubr.f32.gmra.mrb[0].mxu0 %v4479
      %v4547 = vpop.f32.mrb[0].mxu0
      %v4548 = vadd.f32 %v4424, %v4547
      %v4549 = vpop.f32.mrb[0].mxu0
      %v4550 = vadd.f32 %v4424, %v4549
      %4551 = vdwg.mxu0
      %v4552 = vmax.f32 %v4548, 0.0
      %v4553 = vmax.f32 %v4550, 0.0
      %v4554 = vld [vmem:[%s20] sm:$0xff]
      %v4555 = vld [vmem:[%s21] sm:$0xff]
      %4557 = vset.pattern.permute.xlu0 0
      %4558 = vperm.xlu0 %4557, %v4555
      %v4559 = vpop.permute.xlu0 %4558
      %vm4561 = vcmask 64512
      %v4563 = vsel %vm4561, %v4554, 0
      %4565 = vmatprep.subr.mxu0 %v4553
      %4566 = vmatpush1.msra.mxu0 %v4552
      %4567 = vmatprep.subr.mxu0 0.0
      %4568 = vmatpush1.msra.mxu0 0.0
      %4569 = vmatprep.subr.mxu0 0.0
      %4570 = vmatpush1.msra.mxu0 0.0
      %4571 = vmatprep.subr.mxu0 0.0
      %4572 = vmatpush1.msra.mxu0 0.0
      %4573 = vmatprep.subr.mxu0 0.0
      %4574 = vmatpush1.msra.mxu0 0.0
      %4575 = vmatprep.subr.mxu0 0.0
      %4576 = vmatpush1.msra.mxu0 0.0
      %4577 = vmatprep.subr.mxu0 0.0
      %4578 = vmatpush1.msra.mxu0 0.0
      %4579 = vmatprep.subr.mxu0 0.0
      %4580 = vmatpush1.msra.mxu0 0.0
      %4581 = vmatprep.subr.mxu0 0.0
      %4582 = vmatpush1.msra.mxu0 0.0
      %4583 = vmatprep.subr.mxu0 0.0
      %4584 = vmatpush1.msra.mxu0 0.0
      %4585 = vmatprep.subr.mxu0 0.0
      %4586 = vmatpush1.msra.mxu0 0.0
      %4587 = vmatprep.subr.mxu0 0.0
      %4588 = vmatpush1.msra.mxu0 0.0
      %4589 = vmatprep.subr.mxu0 0.0
      %4590 = vmatpush1.msra.mxu0 0.0
      %4591 = vmatprep.subr.mxu0 0.0
      %4592 = vmatpush1.msra.mxu0 0.0
      %4593 = vmatprep.subr.mxu0 0.0
      %4594 = vmatpush1.msra.mxu0 0.0
      %4595 = vmatprep.subr.mxu0 0.0
      %4596 = vmatpush1.msra.mxu0 0.0
      %4597 = vmatprep.subr.mxu0 0.0
      %4598 = vmatpush1.msra.mxu0 0.0
      %4599 = vmatprep.subr.mxu0 0.0
      %4600 = vmatpush1.msra.mxu0 0.0
      %4601 = vmatprep.subr.mxu0 0.0
      %4602 = vmatpush1.msra.mxu0 0.0
      %4603 = vmatprep.subr.mxu0 0.0
      %4604 = vmatpush1.msra.mxu0 0.0
      %4605 = vmatprep.subr.mxu0 0.0
      %4606 = vmatpush1.msra.mxu0 0.0
      %4607 = vmatprep.subr.mxu0 0.0
      %4608 = vmatpush1.msra.mxu0 0.0
      %4609 = vmatprep.subr.mxu0 0.0
      %4610 = vmatpush1.msra.mxu0 0.0
      %4611 = vmatprep.subr.mxu0 0.0
      %4612 = vmatpush1.msra.mxu0 0.0
      %4613 = vmatprep.subr.mxu0 0.0
      %4614 = vmatpush1.msra.mxu0 0.0
      %4615 = vmatprep.subr.mxu0 0.0
      %4616 = vmatpush1.msra.mxu0 0.0
      %4617 = vmatprep.subr.mxu0 0.0
      %4618 = vmatpush1.msra.mxu0 0.0
      %4619 = vmatprep.subr.mxu0 0.0
      %4620 = vmatpush1.msra.mxu0 0.0
      %4621 = vmatprep.subr.mxu0 0.0
      %4622 = vmatpush1.msra.mxu0 0.0
      %4623 = vmatprep.subr.mxu0 0.0
      %4624 = vmatpush1.msra.mxu0 0.0
      %4625 = vmatprep.subr.mxu0 0.0
      %4626 = vmatpush1.msra.mxu0 0.0
      %4627 = vmatprep.subr.mxu0 0.0
      %4628 = vmatpush1.msra.mxu0 0.0
      %4629 = vmatprep.mubr.f32.mxu0 0.0
      %4630 = vmatmul.mubr.f32.gmra.mrb[0].mxu0 %v4563
      %v4631 = vpop.f32.mrb[0].mxu0
      %v4632 = vadd.f32 %v4559, %v4631
      %v4633 = vpop.f32.mrb[0].mxu0
      %v4634 = vadd.f32 %v4559, %v4633
      %4635 = vdwg.mxu0
      %v4636 = vmax.f32 %v4632, 0.0
      %v4637 = vmax.f32 %v4634, 0.0
      %4638 = vst [vmem:[%s683] sm:$0xff] %v4636
      %4639 = vst [vmem:[%s683 + $0x8] sm:$0xff] %v4637
      %p4640 = scmp.lt.s32.totalorder %s33, 1
      %s4641 = scalar_select %p4640, %s33, 1
      %s4642 = smul.addr %s4641, 2
      %s4643 = smul.addr %s4642, 8
      %s4644 = scalar_lea.vmem %s22, %s4643
      // Predicated region
      $region109: #{dila_forward.1} parent=107 // pred_check
        %p4645 = pneg %p518
      $region110: #{dila_forward.1} parent=107 // pred_check_branch
        %4647 = sbr.rel (%p4645) target = $region112
      $region111: #{dila_forward.1} parent=107 // pred_region
        _
      $region112: #{dila_forward.1} parent=107 // pred_fallthru
        _
    $region108: #{dila_forward.1} parent=5 // pred_fallthru
      _
    %p4648 = scmp.le.s32.totalorder 2, %s28
    // Predicated region
    $region113: #{dila_forward.1} parent=5 // pred_check
      %p4649 = pneg %p4648
    $region114: #{dila_forward.1} parent=5 // pred_check_branch
      %4651 = sbr.rel (%p4649) target = $region116
    $region115: #{dila_forward.1} parent=5 // pred_region
      %s4652 = ssub.s32 %s28, 2
      // Predicated region
      $region117: #{dila_forward.1} parent=115 // pred_check
        %p4653 = pneg %p524
      $region118: #{dila_forward.1} parent=115 // pred_check_branch
        %4655 = sbr.rel (%p4653) target = $region120
      $region119: #{dila_forward.1} parent=115 // pred_region
        %p4656 = scmp.lt.s32.totalorder %s34, 1
        %s4657 = scalar_select %p4656, %s34, 1
        %s4658 = smul.addr %s4657, 2
        %s4659 = smul.addr %s4658, 8
        %s4660 = scalar_lea.vmem %s22, %s4659
      $region120: #{dila_forward.1} parent=115 // pred_fallthru
        _
    $region116: #{dila_forward.1} parent=5 // pred_fallthru
      _
  $region6: #{dila_forward.1} parent=0 // loop_footer
    %s32 = sadd.s32 1, %s28
  $region7: #{dila_forward.1} parent=0 // loop_footer_branch
    %27 = sbr.rel target = $region3
  $region8: #{dila_forward.1} parent=0 // loop_exit
    _

</llo_original>
